<compile_context>
chip_gen: v7x
topology: tpu7x:2x2x1
jax: 0.10.0
libtpu: 0.0.40
codegen_flags: <defaults>
</compile_context>

<pallas_src>
import functools

import jax
import jax.numpy as jnp
from jax.experimental import pallas as pl
from jax.experimental.pallas import tpu as pltpu

EPS = 1e-5
LANE = 128
VMEM_LIMIT_BYTES = 32 * 1024 * 1024  # below physical VMEM on every generation


# ------------------------------- helpers ----------------------------------- #

def _pad_to(n, m):
    return ((n + m - 1) // m) * m


def _choose_tiling(m, target=512):
    """Pick a row-tile (multiple of 8) and the padded M.

    Prefers an exact multiple-of-8 divisor of m (no padding), capped so that at
    least two tiles exist (v7x megacore); otherwise pads M up to a tile
    multiple with zero rows (pad rows are masked out of the BN statistics).
    """
    cap = max(8, min(_pad_to(target, 8), ((m // 2) // 8) * 8 or 8))
    t = cap
    while t >= 8:
        if m % t == 0:
            return t, m
        t -= 8
    tm = max(8, min(_pad_to(target, 8), _pad_to(m, 8)))
    return tm, _pad_to(m, tm)


def _cparams(dims):
    return pltpu.CompilerParams(
        dimension_semantics=dims, vmem_limit_bytes=VMEM_LIMIT_BYTES
    )


def _pack_stats(s, ss):
    """Per-channel sum (row 0) / sumsq (row 1) packed into a (1, 8, C) tile."""
    n = s.shape[0]
    row = jax.lax.broadcasted_iota(jnp.int32, (8, n), 0)
    st = jnp.where(row == 0, s[None, :], 0.0) + jnp.where(row == 1, ss[None, :], 0.0)
    return st[None]


# ------------------------------- kernels ----------------------------------- #

def _mm_stats_kernel(x_ref, w_ref, y_ref, st_ref):
    # 1x1 conv tile: in-kernel cast of the LHS to the MXU dtype, f32
    # accumulation, plus per-tile BN partial sums from the f32 accumulator.
    y = jnp.dot(x_ref[...].astype(w_ref.dtype), w_ref[...],
                preferred_element_type=jnp.float32)
    y_ref[...] = y.astype(y_ref.dtype)
    st_ref[...] = _pack_stats(jnp.sum(y, axis=0), jnp.sum(y * y, axis=0))


def _affine_relu_mm_stats_kernel(x_ref, sc_ref, sh_ref, w_ref, y_ref, st_ref, *,
                                 tm, rows_valid):
    # Fused: BN-apply (f32 scale/shift) + ReLU on the LHS tile, then 1x1 conv.
    z = jnp.maximum(x_ref[...].astype(jnp.float32) * sc_ref[...] + sh_ref[...], 0.0)
    if rows_valid is not None:  # zero M-pad rows so the BN stats stay exact
        r = pl.program_id(0) * tm + jax.lax.broadcasted_iota(jnp.int32, z.shape, 0)
        z = jnp.where(r < rows_valid, z, 0.0)
    y = jnp.dot(z.astype(w_ref.dtype), w_ref[...],
                preferred_element_type=jnp.float32)
    y_ref[...] = y
    st_ref[...] = _pack_stats(jnp.sum(y, axis=0), jnp.sum(y * y, axis=0))


def _conv3x3_img_kernel(z_ref, sc_ref, sh_ref, w_ref, y_ref, st_ref, zsh_ref, *,
                        H, W):
    """3x3 conv (stride 1, pad 1) over one whole image per grid step.

    The full 3x3 weight is VMEM-resident (constant index_map).  BN1-apply +
    ReLU run once per image.  The dx taps are fused into one K = 3*C matmul:
    a (H*W + 2*W, 3*C) VMEM scratch holds the [x-1 | x | x+1] column blocks of
    the activation with a W-row zero halo at each end, so the three dy taps are
    just row-shifted slices fed straight to the MXU.
    """
    HW = H * W
    Cp = z_ref.shape[1]
    cdt = w_ref.dtype

    # Fused BN1-apply + ReLU (once per image, in f32).
    z = jnp.maximum(z_ref[...].astype(jnp.float32) * sc_ref[...] + sh_ref[...], 0.0)

    # dx-shifted copies with zero padding at the x image borders.
    x_idx = jax.lax.broadcasted_iota(jnp.int32, (HW, Cp), 0) % W
    zrow = jnp.zeros((1, Cp), jnp.float32)
    v_xm1 = jnp.where(x_idx == 0, 0.0,
                      jnp.concatenate([zrow, z[:-1, :]], axis=0))   # input at x-1
    v_xp1 = jnp.where(x_idx == W - 1, 0.0,
                      jnp.concatenate([z[1:, :], zrow], axis=0))    # input at x+1

    # Assemble the K = 3*Cp LHS in VMEM with a W-row zero halo (dy padding).
    halo = jnp.zeros((W, 3 * Cp), cdt)
    zsh_ref[0:W, :] = halo
    zsh_ref[W + HW:2 * W + HW, :] = halo
    zsh_ref[W:W + HW, 0:Cp] = v_xm1.astype(cdt)
    zsh_ref[W:W + HW, Cp:2 * Cp] = z.astype(cdt)
    zsh_ref[W:W + HW, 2 * Cp:3 * Cp] = v_xp1.astype(cdt)

    # Three dy taps = three row-shifted slices, each a single K=3*Cp MXU dot.
    acc = jnp.dot(zsh_ref[0:HW, :], w_ref[0], preferred_element_type=jnp.float32)
    acc = acc + jnp.dot(zsh_ref[W:W + HW, :], w_ref[1],
                        preferred_element_type=jnp.float32)
    acc = acc + jnp.dot(zsh_ref[2 * W:2 * W + HW, :], w_ref[2],
                        preferred_element_type=jnp.float32)

    y_ref[...] = acc.astype(y_ref.dtype)
    st_ref[...] = _pack_stats(jnp.sum(acc, axis=0), jnp.sum(acc * acc, axis=0))


def _bn_add_relu_kernel(y_ref, sc_ref, sh_ref, idn_ref, o_ref):
    # Fused: BN3-apply + residual add + ReLU.
    o_ref[...] = jnp.maximum(
        y_ref[...] * sc_ref[...] + sh_ref[...] + idn_ref[...], 0.0)


# --------------------------- pallas_call wrappers --------------------------- #

def conv1x1_stats(x2d, w, tm, out_dtype):
    m, k = x2d.shape
    n = w.shape[1]
    mt = m // tm
    return pl.pallas_call(
        _mm_stats_kernel,
        out_shape=(jax.ShapeDtypeStruct((m, n), out_dtype),
                   jax.ShapeDtypeStruct((mt, 8, n), jnp.float32)),
        grid=(mt,),
        in_specs=[pl.BlockSpec((tm, k), lambda i: (i, 0)),
                  pl.BlockSpec((k, n), lambda i: (0, 0))],
        out_specs=(pl.BlockSpec((tm, n), lambda i: (i, 0)),
                   pl.BlockSpec((1, 8, n), lambda i: (i, 0, 0))),
        compiler_params=_cparams(("parallel",)),
    )(x2d, w)


def affine_relu_conv1x1_stats(x2d, scale, shift, w, tm, rows_valid):
    m, k = x2d.shape
    n = w.shape[1]
    mt = m // tm
    kernel = functools.partial(_affine_relu_mm_stats_kernel, tm=tm,
                               rows_valid=rows_valid)
    return pl.pallas_call(
        kernel,
        out_shape=(jax.ShapeDtypeStruct((m, n), jnp.float32),
                   jax.ShapeDtypeStruct((mt, 8, n), jnp.float32)),
        grid=(mt,),
        in_specs=[pl.BlockSpec((tm, k), lambda i: (i, 0)),
                  pl.BlockSpec((1, k), lambda i: (0, 0)),
                  pl.BlockSpec((1, k), lambda i: (0, 0)),
                  pl.BlockSpec((k, n), lambda i: (0, 0))],
        out_specs=(pl.BlockSpec((tm, n), lambda i: (i, 0)),
                   pl.BlockSpec((1, 8, n), lambda i: (i, 0, 0))),
        compiler_params=_cparams(("parallel",)),
    )(x2d, scale, shift, w)


def conv3x3_fused(y1, scale1, shift1, w2k, n_img, h, w, m_pad, out_dtype):
    hw = h * w
    cp = y1.shape[1]
    npad = w2k.shape[2]
    kernel = functools.partial(_conv3x3_img_kernel, H=h, W=w)
    return pl.pallas_call(
        kernel,
        out_shape=(jax.ShapeDtypeStruct((m_pad, npad), out_dtype),
                   jax.ShapeDtypeStruct((n_img, 8, npad), jnp.float32)),
        grid=(n_img,),
        in_specs=[pl.BlockSpec((hw, cp), lambda n: (n, 0)),
                  pl.BlockSpec((1, cp), lambda n: (0, 0)),
                  pl.BlockSpec((1, cp), lambda n: (0, 0)),
                  # full 3x3 weight resident in VMEM (constant index_map)
                  pl.BlockSpec((3, 3 * cp, npad), lambda n: (0, 0, 0))],
        out_specs=(pl.BlockSpec((hw, npad), lambda n: (n, 0)),
                   pl.BlockSpec((1, 8, npad), lambda n: (n, 0, 0))),
        scratch_shapes=[pltpu.VMEM((hw + 2 * w, 3 * cp), w2k.dtype)],
        compiler_params=_cparams(("parallel",)),
    )(y1, scale1, shift1, w2k)


def bn_add_relu(y3, scale3, shift3, identity, tm):
    m, n = y3.shape
    mt = m // tm
    return pl.pallas_call(
        _bn_add_relu_kernel,
        out_shape=jax.ShapeDtypeStruct((m, n), jnp.float32),
        grid=(mt,),
        in_specs=[pl.BlockSpec((tm, n), lambda i: (i, 0)),
                  pl.BlockSpec((1, n), lambda i: (0, 0)),
                  pl.BlockSpec((1, n), lambda i: (0, 0)),
                  pl.BlockSpec((tm, n), lambda i: (i, 0))],
        out_specs=pl.BlockSpec((tm, n), lambda i: (i, 0)),
        input_output_aliases={0: 0},  # reuse the y3 buffer for the output
        compiler_params=_cparams(("parallel",)),
    )(y3, scale3, shift3, identity)


# ------------------------------ host glue ----------------------------------- #

def _bn_scale_shift(stats, count, gamma, beta, c_pad):
    """Fold batch statistics (kernel partial sums) + gamma/beta into scale/shift.

    Note: variance uses E[x^2] - E[x]^2 in f32; fine for batch activations,
    could cancel for |mean| >> std (pretrained running stats are not used here).
    """
    s = stats[:, 0, :].sum(axis=0)
    ss = stats[:, 1, :].sum(axis=0)
    mean = s / count
    var = jnp.maximum(ss / count - mean * mean, 0.0)      # biased batch variance
    inv = jax.lax.rsqrt(var + EPS)
    g = jnp.zeros((c_pad,), jnp.float32).at[: gamma.shape[0]].set(gamma)
    b = jnp.zeros((c_pad,), jnp.float32).at[: beta.shape[0]].set(beta)
    scale = g * inv
    shift = b - mean * scale
    return scale[None, :], shift[None, :]


def init_bottleneck_params(key, in_planes, planes, base_width=64, groups=1):
    expansion = 4
    width = int(planes * (base_width / 64.0)) * groups
    out_planes = planes * expansion
    k1, k2, k3, k4 = jax.random.split(key, 4)
    params = {
        # PyTorch conv weight layout: (out, in, kh, kw)
        "conv1_w": (jax.random.normal(k1, (width, in_planes, 1, 1)) * 0.1).astype(jnp.float32),
        "conv2_w": (jax.random.normal(k2, (width, width, 3, 3)) * 0.1).astype(jnp.float32),
        "conv2_b": (jax.random.normal(k3, (width,)) * 0.1).astype(jnp.float32),  # conv3x3 bias=True
        "conv3_w": (jax.random.normal(k4, (out_planes, width, 1, 1)) * 0.1).astype(jnp.float32),
        # BatchNorm2d default init: weight=1, bias=0
        "bn1_gamma": jnp.ones((width,), jnp.float32),
        "bn1_beta": jnp.zeros((width,), jnp.float32),
        "bn2_gamma": jnp.ones((width,), jnp.float32),
        "bn2_beta": jnp.zeros((width,), jnp.float32),
        "bn3_gamma": jnp.ones((out_planes,), jnp.float32),
        "bn3_beta": jnp.zeros((out_planes,), jnp.float32),
    }
    return params, width, out_planes


def bottleneck_forward(x_nchw, params, compute_dtype=jnp.bfloat16, tile_target=512):
    """stride=1, groups=1, dilation=1, downsample=None (identity residual).

    compute_dtype: MXU operand / intermediate-activation dtype (bf16 default
    for v5e/v6e/v7x throughput + HBM bandwidth; pass jnp.float32 for exactness).
    Accumulation and all BN / elementwise math stay in f32.
    tile_target: M row-tile target for the 1x1 / epilogue stages (raise to 1024
    on v5e/v6e if desired).
    """
    n_img, c_in, h, w = x_nchw.shape
    width = params["conv1_w"].shape[0]
    c_out = params["conv3_w"].shape[0]
    assert c_in == c_out, "identity residual requires in_planes == planes * 4"
    assert (h * w) % 8 == 0, "conv2 whole-image block needs H*W % 8 == 0"

    kp = _pad_to(c_in, LANE)      # padded in/out channels (c_in == c_out)
    wp = _pad_to(width, LANE)     # padded bottleneck width
    m = n_img * h * w
    tm, m_pad = _choose_tiling(m, tile_target)

    # NCHW -> NHWC -> lane-dense (M, Cp) slab (zero pad rows + channels).
    x = jnp.transpose(x_nchw, (0, 2, 3, 1)).astype(jnp.float32)
    x2d = jnp.pad(x.reshape(m, c_in), ((0, m_pad - m), (0, kp - c_in)))

    # Weights: pad channels to lane multiples; MXU operands in compute_dtype.
    w1 = params["conv1_w"].reshape(width, c_in).T                       # (Cin, width)
    w1 = jnp.pad(w1, ((0, kp - c_in), (0, wp - width))).astype(compute_dtype)
    w2 = jnp.transpose(params["conv2_w"], (2, 3, 1, 0))                 # (kh, kw, ci, co)
    w2 = jnp.pad(w2, ((0, 0), (0, 0), (0, wp - width), (0, wp - width)))
    w2k = w2.reshape(3, 3 * wp, wp).astype(compute_dtype)               # K = kw*wp + ci
    w3 = params["conv3_w"].reshape(c_out, width).T                      # (width, Cout)
    w3 = jnp.pad(w3, ((0, wp - width), (0, kp - c_out))).astype(compute_dtype)
    # conv2 bias dropped: a per-channel constant before a batch-stat BatchNorm
    # is exactly cancelled by the mean subtraction (returned tensor unchanged).

    # --- stage 1: conv1 (1x1) + BN1 partial statistics ---
    y1, st1 = conv1x1_stats(x2d, w1, tm, compute_dtype)
    scale1, shift1 = _bn_scale_shift(st1, m, params["bn1_gamma"], params["bn1_beta"], wp)

    # --- stage 2: fused [BN1-apply + ReLU] -> conv2 (3x3, K=3*C) + BN2 stats ---
    y2, st2 = conv3x3_fused(y1, scale1, shift1, w2k, n_img, h, w, m_pad, compute_dtype)
    scale2, shift2 = _bn_scale_shift(st2, m, params["bn2_gamma"], params["bn2_beta"], wp)

    # --- stage 3: fused [BN2-apply + ReLU] -> conv3 (1x1) + BN3 stats ---
    y3, st3 = affine_relu_conv1x1_stats(
        y2, scale2, shift2, w3, tm, rows_valid=(m if m_pad != m else None))
    scale3, shift3 = _bn_scale_shift(st3, m, params["bn3_gamma"], params["bn3_beta"], kp)

    # --- fused [BN3-apply + residual add + ReLU], aliased into the y3 buffer ---
    out2d = bn_add_relu(y3, scale3, shift3, x2d, tm)

    out = out2d[:m, :c_out].reshape(n_img, h, w, c_out)
    return jnp.transpose(out, (0, 3, 1, 2))                             # back to NCHW


# --------------------------- pure-JAX reference ------------------------------ #

def _reference_forward(x_nchw, params):
    x = jnp.transpose(x_nchw, (0, 2, 3, 1)).astype(jnp.float32)

    def conv(hh, w_oihw, padding):
        w_hwio = jnp.transpose(w_oihw, (2, 3, 1, 0))
        return jax.lax.conv_general_dilated(
            hh, w_hwio, (1, 1), padding,
            dimension_numbers=("NHWC", "HWIO", "NHWC"),
            precision=jax.lax.Precision.HIGHEST)

    def bn(hh, gamma, beta):
        mean = hh.mean(axis=(0, 1, 2))
        var = ((hh - mean) ** 2).mean(axis=(0, 1, 2))
        return (hh - mean) * jax.lax.rsqrt(var + EPS) * gamma + beta

    hh = jax.nn.relu(bn(conv(x, params["conv1_w"], "VALID"),
                        params["bn1_gamma"], params["bn1_beta"]))
    hh = conv(hh, params["conv2_w"], "SAME") + params["conv2_b"]
    hh = jax.nn.relu(bn(hh, params["bn2_gamma"], params["bn2_beta"]))
    hh = bn(conv(hh, params["conv3_w"], "VALID"),
            params["bn3_gamma"], params["bn3_beta"])
    out = jax.nn.relu(hh + x)
    return jnp.transpose(out, (0, 3, 1, 2))


# ---------------------------------- main ------------------------------------ #

if __name__ == "__main__":
    key = jax.random.PRNGKey(0)
    k_param, k_x = jax.random.split(key)

    # downsample=None (identity residual) requires in_planes == planes * 4.
    in_planes, planes = 16, 4
    N, H, W = 2, 16, 16

    params, width, out_planes = init_bottleneck_params(k_param, in_planes, planes)
    x = jax.random.normal(k_x, (N, in_planes, H, W), dtype=jnp.float32)

    ref = jax.block_until_ready(_reference_forward(x, params))

    # Fast path: bf16 MXU operands + bf16 intermediates (default).
    fwd_bf16 = jax.jit(bottleneck_forward)
    out = jax.block_until_ready(fwd_bf16(x, params))
    assert out.shape == (N, out_planes, H, W), out.shape
    assert bool(jnp.all(jnp.isfinite(out)))
    err = jnp.abs(out - ref)
    tol = 1e-1 + 5e-2 * jnp.abs(ref)
    assert bool(jnp.all(err <= tol)), f"bf16 path max abs error: {float(jnp.max(err))}"

    # Exactness check: full f32 path.
    fwd_f32 = jax.jit(functools.partial(bottleneck_forward, compute_dtype=jnp.float32))
    out32 = jax.block_until_ready(fwd_f32(x, params))
    max_err32 = float(jnp.max(jnp.abs(out32 - ref)))
    assert max_err32 < 5e-2, f"f32 path max abs error: {max_err32}"

    print("KERNEL_OK")
</pallas_src>

<mosaic_0001>
module attributes {stable_mosaic.version = 11 : i64} {
  func.func @_mm_stats_kernel(%arg0: i32, %arg1: memref<256x128xf32, #tpu.memory_space<vmem>>, %arg2: memref<128x128xbf16, #tpu.memory_space<vmem>>, %arg3: memref<256x128xbf16, #tpu.memory_space<vmem>>, %arg4: memref<1x8x128xf32, #tpu.memory_space<vmem>>) attributes {dimension_semantics = [#tpu.dimension_semantics<parallel>], iteration_bounds = array<i64: 2>, scalar_prefetch = 0 : i64, scratch_operands = 0 : i64, tpu.core_type = #tpu.core_type<tc>, window_params = [{transform_indices = @transform_0, window_bounds = array<i64: 256, 128>}, {pipeline_mode = #tpu.pipeline_mode<synchronous>, transform_indices = @transform_1, window_bounds = array<i64: 128, 128>}, {transform_indices = @transform_2, window_bounds = array<i64: 256, 128>}, {transform_indices = @transform_3, window_bounds = array<i64: 1, 8, 128>}]} {
    %c0 = arith.constant 0 : index
    %c0_0 = arith.constant 0 : index
    %0 = vector.load %arg1[%c0, %c0_0] : memref<256x128xf32, #tpu.memory_space<vmem>>, vector<256x128xf32>
    %1 = arith.truncf %0 : vector<256x128xf32> to vector<256x128xbf16>
    %c0_1 = arith.constant 0 : index
    %c0_2 = arith.constant 0 : index
    %2 = vector.load %arg2[%c0_1, %c0_2] : memref<128x128xbf16, #tpu.memory_space<vmem>>, vector<128x128xbf16>
    %cst = arith.constant dense<0.000000e+00> : vector<256x128xf32>
    %3 = tpu.matmul %1, %2, %cst {dimension_numbers = #tpu.dot_dimension_numbers<[1], [0], [0], [1], [0, 0, 1, 1], [], []>} : vector<256x128xbf16>, vector<128x128xbf16>, vector<256x128xf32> -> vector<256x128xf32>
    %4 = arith.truncf %3 : vector<256x128xf32> to vector<256x128xbf16>
    %c0_3 = arith.constant 0 : index
    %c0_4 = arith.constant 0 : index
    %5 = vector.load %arg3[%c0_3, %c0_4] : memref<256x128xbf16, #tpu.memory_space<vmem>>, vector<256x128xbf16>
    tpu.vector_store %arg3[%c0_3, %c0_4], %4 {strides = array<i32>} : memref<256x128xbf16, #tpu.memory_space<vmem>>, vector<256x128xbf16>,
    %cst_5 = arith.constant dense<0.000000e+00> : vector<128xf32>
    %6 = vector.multi_reduction <add>, %3, %cst_5 [0] : vector<256x128xf32> to vector<128xf32>
    %7 = arith.mulf %3, %3 : vector<256x128xf32>
    %cst_6 = arith.constant dense<0.000000e+00> : vector<128xf32>
    %8 = vector.multi_reduction <add>, %7, %cst_6 [0] : vector<256x128xf32> to vector<128xf32>
    %9 = tpu.iota {dimensions = array<i32: 0>} : vector<8x128xi32>
    %c0_i32 = arith.constant 0 : i32
    %10 = vector.broadcast %c0_i32 : i32 to vector<8x128xi32>
    %11 = arith.cmpi eq, %9, %10 : vector<8x128xi32>
    %12 = vector.shape_cast %6 : vector<128xf32> to vector<1x128xf32>
    %cst_7 = arith.constant 0.000000e+00 : f32
    %13 = vector.shape_cast %12 : vector<1x128xf32> to vector<1x128xf32>
    %14 = vector.broadcast %13 : vector<1x128xf32> to vector<8x128xf32>
    %15 = vector.broadcast %cst_7 : f32 to vector<8x128xf32>
    %16 = arith.select %11, %14, %15 : vector<8x128xi1>, vector<8x128xf32>
    %c1_i32 = arith.constant 1 : i32
    %17 = vector.broadcast %c1_i32 : i32 to vector<8x128xi32>
    %18 = arith.cmpi eq, %9, %17 : vector<8x128xi32>
    %19 = vector.shape_cast %8 : vector<128xf32> to vector<1x128xf32>
    %cst_8 = arith.constant 0.000000e+00 : f32
    %20 = vector.shape_cast %19 : vector<1x128xf32> to vector<1x128xf32>
    %21 = vector.broadcast %20 : vector<1x128xf32> to vector<8x128xf32>
    %22 = vector.broadcast %cst_8 : f32 to vector<8x128xf32>
    %23 = arith.select %18, %21, %22 : vector<8x128xi1>, vector<8x128xf32>
    %24 = arith.addf %16, %23 : vector<8x128xf32>
    %25 = vector.shape_cast %24 : vector<8x128xf32> to vector<1x8x128xf32>
    %c0_9 = arith.constant 0 : index
    %c0_10 = arith.constant 0 : index
    %c0_11 = arith.constant 0 : index
    %26 = vector.load %arg4[%c0_9, %c0_10, %c0_11] : memref<1x8x128xf32, #tpu.memory_space<vmem>>, vector<1x8x128xf32>
    tpu.vector_store %arg4[%c0_9, %c0_10, %c0_11], %25 {strides = array<i32>} : memref<1x8x128xf32, #tpu.memory_space<vmem>>, vector<1x8x128xf32>,
    return
  }
  func.func @transform_0(%arg0: i32) -> (i32, i32) {
    %c0_i32 = arith.constant 0 : i32
    %c0_i32_0 = arith.constant 0 : i32
    return %arg0, %c0_i32 : i32, i32
  }
  func.func @transform_1(%arg0: i32) -> (i32, i32) {
    %c0_i32 = arith.constant 0 : i32
    %c0_i32_0 = arith.constant 0 : i32
    %c0_i32_1 = arith.constant 0 : i32
    return %c0_i32, %c0_i32_0 : i32, i32
  }
  func.func @transform_2(%arg0: i32) -> (i32, i32) {
    %c0_i32 = arith.constant 0 : i32
    %c0_i32_0 = arith.constant 0 : i32
    return %arg0, %c0_i32 : i32, i32
  }
  func.func @transform_3(%arg0: i32) -> (i32, i32, i32) {
    %c0_i32 = arith.constant 0 : i32
    %c0_i32_0 = arith.constant 0 : i32
    %c0_i32_1 = arith.constant 0 : i32
    return %arg0, %c0_i32, %c0_i32_0 : i32, i32, i32
  }
}

module attributes {stable_mosaic.version = 11 : i64} {
  func.func @_conv3x3_img_kernel(%arg0: i32, %arg1: memref<256x128xbf16, #tpu.memory_space<vmem>>, %arg2: memref<1x128xf32, #tpu.memory_space<vmem>>, %arg3: memref<1x128xf32, #tpu.memory_space<vmem>>, %arg4: memref<3x384x128xbf16, #tpu.memory_space<vmem>>, %arg5: memref<256x128xbf16, #tpu.memory_space<vmem>>, %arg6: memref<1x8x128xf32, #tpu.memory_space<vmem>>, %arg7: memref<288x384xbf16, #tpu.memory_space<vmem>>) attributes {dimension_semantics = [#tpu.dimension_semantics<parallel>], iteration_bounds = array<i64: 2>, scalar_prefetch = 0 : i64, scratch_operands = 1 : i64, tpu.core_type = #tpu.core_type<tc>, window_params = [{transform_indices = @transform_0, window_bounds = array<i64: 256, 128>}, {pipeline_mode = #tpu.pipeline_mode<synchronous>, transform_indices = @transform_1, window_bounds = array<i64: 1, 128>}, {pipeline_mode = #tpu.pipeline_mode<synchronous>, transform_indices = @transform_2, window_bounds = array<i64: 1, 128>}, {pipeline_mode = #tpu.pipeline_mode<synchronous>, transform_indices = @transform_3, window_bounds = array<i64: 3, 384, 128>}, {transform_indices = @transform_4, window_bounds = array<i64: 256, 128>}, {transform_indices = @transform_5, window_bounds = array<i64: 1, 8, 128>}]} {
    %c0 = arith.constant 0 : index
    %c0_0 = arith.constant 0 : index
    %0 = vector.load %arg1[%c0, %c0_0] : memref<256x128xbf16, #tpu.memory_space<vmem>>, vector<256x128xbf16>
    %1 = arith.extf %0 : vector<256x128xbf16> to vector<256x128xf32>
    %c0_1 = arith.constant 0 : index
    %c0_2 = arith.constant 0 : index
    %2 = vector.load %arg2[%c0_1, %c0_2] : memref<1x128xf32, #tpu.memory_space<vmem>>, vector<1x128xf32>
    %3 = vector.broadcast %2 : vector<1x128xf32> to vector<256x128xf32>
    %4 = arith.mulf %1, %3 : vector<256x128xf32>
    %c0_3 = arith.constant 0 : index
    %c0_4 = arith.constant 0 : index
    %5 = vector.load %arg3[%c0_3, %c0_4] : memref<1x128xf32, #tpu.memory_space<vmem>>, vector<1x128xf32>
    %6 = vector.broadcast %5 : vector<1x128xf32> to vector<256x128xf32>
    %7 = arith.addf %4, %6 : vector<256x128xf32>
    %cst = arith.constant 0.000000e+00 : f32
    %8 = vector.broadcast %cst : f32 to vector<256x128xf32>
    %9 = arith.maximumf %7, %8 : vector<256x128xf32>
    %10 = tpu.iota {dimensions = array<i32: 0>} : vector<256x128xi32>
    %c16_i32 = arith.constant 16 : i32
    %c0_i32 = arith.constant 0 : i32
    %11 = arith.cmpi eq, %c16_i32, %c0_i32 : i32
    %c1_i32 = arith.constant 1 : i32
    %12 = arith.select %11, %c1_i32, %c16_i32 : i32
    %13 = vector.broadcast %12 : i32 to vector<256x128xi32>
    %14 = arith.remsi %10, %13 : vector<256x128xi32>
    %c0_i32_5 = arith.constant 0 : i32
    %15 = vector.broadcast %c0_i32_5 : i32 to vector<256x128xi32>
    %16 = arith.cmpi ne, %14, %15 : vector<256x128xi32>
    %c0_i32_6 = arith.constant 0 : i32
    %17 = vector.broadcast %c0_i32_6 : i32 to vector<256x128xi32>
    %18 = arith.cmpi slt, %14, %17 : vector<256x128xi32>
    %c0_i32_7 = arith.constant 0 : i32
    %19 = arith.cmpi slt, %12, %c0_i32_7 : i32
    %20 = vector.broadcast %19 : i1 to vector<256x128xi1>
    %21 = vector.broadcast %20 : vector<256x128xi1> to vector<256x128xi1>
    %22 = arith.xori %18, %21 : vector<256x128xi1>
    %23 = arith.andi %22, %16 : vector<256x128xi1>
    %24 = vector.broadcast %12 : i32 to vector<256x128xi32>
    %25 = arith.addi %14, %24 : vector<256x128xi32>
    %26 = arith.select %23, %25, %14 : vector<256x128xi1>, vector<256x128xi32>
    %cst_8 = arith.constant 0.000000e+00 : f32
    %27 = vector.broadcast %cst_8 : f32 to vector<1x128xf32>
    %c0_i32_9 = arith.constant 0 : i32
    %28 = vector.broadcast %c0_i32_9 : i32 to vector<256x128xi32>
    %29 = arith.cmpi eq, %26, %28 : vector<256x128xi32>
    %30 = vector.extract_strided_slice %9 {offsets = [0, 0], sizes = [255, 128], strides = [1, 1]} : vector<256x128xf32> to vector<255x128xf32>
    %31 = tpu.concatenate %27, %30 in 0 : vector<1x128xf32>, vector<255x128xf32> -> vector<256x128xf32>
    %cst_10 = arith.constant 0.000000e+00 : f32
    %32 = vector.broadcast %cst_10 : f32 to vector<256x128xf32>
    %33 = arith.select %29, %32, %31 : vector<256x128xi1>, vector<256x128xf32>
    %c15_i32 = arith.constant 15 : i32
    %34 = vector.broadcast %c15_i32 : i32 to vector<256x128xi32>
    %35 = arith.cmpi eq, %26, %34 : vector<256x128xi32>
    %36 = vector.extract_strided_slice %9 {offsets = [1, 0], sizes = [255, 128], strides = [1, 1]} : vector<256x128xf32> to vector<255x128xf32>
    %37 = tpu.concatenate %36, %27 in 0 : vector<255x128xf32>, vector<1x128xf32> -> vector<256x128xf32>
    %cst_11 = arith.constant 0.000000e+00 : f32
    %38 = vector.broadcast %cst_11 : f32 to vector<256x128xf32>
    %39 = arith.select %35, %38, %37 : vector<256x128xi1>, vector<256x128xf32>
    %cst_12 = arith.constant 0.000000e+00 : bf16
    %40 = vector.broadcast %cst_12 : bf16 to vector<16x384xbf16>
    %c0_13 = arith.constant 0 : index
    %c0_14 = arith.constant 0 : index
    %41 = vector.load %arg7[%c0_13, %c0_14] : memref<288x384xbf16, #tpu.memory_space<vmem>>, vector<16x384xbf16>
    tpu.vector_store %arg7[%c0_13, %c0_14], %40 {strides = array<i32>} : memref<288x384xbf16, #tpu.memory_space<vmem>>, vector<16x384xbf16>,
    %c272 = arith.constant 272 : index
    %c0_15 = arith.constant 0 : index
    %42 = vector.load %arg7[%c272, %c0_15] : memref<288x384xbf16, #tpu.memory_space<vmem>>, vector<16x384xbf16>
    tpu.vector_store %arg7[%c272, %c0_15], %40 {strides = array<i32>} : memref<288x384xbf16, #tpu.memory_space<vmem>>, vector<16x384xbf16>,
    %43 = arith.truncf %33 : vector<256x128xf32> to vector<256x128xbf16>
    %c16 = arith.constant 16 : index
    %c0_16 = arith.constant 0 : index
    %44 = vector.load %arg7[%c16, %c0_16] : memref<288x384xbf16, #tpu.memory_space<vmem>>, vector<256x128xbf16>
    tpu.vector_store %arg7[%c16, %c0_16], %43 {strides = array<i32>} : memref<288x384xbf16, #tpu.memory_space<vmem>>, vector<256x128xbf16>,
    %45 = arith.truncf %9 : vector<256x128xf32> to vector<256x128xbf16>
    %c16_17 = arith.constant 16 : index
    %c128 = arith.constant 128 : index
    %46 = vector.load %arg7[%c16_17, %c128] : memref<288x384xbf16, #tpu.memory_space<vmem>>, vector<256x128xbf16>
    tpu.vector_store %arg7[%c16_17, %c128], %45 {strides = array<i32>} : memref<288x384xbf16, #tpu.memory_space<vmem>>, vector<256x128xbf16>,
    %47 = arith.truncf %39 : vector<256x128xf32> to vector<256x128xbf16>
    %c16_18 = arith.constant 16 : index
    %c256 = arith.constant 256 : index
    %48 = vector.load %arg7[%c16_18, %c256] : memref<288x384xbf16, #tpu.memory_space<vmem>>, vector<256x128xbf16>
    tpu.vector_store %arg7[%c16_18, %c256], %47 {strides = array<i32>} : memref<288x384xbf16, #tpu.memory_space<vmem>>, vector<256x128xbf16>,
    %c0_19 = arith.constant 0 : index
    %c0_20 = arith.constant 0 : index
    %49 = vector.load %arg7[%c0_19, %c0_20] : memref<288x384xbf16, #tpu.memory_space<vmem>>, vector<256x384xbf16>
    %c0_21 = arith.constant 0 : index
    %c0_22 = arith.constant 0 : index
    %c0_23 = arith.constant 0 : index
    %50 = vector.load %arg4[%c0_21, %c0_22, %c0_23] : memref<3x384x128xbf16, #tpu.memory_space<vmem>>, vector<1x384x128xbf16>
    %51 = vector.shape_cast %50 : vector<1x384x128xbf16> to vector<384x128xbf16>
    %cst_24 = arith.constant dense<0.000000e+00> : vector<256x128xf32>
    %52 = tpu.matmul %49, %51, %cst_24 {dimension_numbers = #tpu.dot_dimension_numbers<[1], [0], [0], [1], [0, 0, 1, 1], [], []>} : vector<256x384xbf16>, vector<384x128xbf16>, vector<256x128xf32> -> vector<256x128xf32>
    %c16_25 = arith.constant 16 : index
    %c0_26 = arith.constant 0 : index
    %53 = vector.load %arg7[%c16_25, %c0_26] : memref<288x384xbf16, #tpu.memory_space<vmem>>, vector<256x384xbf16>
    %c1 = arith.constant 1 : index
    %c0_27 = arith.constant 0 : index
    %c0_28 = arith.constant 0 : index
    %54 = vector.load %arg4[%c1, %c0_27, %c0_28] : memref<3x384x128xbf16, #tpu.memory_space<vmem>>, vector<1x384x128xbf16>
    %55 = vector.shape_cast %54 : vector<1x384x128xbf16> to vector<384x128xbf16>
    %cst_29 = arith.constant dense<0.000000e+00> : vector<256x128xf32>
    %56 = tpu.matmul %53, %55, %cst_29 {dimension_numbers = #tpu.dot_dimension_numbers<[1], [0], [0], [1], [0, 0, 1, 1], [], []>} : vector<256x384xbf16>, vector<384x128xbf16>, vector<256x128xf32> -> vector<256x128xf32>
    %57 = arith.addf %52, %56 : vector<256x128xf32>
    %c32 = arith.constant 32 : index
    %c0_30 = arith.constant 0 : index
    %58 = vector.load %arg7[%c32, %c0_30] : memref<288x384xbf16, #tpu.memory_space<vmem>>, vector<256x384xbf16>
    %c2 = arith.constant 2 : index
    %c0_31 = arith.constant 0 : index
    %c0_32 = arith.constant 0 : index
    %59 = vector.load %arg4[%c2, %c0_31, %c0_32] : memref<3x384x128xbf16, #tpu.memory_space<vmem>>, vector<1x384x128xbf16>
    %60 = vector.shape_cast %59 : vector<1x384x128xbf16> to vector<384x128xbf16>
    %cst_33 = arith.constant dense<0.000000e+00> : vector<256x128xf32>
    %61 = tpu.matmul %58, %60, %cst_33 {dimension_numbers = #tpu.dot_dimension_numbers<[1], [0], [0], [1], [0, 0, 1, 1], [], []>} : vector<256x384xbf16>, vector<384x128xbf16>, vector<256x128xf32> -> vector<256x128xf32>
    %62 = arith.addf %57, %61 : vector<256x128xf32>
    %63 = arith.truncf %62 : vector<256x128xf32> to vector<256x128xbf16>
    %c0_34 = arith.constant 0 : index
    %c0_35 = arith.constant 0 : index
    %64 = vector.load %arg5[%c0_34, %c0_35] : memref<256x128xbf16, #tpu.memory_space<vmem>>, vector<256x128xbf16>
    tpu.vector_store %arg5[%c0_34, %c0_35], %63 {strides = array<i32>} : memref<256x128xbf16, #tpu.memory_space<vmem>>, vector<256x128xbf16>,
    %cst_36 = arith.constant dense<0.000000e+00> : vector<128xf32>
    %65 = vector.multi_reduction <add>, %62, %cst_36 [0] : vector<256x128xf32> to vector<128xf32>
    %66 = arith.mulf %62, %62 : vector<256x128xf32>
    %cst_37 = arith.constant dense<0.000000e+00> : vector<128xf32>
    %67 = vector.multi_reduction <add>, %66, %cst_37 [0] : vector<256x128xf32> to vector<128xf32>
    %68 = tpu.iota {dimensions = array<i32: 0>} : vector<8x128xi32>
    %c0_i32_38 = arith.constant 0 : i32
    %69 = vector.broadcast %c0_i32_38 : i32 to vector<8x128xi32>
    %70 = arith.cmpi eq, %68, %69 : vector<8x128xi32>
    %71 = vector.shape_cast %65 : vector<128xf32> to vector<1x128xf32>
    %cst_39 = arith.constant 0.000000e+00 : f32
    %72 = vector.shape_cast %71 : vector<1x128xf32> to vector<1x128xf32>
    %73 = vector.broadcast %72 : vector<1x128xf32> to vector<8x128xf32>
    %74 = vector.broadcast %cst_39 : f32 to vector<8x128xf32>
    %75 = arith.select %70, %73, %74 : vector<8x128xi1>, vector<8x128xf32>
    %c1_i32_40 = arith.constant 1 : i32
    %76 = vector.broadcast %c1_i32_40 : i32 to vector<8x128xi32>
    %77 = arith.cmpi eq, %68, %76 : vector<8x128xi32>
    %78 = vector.shape_cast %67 : vector<128xf32> to vector<1x128xf32>
    %cst_41 = arith.constant 0.000000e+00 : f32
    %79 = vector.shape_cast %78 : vector<1x128xf32> to vector<1x128xf32>
    %80 = vector.broadcast %79 : vector<1x128xf32> to vector<8x128xf32>
    %81 = vector.broadcast %cst_41 : f32 to vector<8x128xf32>
    %82 = arith.select %77, %80, %81 : vector<8x128xi1>, vector<8x128xf32>
    %83 = arith.addf %75, %82 : vector<8x128xf32>
    %84 = vector.shape_cast %83 : vector<8x128xf32> to vector<1x8x128xf32>
    %c0_42 = arith.constant 0 : index
    %c0_43 = arith.constant 0 : index
    %c0_44 = arith.constant 0 : index
    %85 = vector.load %arg6[%c0_42, %c0_43, %c0_44] : memref<1x8x128xf32, #tpu.memory_space<vmem>>, vector<1x8x128xf32>
    tpu.vector_store %arg6[%c0_42, %c0_43, %c0_44], %84 {strides = array<i32>} : memref<1x8x128xf32, #tpu.memory_space<vmem>>, vector<1x8x128xf32>,
    return
  }
  func.func @transform_0(%arg0: i32) -> (i32, i32) {
    %c0_i32 = arith.constant 0 : i32
    %c0_i32_0 = arith.constant 0 : i32
    return %arg0, %c0_i32 : i32, i32
  }
  func.func @transform_1(%arg0: i32) -> (i32, i32) {
    %c0_i32 = arith.constant 0 : i32
    %c0_i32_0 = arith.constant 0 : i32
    %c0_i32_1 = arith.constant 0 : i32
    return %c0_i32, %c0_i32_0 : i32, i32
  }
  func.func @transform_2(%arg0: i32) -> (i32, i32) {
    %c0_i32 = arith.constant 0 : i32
    %c0_i32_0 = arith.constant 0 : i32
    %c0_i32_1 = arith.constant 0 : i32
    return %c0_i32, %c0_i32_0 : i32, i32
  }
  func.func @transform_3(%arg0: i32) -> (i32, i32, i32) {
    %c0_i32 = arith.constant 0 : i32
    %c0_i32_0 = arith.constant 0 : i32
    %c0_i32_1 = arith.constant 0 : i32
    %c0_i32_2 = arith.constant 0 : i32
    return %c0_i32, %c0_i32_0, %c0_i32_1 : i32, i32, i32
  }
  func.func @transform_4(%arg0: i32) -> (i32, i32) {
    %c0_i32 = arith.constant 0 : i32
    %c0_i32_0 = arith.constant 0 : i32
    return %arg0, %c0_i32 : i32, i32
  }
  func.func @transform_5(%arg0: i32) -> (i32, i32, i32) {
    %c0_i32 = arith.constant 0 : i32
    %c0_i32_0 = arith.constant 0 : i32
    %c0_i32_1 = arith.constant 0 : i32
    return %arg0, %c0_i32, %c0_i32_0 : i32, i32, i32
  }
}

module attributes {stable_mosaic.version = 11 : i64} {
  func.func @_bn_add_relu_kernel(%arg0: i32, %arg1: memref<256x128xf32, #tpu.memory_space<vmem>>, %arg2: memref<1x128xf32, #tpu.memory_space<vmem>>, %arg3: memref<1x128xf32, #tpu.memory_space<vmem>>, %arg4: memref<256x128xf32, #tpu.memory_space<vmem>>, %arg5: memref<256x128xf32, #tpu.memory_space<vmem>>) attributes {dimension_semantics = [#tpu.dimension_semantics<parallel>], iteration_bounds = array<i64: 2>, scalar_prefetch = 0 : i64, scratch_operands = 0 : i64, tpu.core_type = #tpu.core_type<tc>, window_params = [{transform_indices = @transform_0, window_bounds = array<i64: 256, 128>}, {pipeline_mode = #tpu.pipeline_mode<synchronous>, transform_indices = @transform_1, window_bounds = array<i64: 1, 128>}, {pipeline_mode = #tpu.pipeline_mode<synchronous>, transform_indices = @transform_2, window_bounds = array<i64: 1, 128>}, {transform_indices = @transform_3, window_bounds = array<i64: 256, 128>}, {transform_indices = @transform_4, window_bounds = array<i64: 256, 128>}]} {
    %c0 = arith.constant 0 : index
    %c0_0 = arith.constant 0 : index
    %0 = vector.load %arg1[%c0, %c0_0] : memref<256x128xf32, #tpu.memory_space<vmem>>, vector<256x128xf32>
    %c0_1 = arith.constant 0 : index
    %c0_2 = arith.constant 0 : index
    %1 = vector.load %arg2[%c0_1, %c0_2] : memref<1x128xf32, #tpu.memory_space<vmem>>, vector<1x128xf32>
    %2 = vector.broadcast %1 : vector<1x128xf32> to vector<256x128xf32>
    %3 = arith.mulf %0, %2 : vector<256x128xf32>
    %c0_3 = arith.constant 0 : index
    %c0_4 = arith.constant 0 : index
    %4 = vector.load %arg3[%c0_3, %c0_4] : memref<1x128xf32, #tpu.memory_space<vmem>>, vector<1x128xf32>
    %5 = vector.broadcast %4 : vector<1x128xf32> to vector<256x128xf32>
    %6 = arith.addf %3, %5 : vector<256x128xf32>
    %c0_5 = arith.constant 0 : index
    %c0_6 = arith.constant 0 : index
    %7 = vector.load %arg4[%c0_5, %c0_6] : memref<256x128xf32, #tpu.memory_space<vmem>>, vector<256x128xf32>
    %8 = arith.addf %6, %7 : vector<256x128xf32>
    %cst = arith.constant 0.000000e+00 : f32
    %9 = vector.broadcast %cst : f32 to vector<256x128xf32>
    %10 = arith.maximumf %8, %9 : vector<256x128xf32>
    %c0_7 = arith.constant 0 : index
    %c0_8 = arith.constant 0 : index
    %11 = vector.load %arg5[%c0_7, %c0_8] : memref<256x128xf32, #tpu.memory_space<vmem>>, vector<256x128xf32>
    tpu.vector_store %arg5[%c0_7, %c0_8], %10 {strides = array<i32>} : memref<256x128xf32, #tpu.memory_space<vmem>>, vector<256x128xf32>,
    return
  }
  func.func @transform_0(%arg0: i32) -> (i32, i32) {
    %c0_i32 = arith.constant 0 : i32
    %c0_i32_0 = arith.constant 0 : i32
    return %arg0, %c0_i32 : i32, i32
  }
  func.func @transform_1(%arg0: i32) -> (i32, i32) {
    %c0_i32 = arith.constant 0 : i32
    %c0_i32_0 = arith.constant 0 : i32
    %c0_i32_1 = arith.constant 0 : i32
    return %c0_i32, %c0_i32_0 : i32, i32
  }
  func.func @transform_2(%arg0: i32) -> (i32, i32) {
    %c0_i32 = arith.constant 0 : i32
    %c0_i32_0 = arith.constant 0 : i32
    %c0_i32_1 = arith.constant 0 : i32
    return %c0_i32, %c0_i32_0 : i32, i32
  }
  func.func @transform_3(%arg0: i32) -> (i32, i32) {
    %c0_i32 = arith.constant 0 : i32
    %c0_i32_0 = arith.constant 0 : i32
    return %arg0, %c0_i32 : i32, i32
  }
  func.func @transform_4(%arg0: i32) -> (i32, i32) {
    %c0_i32 = arith.constant 0 : i32
    %c0_i32_0 = arith.constant 0 : i32
    return %arg0, %c0_i32 : i32, i32
  }
}

module attributes {stable_mosaic.version = 11 : i64} {
  func.func @_affine_relu_mm_stats_kernel(%arg0: i32, %arg1: memref<256x128xbf16, #tpu.memory_space<vmem>>, %arg2: memref<1x128xf32, #tpu.memory_space<vmem>>, %arg3: memref<1x128xf32, #tpu.memory_space<vmem>>, %arg4: memref<128x128xbf16, #tpu.memory_space<vmem>>, %arg5: memref<256x128xf32, #tpu.memory_space<vmem>>, %arg6: memref<1x8x128xf32, #tpu.memory_space<vmem>>) attributes {dimension_semantics = [#tpu.dimension_semantics<parallel>], iteration_bounds = array<i64: 2>, scalar_prefetch = 0 : i64, scratch_operands = 0 : i64, tpu.core_type = #tpu.core_type<tc>, window_params = [{transform_indices = @transform_0, window_bounds = array<i64: 256, 128>}, {pipeline_mode = #tpu.pipeline_mode<synchronous>, transform_indices = @transform_1, window_bounds = array<i64: 1, 128>}, {pipeline_mode = #tpu.pipeline_mode<synchronous>, transform_indices = @transform_2, window_bounds = array<i64: 1, 128>}, {pipeline_mode = #tpu.pipeline_mode<synchronous>, transform_indices = @transform_3, window_bounds = array<i64: 128, 128>}, {transform_indices = @transform_4, window_bounds = array<i64: 256, 128>}, {transform_indices = @transform_5, window_bounds = array<i64: 1, 8, 128>}]} {
    %c0 = arith.constant 0 : index
    %c0_0 = arith.constant 0 : index
    %0 = vector.load %arg1[%c0, %c0_0] : memref<256x128xbf16, #tpu.memory_space<vmem>>, vector<256x128xbf16>
    %1 = arith.extf %0 : vector<256x128xbf16> to vector<256x128xf32>
    %c0_1 = arith.constant 0 : index
    %c0_2 = arith.constant 0 : index
    %2 = vector.load %arg2[%c0_1, %c0_2] : memref<1x128xf32, #tpu.memory_space<vmem>>, vector<1x128xf32>
    %3 = vector.broadcast %2 : vector<1x128xf32> to vector<256x128xf32>
    %4 = arith.mulf %1, %3 : vector<256x128xf32>
    %c0_3 = arith.constant 0 : index
    %c0_4 = arith.constant 0 : index
    %5 = vector.load %arg3[%c0_3, %c0_4] : memref<1x128xf32, #tpu.memory_space<vmem>>, vector<1x128xf32>
    %6 = vector.broadcast %5 : vector<1x128xf32> to vector<256x128xf32>
    %7 = arith.addf %4, %6 : vector<256x128xf32>
    %cst = arith.constant 0.000000e+00 : f32
    %8 = vector.broadcast %cst : f32 to vector<256x128xf32>
    %9 = arith.maximumf %7, %8 : vector<256x128xf32>
    %10 = arith.truncf %9 : vector<256x128xf32> to vector<256x128xbf16>
    %c0_5 = arith.constant 0 : index
    %c0_6 = arith.constant 0 : index
    %11 = vector.load %arg4[%c0_5, %c0_6] : memref<128x128xbf16, #tpu.memory_space<vmem>>, vector<128x128xbf16>
    %cst_7 = arith.constant dense<0.000000e+00> : vector<256x128xf32>
    %12 = tpu.matmul %10, %11, %cst_7 {dimension_numbers = #tpu.dot_dimension_numbers<[1], [0], [0], [1], [0, 0, 1, 1], [], []>} : vector<256x128xbf16>, vector<128x128xbf16>, vector<256x128xf32> -> vector<256x128xf32>
    %c0_8 = arith.constant 0 : index
    %c0_9 = arith.constant 0 : index
    %13 = vector.load %arg5[%c0_8, %c0_9] : memref<256x128xf32, #tpu.memory_space<vmem>>, vector<256x128xf32>
    tpu.vector_store %arg5[%c0_8, %c0_9], %12 {strides = array<i32>} : memref<256x128xf32, #tpu.memory_space<vmem>>, vector<256x128xf32>,
    %cst_10 = arith.constant dense<0.000000e+00> : vector<128xf32>
    %14 = vector.multi_reduction <add>, %12, %cst_10 [0] : vector<256x128xf32> to vector<128xf32>
    %15 = arith.mulf %12, %12 : vector<256x128xf32>
    %cst_11 = arith.constant dense<0.000000e+00> : vector<128xf32>
    %16 = vector.multi_reduction <add>, %15, %cst_11 [0] : vector<256x128xf32> to vector<128xf32>
    %17 = tpu.iota {dimensions = array<i32: 0>} : vector<8x128xi32>
    %c0_i32 = arith.constant 0 : i32
    %18 = vector.broadcast %c0_i32 : i32 to vector<8x128xi32>
    %19 = arith.cmpi eq, %17, %18 : vector<8x128xi32>
    %20 = vector.shape_cast %14 : vector<128xf32> to vector<1x128xf32>
    %cst_12 = arith.constant 0.000000e+00 : f32
    %21 = vector.shape_cast %20 : vector<1x128xf32> to vector<1x128xf32>
    %22 = vector.broadcast %21 : vector<1x128xf32> to vector<8x128xf32>
    %23 = vector.broadcast %cst_12 : f32 to vector<8x128xf32>
    %24 = arith.select %19, %22, %23 : vector<8x128xi1>, vector<8x128xf32>
    %c1_i32 = arith.constant 1 : i32
    %25 = vector.broadcast %c1_i32 : i32 to vector<8x128xi32>
    %26 = arith.cmpi eq, %17, %25 : vector<8x128xi32>
    %27 = vector.shape_cast %16 : vector<128xf32> to vector<1x128xf32>
    %cst_13 = arith.constant 0.000000e+00 : f32
    %28 = vector.shape_cast %27 : vector<1x128xf32> to vector<1x128xf32>
    %29 = vector.broadcast %28 : vector<1x128xf32> to vector<8x128xf32>
    %30 = vector.broadcast %cst_13 : f32 to vector<8x128xf32>
    %31 = arith.select %26, %29, %30 : vector<8x128xi1>, vector<8x128xf32>
    %32 = arith.addf %24, %31 : vector<8x128xf32>
    %33 = vector.shape_cast %32 : vector<8x128xf32> to vector<1x8x128xf32>
    %c0_14 = arith.constant 0 : index
    %c0_15 = arith.constant 0 : index
    %c0_16 = arith.constant 0 : index
    %34 = vector.load %arg6[%c0_14, %c0_15, %c0_16] : memref<1x8x128xf32, #tpu.memory_space<vmem>>, vector<1x8x128xf32>
    tpu.vector_store %arg6[%c0_14, %c0_15, %c0_16], %33 {strides = array<i32>} : memref<1x8x128xf32, #tpu.memory_space<vmem>>, vector<1x8x128xf32>,
    return
  }
  func.func @transform_0(%arg0: i32) -> (i32, i32) {
    %c0_i32 = arith.constant 0 : i32
    %c0_i32_0 = arith.constant 0 : i32
    return %arg0, %c0_i32 : i32, i32
  }
  func.func @transform_1(%arg0: i32) -> (i32, i32) {
    %c0_i32 = arith.constant 0 : i32
    %c0_i32_0 = arith.constant 0 : i32
    %c0_i32_1 = arith.constant 0 : i32
    return %c0_i32, %c0_i32_0 : i32, i32
  }
  func.func @transform_2(%arg0: i32) -> (i32, i32) {
    %c0_i32 = arith.constant 0 : i32
    %c0_i32_0 = arith.constant 0 : i32
    %c0_i32_1 = arith.constant 0 : i32
    return %c0_i32, %c0_i32_0 : i32, i32
  }
  func.func @transform_3(%arg0: i32) -> (i32, i32) {
    %c0_i32 = arith.constant 0 : i32
    %c0_i32_0 = arith.constant 0 : i32
    %c0_i32_1 = arith.constant 0 : i32
    return %c0_i32, %c0_i32_0 : i32, i32
  }
  func.func @transform_4(%arg0: i32) -> (i32, i32) {
    %c0_i32 = arith.constant 0 : i32
    %c0_i32_0 = arith.constant 0 : i32
    return %arg0, %c0_i32 : i32, i32
  }
  func.func @transform_5(%arg0: i32) -> (i32, i32, i32) {
    %c0_i32 = arith.constant 0 : i32
    %c0_i32_0 = arith.constant 0 : i32
    %c0_i32_1 = arith.constant 0 : i32
    return %arg0, %c0_i32, %c0_i32_0 : i32, i32, i32
  }
}

</mosaic_0001>

<llo_original>
// kernel: bottleneck_forward.7
$region0: #{bottleneck_forward.7}
  #allocation0 [shape = 'u32[]', space=smem, size = 0x4, offset = 0x4, fixed_abs, tag = 'smem constant byte address 0x4 - core index']
  #allocation1 [shape = 'u32[144,128]{1,0:T(1,128)}', space=vmem, size = 0x12000, scoped, tag = 'internal scratch']
  %s0 = inlined_call_operand.vmem [shape: f32[512,128], index: 0, kind: input, shape index: {}, may-alias: {0,4}]
  %s1 = inlined_call_operand.vmem [shape: f32[1,128], index: 1, kind: input, shape index: {}]
  %s2 = inlined_call_operand.vmem [shape: f32[1,128], index: 2, kind: input, shape index: {}]
  %s3 = inlined_call_operand.vmem [shape: f32[512,128], index: 3, kind: input, shape index: {}]
  %s4 = inlined_call_operand.vmem [shape: f32[512,128], index: 4, kind: output, shape index: {}, may-alias: {0,4}]
  %s5 = sld [smem:[#allocation0]]
  $region49: #{bottleneck_forward.7} parent=0
    _
  %s7 = ssub.s32 1, %s5
  %s8 = scalar_select 0, %s7, %s5
  loop: start=0, step=1, limit=4
  $region2: #{bottleneck_forward.7} parent=0 // loop_pre_header
    _
  $region3: #{bottleneck_forward.7} parent=0 // loop_header
    %s10 = sphi 0, %s14
    %p11 = scmp.ge.s32.totalorder %s10, 4
    %s20 = sphi 0, %s22
    %s23 = sphi 0, %s20
    %s24 = sphi 0, %s23
    %s40 = sphi 0, %s24
    %s44 = sphi 0, %s44
    %s46 = sphi 0, %s44
    %s47 = sphi 0, %s46
    %s61 = sphi 0, %s47
    %s65 = sphi 0, %s65
    %s67 = sphi 0, %s65
    %s68 = sphi 0, %s67
    %s82 = sphi 0, %s68
    %s88 = sphi 0, %s90
    %s91 = sphi 0, %s88
    %s92 = sphi 0, %s91
    %s108 = sphi 0, %s92
    %s114 = sphi 0, %s116
    %s117 = sphi 0, %s114
    %s118 = sphi 0, %s117
    %s134 = sphi 0, %s118
  $region4: #{bottleneck_forward.7} parent=0 // loop_header_branch
    %13 = sbr.rel (%p11) target = $region8
  $region5: #{bottleneck_forward.7} parent=0 // loop_body
    %s15 = ssub.s32 %s10, 1
    %s16 = ssub.s32 %s10, 2
    %s17 = sadd.s32 %s10, 1
    %s18 = ssub.s32 %s10, %s17
    %p19 = scmp.eq.s32.totalorder %s18, 0
    %s21 = sadd.s32 %s20, 1
    %s22 = scalar_select %p19, %s20, %s21
    %p25 = pneg %p19
    %p26 = scmp.eq.s32.totalorder %s10, 1
    %p27 = por %p25, %p26
    %p28 = scmp.ne.s32.totalorder %s20, %s23
    %p29 = scmp.eq.s32.totalorder %s10, 0
    %p30 = por %p28, %p29
    %p31 = scmp.ne.s32.totalorder %s20, %s23
    %p32 = scmp.eq.s32.totalorder %s15, 1
    %p33 = por %p31, %p32
    %p34 = scmp.ne.s32.totalorder %s23, %s24
    %p35 = scmp.eq.s32.totalorder %s15, 0
    %p36 = por %p34, %p35
    %p37 = scmp.ne.s32.totalorder %s23, %s24
    %p38 = scmp.eq.s32.totalorder %s16, 1
    %p39 = por %p37, %p38
    %p41 = scmp.ne.s32.totalorder %s24, %s40
    %p42 = scmp.eq.s32.totalorder %s16, 0
    %p43 = por %p41, %p42
    %s45 = sadd.s32 %s44, 1
    %p48 = scmp.eq.s32.totalorder %s10, 1
    %p49 = scmp.ne.s32.totalorder %s44, %s46
    %p50 = scmp.eq.s32.totalorder %s10, 0
    %p51 = por %p49, %p50
    %p52 = scmp.ne.s32.totalorder %s44, %s46
    %p53 = scmp.eq.s32.totalorder %s15, 1
    %p54 = por %p52, %p53
    %p55 = scmp.ne.s32.totalorder %s46, %s47
    %p56 = scmp.eq.s32.totalorder %s15, 0
    %p57 = por %p55, %p56
    %p58 = scmp.ne.s32.totalorder %s46, %s47
    %p59 = scmp.eq.s32.totalorder %s16, 1
    %p60 = por %p58, %p59
    %p62 = scmp.ne.s32.totalorder %s47, %s61
    %p63 = scmp.eq.s32.totalorder %s16, 0
    %p64 = por %p62, %p63
    %s66 = sadd.s32 %s65, 1
    %p69 = scmp.eq.s32.totalorder %s10, 1
    %p70 = scmp.ne.s32.totalorder %s65, %s67
    %p71 = scmp.eq.s32.totalorder %s10, 0
    %p72 = por %p70, %p71
    %p73 = scmp.ne.s32.totalorder %s65, %s67
    %p74 = scmp.eq.s32.totalorder %s15, 1
    %p75 = por %p73, %p74
    %p76 = scmp.ne.s32.totalorder %s67, %s68
    %p77 = scmp.eq.s32.totalorder %s15, 0
    %p78 = por %p76, %p77
    %p79 = scmp.ne.s32.totalorder %s67, %s68
    %p80 = scmp.eq.s32.totalorder %s16, 1
    %p81 = por %p79, %p80
    %p83 = scmp.ne.s32.totalorder %s68, %s82
    %p84 = scmp.eq.s32.totalorder %s16, 0
    %p85 = por %p83, %p84
    %s86 = ssub.s32 %s10, %s17
    %p87 = scmp.eq.s32.totalorder %s86, 0
    %s89 = sadd.s32 %s88, 1
    %s90 = scalar_select %p87, %s88, %s89
    %p93 = pneg %p87
    %p94 = scmp.eq.s32.totalorder %s10, 1
    %p95 = por %p93, %p94
    %p96 = scmp.ne.s32.totalorder %s88, %s91
    %p97 = scmp.eq.s32.totalorder %s10, 0
    %p98 = por %p96, %p97
    %p99 = scmp.ne.s32.totalorder %s88, %s91
    %p100 = scmp.eq.s32.totalorder %s15, 1
    %p101 = por %p99, %p100
    %p102 = scmp.ne.s32.totalorder %s91, %s92
    %p103 = scmp.eq.s32.totalorder %s15, 0
    %p104 = por %p102, %p103
    %p105 = scmp.ne.s32.totalorder %s91, %s92
    %p106 = scmp.eq.s32.totalorder %s16, 1
    %p107 = por %p105, %p106
    %p109 = scmp.ne.s32.totalorder %s92, %s108
    %p110 = scmp.eq.s32.totalorder %s16, 0
    %p111 = por %p109, %p110
    %s112 = ssub.s32 %s10, %s17
    %p113 = scmp.eq.s32.totalorder %s112, 0
    %s115 = sadd.s32 %s114, 1
    %s116 = scalar_select %p113, %s114, %s115
    %p119 = pneg %p113
    %p120 = scmp.eq.s32.totalorder %s10, 1
    %p121 = por %p119, %p120
    %p122 = scmp.ne.s32.totalorder %s114, %s117
    %p123 = scmp.eq.s32.totalorder %s10, 0
    %p124 = por %p122, %p123
    %p125 = scmp.ne.s32.totalorder %s114, %s117
    %p126 = scmp.eq.s32.totalorder %s15, 1
    %p127 = por %p125, %p126
    %p128 = scmp.ne.s32.totalorder %s117, %s118
    %p129 = scmp.eq.s32.totalorder %s15, 0
    %p130 = por %p128, %p129
    %p131 = scmp.ne.s32.totalorder %s117, %s118
    %p132 = scmp.eq.s32.totalorder %s16, 1
    %p133 = por %p131, %p132
    %p135 = scmp.ne.s32.totalorder %s118, %s134
    %p136 = scmp.eq.s32.totalorder %s16, 0
    %p137 = por %p135, %p136
    %p138 = scmp.le.s32.totalorder 1, %s10
    %p139 = scmp.lt.s32.totalorder %s10, 3
    %p140 = pnand %p138, %p139
    %p141 = pneg %p140
    // Predicated region
    $region9: #{bottleneck_forward.7} parent=5 // pred_check
      _
    $region10: #{bottleneck_forward.7} parent=5 // pred_check_branch
      %143 = sbr.rel (%p140) target = $region12
    $region11: #{bottleneck_forward.7} parent=5 // pred_region
      %s144 = ssub.s32 %s10, 1
      // Predicated region
      $region13: #{bottleneck_forward.7} parent=11 // pred_check
        %p145 = pneg %p57
      $region14: #{bottleneck_forward.7} parent=11 // pred_check_branch
        %147 = sbr.rel (%p145) target = $region16
      $region15: #{bottleneck_forward.7} parent=11 // pred_region
        _
      $region16: #{bottleneck_forward.7} parent=11 // pred_fallthru
        _
      // Predicated region
      $region17: #{bottleneck_forward.7} parent=11 // pred_check
        %p148 = pneg %p78
      $region18: #{bottleneck_forward.7} parent=11 // pred_check_branch
        %150 = sbr.rel (%p148) target = $region20
      $region19: #{bottleneck_forward.7} parent=11 // pred_region
        _
      $region20: #{bottleneck_forward.7} parent=11 // pred_fallthru
        _
    $region12: #{bottleneck_forward.7} parent=5 // pred_fallthru
      _
    %p151 = scmp.lt.s32.totalorder %s10, 2
    // Predicated region
    $region21: #{bottleneck_forward.7} parent=5 // pred_check
      %p152 = pneg %p151
    $region22: #{bottleneck_forward.7} parent=5 // pred_check_branch
      %154 = sbr.rel (%p152) target = $region24
    $region23: #{bottleneck_forward.7} parent=5 // pred_region
      // Predicated region
      $region25: #{bottleneck_forward.7} parent=23 // pred_check
        %p155 = pneg %p30
      $region26: #{bottleneck_forward.7} parent=23 // pred_check_branch
        %157 = sbr.rel (%p155) target = $region28
      $region27: #{bottleneck_forward.7} parent=23 // pred_region
        %s158 = smul.u32 32, %s10
        %p159 = scmp.lt.s32.totalorder %s158, 63
        %s160 = scalar_select %p159, %s158, 63
        %s161 = smul.addr %s160, 8
        %s162 = scalar_lea.vmem %s0, %s161
        %s163 = smul.u32 32, %s10
      $region28: #{bottleneck_forward.7} parent=23 // pred_fallthru
        _
      // Predicated region
      $region29: #{bottleneck_forward.7} parent=23 // pred_check
        %p164 = pneg %p98
      $region30: #{bottleneck_forward.7} parent=23 // pred_check_branch
        %166 = sbr.rel (%p164) target = $region32
      $region31: #{bottleneck_forward.7} parent=23 // pred_region
        %s167 = smul.u32 32, %s10
        %p168 = scmp.lt.s32.totalorder %s167, 63
        %s169 = scalar_select %p168, %s167, 63
        %s170 = smul.addr %s169, 8
        %s171 = scalar_lea.vmem %s3, %s170
        %s172 = smul.u32 32, %s10
      $region32: #{bottleneck_forward.7} parent=23 // pred_fallthru
        _
    $region24: #{bottleneck_forward.7} parent=5 // pred_fallthru
      _
    %p173 = scmp.le.s32.totalorder 1, %s10
    %p174 = scmp.lt.s32.totalorder %s10, 3
    %p175 = pnand %p173, %p174
    %p176 = pneg %p175
    // Predicated region
    $region33: #{bottleneck_forward.7} parent=5 // pred_check
      _
    $region34: #{bottleneck_forward.7} parent=5 // pred_check_branch
      %178 = sbr.rel (%p175) target = $region36
    $region35: #{bottleneck_forward.7} parent=5 // pred_region
      %s179 = ssub.s32 %s10, 1
      %s180 = smul.u32 32, %s15
      %p181 = scmp.lt.s32.totalorder %s180, 63
      %s182 = scalar_select %p181, %s180, 63
      %s183 = smul.addr %s182, 8
      %s184 = scalar_lea.vmem %s0, %s183
      %p185 = pneg %p36
      %p186 = pneg %p33
      %p187 = pneg %p57
      %p188 = pneg %p54
      %p189 = pneg %p78
      %p190 = pneg %p75
      %s191 = smul.u32 32, %s15
      %p192 = scmp.lt.s32.totalorder %s191, 63
      %s193 = scalar_select %p192, %s191, 63
      %s194 = smul.addr %s193, 8
      %s195 = scalar_lea.vmem %s3, %s194
      %p196 = pneg %p104
      %p197 = pneg %p101
      %p198 = pneg %p130
      %p199 = pneg %p127
      %s200 = smul.u32 32, %s15
      %p201 = scmp.lt.s32.totalorder %s200, 63
      %s202 = scalar_select %p201, %s200, 63
      %s203 = smul.addr %s202, 8
      %s204 = scalar_lea.vmem %s4, %s203
      %s205 = smul.u32 32, %s15
      %p206 = scmp.lt.s32.totalorder %s205, 63
      %s207 = scalar_select %p206, %s205, 63
      %s208 = smul.addr %s207, 8
      %s209 = scalar_lea.vmem %s0, %s208
      %s210 = smul.u32 32, %s15
      %s211 = smul.u32 32, %s15
      %p212 = scmp.lt.s32.totalorder %s211, 63
      %s213 = scalar_select %p212, %s211, 63
      %s214 = smul.addr %s213, 8
      %s215 = scalar_lea.vmem %s3, %s214
      %s216 = smul.u32 32, %s15
      %s217 = smul.u32 32, %s15
      %p218 = scmp.lt.s32.totalorder %s217, 63
      %s219 = scalar_select %p218, %s217, 63
      %s220 = smul.addr %s219, 8
      %s221 = scalar_lea.vmem %s4, %s220
      %s222 = smul.u32 32, %s15
      %v223 = vld [vmem:[%s209] sm:$0xff]
      %v224 = vld [vmem:[%s209 + $0x8] sm:$0xff]
      %v225 = vld [vmem:[%s209 + $0x10] sm:$0xff]
      %v226 = vld [vmem:[%s209 + $0x18] sm:$0xff]
      %v227 = vld [vmem:[%s209 + $0x20] sm:$0xff]
      %v228 = vld [vmem:[%s209 + $0x28] sm:$0xff]
      %v229 = vld [vmem:[%s209 + $0x30] sm:$0xff]
      %v230 = vld [vmem:[%s209 + $0x38] sm:$0xff]
      %v231 = vld [vmem:[%s209 + $0x40] sm:$0xff]
      %v232 = vld [vmem:[%s209 + $0x48] sm:$0xff]
      %v233 = vld [vmem:[%s209 + $0x50] sm:$0xff]
      %v234 = vld [vmem:[%s209 + $0x58] sm:$0xff]
      %v235 = vld [vmem:[%s209 + $0x60] sm:$0xff]
      %v236 = vld [vmem:[%s209 + $0x68] sm:$0xff]
      %v237 = vld [vmem:[%s209 + $0x70] sm:$0xff]
      %v238 = vld [vmem:[%s209 + $0x78] sm:$0xff]
      %v239 = vld [vmem:[%s209 + $0x80] sm:$0xff]
      %v240 = vld [vmem:[%s209 + $0x88] sm:$0xff]
      %v241 = vld [vmem:[%s209 + $0x90] sm:$0xff]
      %v242 = vld [vmem:[%s209 + $0x98] sm:$0xff]
      %v243 = vld [vmem:[%s209 + $0xa0] sm:$0xff]
      %v244 = vld [vmem:[%s209 + $0xa8] sm:$0xff]
      %v245 = vld [vmem:[%s209 + $0xb0] sm:$0xff]
      %v246 = vld [vmem:[%s209 + $0xb8] sm:$0xff]
      %v247 = vld [vmem:[%s209 + $0xc0] sm:$0xff]
      %v248 = vld [vmem:[%s209 + $0xc8] sm:$0xff]
      %v249 = vld [vmem:[%s209 + $0xd0] sm:$0xff]
      %v250 = vld [vmem:[%s209 + $0xd8] sm:$0xff]
      %v251 = vld [vmem:[%s209 + $0xe0] sm:$0xff]
      %v252 = vld [vmem:[%s209 + $0xe8] sm:$0xff]
      %v253 = vld [vmem:[%s209 + $0xf0] sm:$0xff]
      %v254 = vld [vmem:[%s209 + $0xf8] sm:$0xff]
      %v255 = vld [vmem:[%s1] sm:$0x1]
      %v257 = vlaneseq
      %v258 = vshrl.u32 %v257, 7
      %v259 = vsub.s32 0, %v258
      %v260 = vrot.slane %v255, %v259
      %v262 = vmul.f32 %v223, %v260
      %v263 = vmul.f32 %v224, %v260
      %v264 = vmul.f32 %v225, %v260
      %v265 = vmul.f32 %v226, %v260
      %v266 = vmul.f32 %v227, %v260
      %v267 = vmul.f32 %v228, %v260
      %v268 = vmul.f32 %v229, %v260
      %v269 = vmul.f32 %v230, %v260
      %v270 = vmul.f32 %v231, %v260
      %v271 = vmul.f32 %v232, %v260
      %v272 = vmul.f32 %v233, %v260
      %v273 = vmul.f32 %v234, %v260
      %v274 = vmul.f32 %v235, %v260
      %v275 = vmul.f32 %v236, %v260
      %v276 = vmul.f32 %v237, %v260
      %v277 = vmul.f32 %v238, %v260
      %v278 = vmul.f32 %v239, %v260
      %v279 = vmul.f32 %v240, %v260
      %v280 = vmul.f32 %v241, %v260
      %v281 = vmul.f32 %v242, %v260
      %v282 = vmul.f32 %v243, %v260
      %v283 = vmul.f32 %v244, %v260
      %v284 = vmul.f32 %v245, %v260
      %v285 = vmul.f32 %v246, %v260
      %v286 = vmul.f32 %v247, %v260
      %v287 = vmul.f32 %v248, %v260
      %v288 = vmul.f32 %v249, %v260
      %v289 = vmul.f32 %v250, %v260
      %v290 = vmul.f32 %v251, %v260
      %v291 = vmul.f32 %v252, %v260
      %v292 = vmul.f32 %v253, %v260
      %v293 = vmul.f32 %v254, %v260
      %v294 = vld [vmem:[%s2] sm:$0x1]
      %v296 = vlaneseq
      %v297 = vshrl.u32 %v296, 7
      %v298 = vsub.s32 0, %v297
      %v299 = vrot.slane %v294, %v298
      %v301 = vadd.f32 %v262, %v299
      %v302 = vadd.f32 %v263, %v299
      %v303 = vadd.f32 %v264, %v299
      %v304 = vadd.f32 %v265, %v299
      %v305 = vadd.f32 %v266, %v299
      %v306 = vadd.f32 %v267, %v299
      %v307 = vadd.f32 %v268, %v299
      %v308 = vadd.f32 %v269, %v299
      %v309 = vadd.f32 %v270, %v299
      %v310 = vadd.f32 %v271, %v299
      %v311 = vadd.f32 %v272, %v299
      %v312 = vadd.f32 %v273, %v299
      %v313 = vadd.f32 %v274, %v299
      %v314 = vadd.f32 %v275, %v299
      %v315 = vadd.f32 %v276, %v299
      %v316 = vadd.f32 %v277, %v299
      %v317 = vadd.f32 %v278, %v299
      %v318 = vadd.f32 %v279, %v299
      %v319 = vadd.f32 %v280, %v299
      %v320 = vadd.f32 %v281, %v299
      %v321 = vadd.f32 %v282, %v299
      %v322 = vadd.f32 %v283, %v299
      %v323 = vadd.f32 %v284, %v299
      %v324 = vadd.f32 %v285, %v299
      %v325 = vadd.f32 %v286, %v299
      %v326 = vadd.f32 %v287, %v299
      %v327 = vadd.f32 %v288, %v299
      %v328 = vadd.f32 %v289, %v299
      %v329 = vadd.f32 %v290, %v299
      %v330 = vadd.f32 %v291, %v299
      %v331 = vadd.f32 %v292, %v299
      %v332 = vadd.f32 %v293, %v299
      %v333 = vld [vmem:[%s215] sm:$0xff]
      %v334 = vld [vmem:[%s215 + $0x8] sm:$0xff]
      %v335 = vld [vmem:[%s215 + $0x10] sm:$0xff]
      %v336 = vld [vmem:[%s215 + $0x18] sm:$0xff]
      %v337 = vld [vmem:[%s215 + $0x20] sm:$0xff]
      %v338 = vld [vmem:[%s215 + $0x28] sm:$0xff]
      %v339 = vld [vmem:[%s215 + $0x30] sm:$0xff]
      %v340 = vld [vmem:[%s215 + $0x38] sm:$0xff]
      %v341 = vld [vmem:[%s215 + $0x40] sm:$0xff]
      %v342 = vld [vmem:[%s215 + $0x48] sm:$0xff]
      %v343 = vld [vmem:[%s215 + $0x50] sm:$0xff]
      %v344 = vld [vmem:[%s215 + $0x58] sm:$0xff]
      %v345 = vld [vmem:[%s215 + $0x60] sm:$0xff]
      %v346 = vld [vmem:[%s215 + $0x68] sm:$0xff]
      %v347 = vld [vmem:[%s215 + $0x70] sm:$0xff]
      %v348 = vld [vmem:[%s215 + $0x78] sm:$0xff]
      %v349 = vld [vmem:[%s215 + $0x80] sm:$0xff]
      %v350 = vld [vmem:[%s215 + $0x88] sm:$0xff]
      %v351 = vld [vmem:[%s215 + $0x90] sm:$0xff]
      %v352 = vld [vmem:[%s215 + $0x98] sm:$0xff]
      %v353 = vld [vmem:[%s215 + $0xa0] sm:$0xff]
      %v354 = vld [vmem:[%s215 + $0xa8] sm:$0xff]
      %v355 = vld [vmem:[%s215 + $0xb0] sm:$0xff]
      %v356 = vld [vmem:[%s215 + $0xb8] sm:$0xff]
      %v357 = vld [vmem:[%s215 + $0xc0] sm:$0xff]
      %v358 = vld [vmem:[%s215 + $0xc8] sm:$0xff]
      %v359 = vld [vmem:[%s215 + $0xd0] sm:$0xff]
      %v360 = vld [vmem:[%s215 + $0xd8] sm:$0xff]
      %v361 = vld [vmem:[%s215 + $0xe0] sm:$0xff]
      %v362 = vld [vmem:[%s215 + $0xe8] sm:$0xff]
      %v363 = vld [vmem:[%s215 + $0xf0] sm:$0xff]
      %v364 = vld [vmem:[%s215 + $0xf8] sm:$0xff]
      %v365 = vadd.f32 %v301, %v333
      %v366 = vadd.f32 %v302, %v334
      %v367 = vadd.f32 %v303, %v335
      %v368 = vadd.f32 %v304, %v336
      %v369 = vadd.f32 %v305, %v337
      %v370 = vadd.f32 %v306, %v338
      %v371 = vadd.f32 %v307, %v339
      %v372 = vadd.f32 %v308, %v340
      %v373 = vadd.f32 %v309, %v341
      %v374 = vadd.f32 %v310, %v342
      %v375 = vadd.f32 %v311, %v343
      %v376 = vadd.f32 %v312, %v344
      %v377 = vadd.f32 %v313, %v345
      %v378 = vadd.f32 %v314, %v346
      %v379 = vadd.f32 %v315, %v347
      %v380 = vadd.f32 %v316, %v348
      %v381 = vadd.f32 %v317, %v349
      %v382 = vadd.f32 %v318, %v350
      %v383 = vadd.f32 %v319, %v351
      %v384 = vadd.f32 %v320, %v352
      %v385 = vadd.f32 %v321, %v353
      %v386 = vadd.f32 %v322, %v354
      %v387 = vadd.f32 %v323, %v355
      %v388 = vadd.f32 %v324, %v356
      %v389 = vadd.f32 %v325, %v357
      %v390 = vadd.f32 %v326, %v358
      %v391 = vadd.f32 %v327, %v359
      %v392 = vadd.f32 %v328, %v360
      %v393 = vadd.f32 %v329, %v361
      %v394 = vadd.f32 %v330, %v362
      %v395 = vadd.f32 %v331, %v363
      %v396 = vadd.f32 %v332, %v364
      %v397 = vmax.f32 %v365, 0.0
      %v398 = vmax.f32 %v366, 0.0
      %v399 = vmax.f32 %v367, 0.0
      %v400 = vmax.f32 %v368, 0.0
      %v401 = vmax.f32 %v369, 0.0
      %v402 = vmax.f32 %v370, 0.0
      %v403 = vmax.f32 %v371, 0.0
      %v404 = vmax.f32 %v372, 0.0
      %v405 = vmax.f32 %v373, 0.0
      %v406 = vmax.f32 %v374, 0.0
      %v407 = vmax.f32 %v375, 0.0
      %v408 = vmax.f32 %v376, 0.0
      %v409 = vmax.f32 %v377, 0.0
      %v410 = vmax.f32 %v378, 0.0
      %v411 = vmax.f32 %v379, 0.0
      %v412 = vmax.f32 %v380, 0.0
      %v413 = vmax.f32 %v381, 0.0
      %v414 = vmax.f32 %v382, 0.0
      %v415 = vmax.f32 %v383, 0.0
      %v416 = vmax.f32 %v384, 0.0
      %v417 = vmax.f32 %v385, 0.0
      %v418 = vmax.f32 %v386, 0.0
      %v419 = vmax.f32 %v387, 0.0
      %v420 = vmax.f32 %v388, 0.0
      %v421 = vmax.f32 %v389, 0.0
      %v422 = vmax.f32 %v390, 0.0
      %v423 = vmax.f32 %v391, 0.0
      %v424 = vmax.f32 %v392, 0.0
      %v425 = vmax.f32 %v393, 0.0
      %v426 = vmax.f32 %v394, 0.0
      %v427 = vmax.f32 %v395, 0.0
      %v428 = vmax.f32 %v396, 0.0
      %429 = vst [vmem:[%s221] sm:$0xff] %v397
      %430 = vst [vmem:[%s221 + $0x8] sm:$0xff] %v398
      %431 = vst [vmem:[%s221 + $0x10] sm:$0xff] %v399
      %432 = vst [vmem:[%s221 + $0x18] sm:$0xff] %v400
      %433 = vst [vmem:[%s221 + $0x20] sm:$0xff] %v401
      %434 = vst [vmem:[%s221 + $0x28] sm:$0xff] %v402
      %435 = vst [vmem:[%s221 + $0x30] sm:$0xff] %v403
      %436 = vst [vmem:[%s221 + $0x38] sm:$0xff] %v404
      %437 = vst [vmem:[%s221 + $0x40] sm:$0xff] %v405
      %438 = vst [vmem:[%s221 + $0x48] sm:$0xff] %v406
      %439 = vst [vmem:[%s221 + $0x50] sm:$0xff] %v407
      %440 = vst [vmem:[%s221 + $0x58] sm:$0xff] %v408
      %441 = vst [vmem:[%s221 + $0x60] sm:$0xff] %v409
      %442 = vst [vmem:[%s221 + $0x68] sm:$0xff] %v410
      %443 = vst [vmem:[%s221 + $0x70] sm:$0xff] %v411
      %444 = vst [vmem:[%s221 + $0x78] sm:$0xff] %v412
      %445 = vst [vmem:[%s221 + $0x80] sm:$0xff] %v413
      %446 = vst [vmem:[%s221 + $0x88] sm:$0xff] %v414
      %447 = vst [vmem:[%s221 + $0x90] sm:$0xff] %v415
      %448 = vst [vmem:[%s221 + $0x98] sm:$0xff] %v416
      %449 = vst [vmem:[%s221 + $0xa0] sm:$0xff] %v417
      %450 = vst [vmem:[%s221 + $0xa8] sm:$0xff] %v418
      %451 = vst [vmem:[%s221 + $0xb0] sm:$0xff] %v419
      %452 = vst [vmem:[%s221 + $0xb8] sm:$0xff] %v420
      %453 = vst [vmem:[%s221 + $0xc0] sm:$0xff] %v421
      %454 = vst [vmem:[%s221 + $0xc8] sm:$0xff] %v422
      %455 = vst [vmem:[%s221 + $0xd0] sm:$0xff] %v423
      %456 = vst [vmem:[%s221 + $0xd8] sm:$0xff] %v424
      %457 = vst [vmem:[%s221 + $0xe0] sm:$0xff] %v425
      %458 = vst [vmem:[%s221 + $0xe8] sm:$0xff] %v426
      %459 = vst [vmem:[%s221 + $0xf0] sm:$0xff] %v427
      %460 = vst [vmem:[%s221 + $0xf8] sm:$0xff] %v428
      %s461 = smul.u32 32, %s15
      %p462 = scmp.lt.s32.totalorder %s461, 63
      %s463 = scalar_select %p462, %s461, 63
      %s464 = smul.addr %s463, 8
      %s465 = scalar_lea.vmem %s4, %s464
      // Predicated region
      $region37: #{bottleneck_forward.7} parent=35 // pred_check
        %p466 = pneg %p127
      $region38: #{bottleneck_forward.7} parent=35 // pred_check_branch
        %468 = sbr.rel (%p466) target = $region40
      $region39: #{bottleneck_forward.7} parent=35 // pred_region
        %s469 = smul.u32 32, %s15
      $region40: #{bottleneck_forward.7} parent=35 // pred_fallthru
        _
    $region36: #{bottleneck_forward.7} parent=5 // pred_fallthru
      _
    %p470 = scmp.le.s32.totalorder 2, %s10
    // Predicated region
    $region41: #{bottleneck_forward.7} parent=5 // pred_check
      %p471 = pneg %p470
    $region42: #{bottleneck_forward.7} parent=5 // pred_check_branch
      %473 = sbr.rel (%p471) target = $region44
    $region43: #{bottleneck_forward.7} parent=5 // pred_region
      %s474 = ssub.s32 %s10, 2
      // Predicated region
      $region45: #{bottleneck_forward.7} parent=43 // pred_check
        %p475 = pneg %p133
      $region46: #{bottleneck_forward.7} parent=43 // pred_check_branch
        %477 = sbr.rel (%p475) target = $region48
      $region47: #{bottleneck_forward.7} parent=43 // pred_region
        %s478 = smul.u32 32, %s16
        %p479 = scmp.lt.s32.totalorder %s478, 63
        %s480 = scalar_select %p479, %s478, 63
        %s481 = smul.addr %s480, 8
        %s482 = scalar_lea.vmem %s4, %s481
      $region48: #{bottleneck_forward.7} parent=43 // pred_fallthru
        _
    $region44: #{bottleneck_forward.7} parent=5 // pred_fallthru
      _
  $region6: #{bottleneck_forward.7} parent=0 // loop_footer
    %s14 = sadd.s32 1, %s10
  $region7: #{bottleneck_forward.7} parent=0 // loop_footer_branch
    %9 = sbr.rel target = $region3
  $region8: #{bottleneck_forward.7} parent=0 // loop_exit
    _

// kernel: bottleneck_forward.4
$region0: #{bottleneck_forward.4}
  #allocation0 [shape = 'u32[]', space=smem, size = 0x4, offset = 0x4, fixed_abs, tag = 'smem constant byte address 0x4 - core index']
  #allocation1 [shape = 'u32[144,128]{1,0:T(1,128)}', space=vmem, size = 0x12000, scoped, tag = 'internal scratch']
  %s0 = inlined_call_operand.vmem [shape: f32[512,128], index: 0, kind: input, shape index: {}]
  %s1 = inlined_call_operand.vmem [shape: bf16[128,128], index: 1, kind: input, shape index: {}]
  %s2 = inlined_call_operand.vmem [shape: bf16[512,128], index: 2, kind: output, shape index: {0}]
  %s3 = inlined_call_operand.vmem [shape: f32[2,8,128], index: 3, kind: output, shape index: {1}]
  %4 = xla_tuple %s2, %s3
  %s5 = sld [smem:[#allocation0]]
  $region49: #{bottleneck_forward.4} parent=0
    _
  %s7 = ssub.s32 1, %s5
  %s8 = scalar_select 0, %s7, %s5
  loop: start=0, step=1, limit=4
  $region2: #{bottleneck_forward.4} parent=0 // loop_pre_header
    _
  $region3: #{bottleneck_forward.4} parent=0 // loop_header
    %s10 = sphi 0, %s14
    %p11 = scmp.ge.s32.totalorder %s10, 4
    %s20 = sphi 0, %s22
    %s23 = sphi 0, %s20
    %s24 = sphi 0, %s23
    %s40 = sphi 0, %s24
    %s44 = sphi 0, %s44
    %s46 = sphi 0, %s44
    %s47 = sphi 0, %s46
    %s61 = sphi 0, %s47
    %s67 = sphi 0, %s69
    %s70 = sphi 0, %s67
    %s71 = sphi 0, %s70
    %s87 = sphi 0, %s71
    %s93 = sphi 0, %s95
    %s96 = sphi 0, %s93
    %s97 = sphi 0, %s96
    %s113 = sphi 0, %s97
  $region4: #{bottleneck_forward.4} parent=0 // loop_header_branch
    %13 = sbr.rel (%p11) target = $region8
  $region5: #{bottleneck_forward.4} parent=0 // loop_body
    %s15 = ssub.s32 %s10, 1
    %s16 = ssub.s32 %s10, 2
    %s17 = sadd.s32 %s10, 1
    %s18 = ssub.s32 %s10, %s17
    %p19 = scmp.eq.s32.totalorder %s18, 0
    %s21 = sadd.s32 %s20, 1
    %s22 = scalar_select %p19, %s20, %s21
    %p25 = pneg %p19
    %p26 = scmp.eq.s32.totalorder %s10, 1
    %p27 = por %p25, %p26
    %p28 = scmp.ne.s32.totalorder %s20, %s23
    %p29 = scmp.eq.s32.totalorder %s10, 0
    %p30 = por %p28, %p29
    %p31 = scmp.ne.s32.totalorder %s20, %s23
    %p32 = scmp.eq.s32.totalorder %s15, 1
    %p33 = por %p31, %p32
    %p34 = scmp.ne.s32.totalorder %s23, %s24
    %p35 = scmp.eq.s32.totalorder %s15, 0
    %p36 = por %p34, %p35
    %p37 = scmp.ne.s32.totalorder %s23, %s24
    %p38 = scmp.eq.s32.totalorder %s16, 1
    %p39 = por %p37, %p38
    %p41 = scmp.ne.s32.totalorder %s24, %s40
    %p42 = scmp.eq.s32.totalorder %s16, 0
    %p43 = por %p41, %p42
    %s45 = sadd.s32 %s44, 1
    %p48 = scmp.eq.s32.totalorder %s10, 1
    %p49 = scmp.ne.s32.totalorder %s44, %s46
    %p50 = scmp.eq.s32.totalorder %s10, 0
    %p51 = por %p49, %p50
    %p52 = scmp.ne.s32.totalorder %s44, %s46
    %p53 = scmp.eq.s32.totalorder %s15, 1
    %p54 = por %p52, %p53
    %p55 = scmp.ne.s32.totalorder %s46, %s47
    %p56 = scmp.eq.s32.totalorder %s15, 0
    %p57 = por %p55, %p56
    %p58 = scmp.ne.s32.totalorder %s46, %s47
    %p59 = scmp.eq.s32.totalorder %s16, 1
    %p60 = por %p58, %p59
    %p62 = scmp.ne.s32.totalorder %s47, %s61
    %p63 = scmp.eq.s32.totalorder %s16, 0
    %p64 = por %p62, %p63
    %s65 = ssub.s32 %s10, %s17
    %p66 = scmp.eq.s32.totalorder %s65, 0
    %s68 = sadd.s32 %s67, 1
    %s69 = scalar_select %p66, %s67, %s68
    %p72 = pneg %p66
    %p73 = scmp.eq.s32.totalorder %s10, 1
    %p74 = por %p72, %p73
    %p75 = scmp.ne.s32.totalorder %s67, %s70
    %p76 = scmp.eq.s32.totalorder %s10, 0
    %p77 = por %p75, %p76
    %p78 = scmp.ne.s32.totalorder %s67, %s70
    %p79 = scmp.eq.s32.totalorder %s15, 1
    %p80 = por %p78, %p79
    %p81 = scmp.ne.s32.totalorder %s70, %s71
    %p82 = scmp.eq.s32.totalorder %s15, 0
    %p83 = por %p81, %p82
    %p84 = scmp.ne.s32.totalorder %s70, %s71
    %p85 = scmp.eq.s32.totalorder %s16, 1
    %p86 = por %p84, %p85
    %p88 = scmp.ne.s32.totalorder %s71, %s87
    %p89 = scmp.eq.s32.totalorder %s16, 0
    %p90 = por %p88, %p89
    %s91 = ssub.s32 %s10, %s17
    %p92 = scmp.eq.s32.totalorder %s91, 0
    %s94 = sadd.s32 %s93, 1
    %s95 = scalar_select %p92, %s93, %s94
    %p98 = pneg %p92
    %p99 = scmp.eq.s32.totalorder %s10, 1
    %p100 = por %p98, %p99
    %p101 = scmp.ne.s32.totalorder %s93, %s96
    %p102 = scmp.eq.s32.totalorder %s10, 0
    %p103 = por %p101, %p102
    %p104 = scmp.ne.s32.totalorder %s93, %s96
    %p105 = scmp.eq.s32.totalorder %s15, 1
    %p106 = por %p104, %p105
    %p107 = scmp.ne.s32.totalorder %s96, %s97
    %p108 = scmp.eq.s32.totalorder %s15, 0
    %p109 = por %p107, %p108
    %p110 = scmp.ne.s32.totalorder %s96, %s97
    %p111 = scmp.eq.s32.totalorder %s16, 1
    %p112 = por %p110, %p111
    %p114 = scmp.ne.s32.totalorder %s97, %s113
    %p115 = scmp.eq.s32.totalorder %s16, 0
    %p116 = por %p114, %p115
    %p117 = scmp.le.s32.totalorder 1, %s10
    %p118 = scmp.lt.s32.totalorder %s10, 3
    %p119 = pnand %p117, %p118
    %p120 = pneg %p119
    // Predicated region
    $region9: #{bottleneck_forward.4} parent=5 // pred_check
      _
    $region10: #{bottleneck_forward.4} parent=5 // pred_check_branch
      %122 = sbr.rel (%p119) target = $region12
    $region11: #{bottleneck_forward.4} parent=5 // pred_region
      %s123 = ssub.s32 %s10, 1
      // Predicated region
      $region13: #{bottleneck_forward.4} parent=11 // pred_check
        %p124 = pneg %p57
      $region14: #{bottleneck_forward.4} parent=11 // pred_check_branch
        %126 = sbr.rel (%p124) target = $region16
      $region15: #{bottleneck_forward.4} parent=11 // pred_region
        _
      $region16: #{bottleneck_forward.4} parent=11 // pred_fallthru
        _
    $region12: #{bottleneck_forward.4} parent=5 // pred_fallthru
      _
    %p127 = scmp.lt.s32.totalorder %s10, 2
    // Predicated region
    $region17: #{bottleneck_forward.4} parent=5 // pred_check
      %p128 = pneg %p127
    $region18: #{bottleneck_forward.4} parent=5 // pred_check_branch
      %130 = sbr.rel (%p128) target = $region20
    $region19: #{bottleneck_forward.4} parent=5 // pred_region
      // Predicated region
      $region21: #{bottleneck_forward.4} parent=19 // pred_check
        %p131 = pneg %p30
      $region22: #{bottleneck_forward.4} parent=19 // pred_check_branch
        %133 = sbr.rel (%p131) target = $region24
      $region23: #{bottleneck_forward.4} parent=19 // pred_region
        %s134 = smul.u32 32, %s10
        %p135 = scmp.lt.s32.totalorder %s134, 63
        %s136 = scalar_select %p135, %s134, 63
        %s137 = smul.addr %s136, 8
        %s138 = scalar_lea.vmem %s0, %s137
        %s139 = smul.u32 32, %s10
      $region24: #{bottleneck_forward.4} parent=19 // pred_fallthru
        _
    $region20: #{bottleneck_forward.4} parent=5 // pred_fallthru
      _
    %p140 = scmp.le.s32.totalorder 1, %s10
    %p141 = scmp.lt.s32.totalorder %s10, 3
    %p142 = pnand %p140, %p141
    %p143 = pneg %p142
    // Predicated region
    $region25: #{bottleneck_forward.4} parent=5 // pred_check
      _
    $region26: #{bottleneck_forward.4} parent=5 // pred_check_branch
      %145 = sbr.rel (%p142) target = $region28
    $region27: #{bottleneck_forward.4} parent=5 // pred_region
      %s146 = ssub.s32 %s10, 1
      %s147 = smul.u32 32, %s15
      %p148 = scmp.lt.s32.totalorder %s147, 63
      %s149 = scalar_select %p148, %s147, 63
      %s150 = smul.addr %s149, 8
      %s151 = scalar_lea.vmem %s0, %s150
      %p152 = pneg %p36
      %p153 = pneg %p33
      %p154 = pneg %p57
      %p155 = pneg %p54
      %p156 = pneg %p83
      %p157 = pneg %p80
      %s158 = smul.u32 32, %s15
      %p159 = scmp.lt.s32.totalorder %s158, 63
      %s160 = scalar_select %p159, %s158, 63
      %s161 = smul.addr %s160, 4
      %s162 = scalar_lea.vmem %s2, %s161
      %p163 = pneg %p109
      %p164 = pneg %p106
      %p165 = scmp.lt.s32.totalorder %s15, 1
      %s166 = scalar_select %p165, %s15, 1
      %s167 = smul.addr %s166, 8
      %s168 = scalar_lea.vmem %s3, %s167
      %s169 = smul.u32 32, %s15
      %p170 = scmp.lt.s32.totalorder %s169, 63
      %s171 = scalar_select %p170, %s169, 63
      %s172 = smul.addr %s171, 8
      %s173 = scalar_lea.vmem %s0, %s172
      %s174 = smul.u32 32, %s15
      %s175 = smul.u32 32, %s15
      %p176 = scmp.lt.s32.totalorder %s175, 63
      %s177 = scalar_select %p176, %s175, 63
      %s178 = smul.addr %s177, 4
      %s179 = scalar_lea.vmem %s2, %s178
      %s180 = smul.u32 32, %s15
      %p181 = scmp.lt.s32.totalorder %s15, 1
      %s182 = scalar_select %p181, %s15, 1
      %s183 = smul.addr %s182, 8
      %s184 = scalar_lea.vmem %s3, %s183
      %v186 = vld [vmem:[%s173] sm:$0xff]
      %v187 = vld [vmem:[%s173 + $0x8] sm:$0xff]
      %v188 = vld [vmem:[%s173 + $0x10] sm:$0xff]
      %v189 = vld [vmem:[%s173 + $0x18] sm:$0xff]
      %v190 = vld [vmem:[%s173 + $0x20] sm:$0xff]
      %v191 = vld [vmem:[%s173 + $0x28] sm:$0xff]
      %v192 = vld [vmem:[%s173 + $0x30] sm:$0xff]
      %v193 = vld [vmem:[%s173 + $0x38] sm:$0xff]
      %v194 = vld [vmem:[%s173 + $0x40] sm:$0xff]
      %v195 = vld [vmem:[%s173 + $0x48] sm:$0xff]
      %v196 = vld [vmem:[%s173 + $0x50] sm:$0xff]
      %v197 = vld [vmem:[%s173 + $0x58] sm:$0xff]
      %v198 = vld [vmem:[%s173 + $0x60] sm:$0xff]
      %v199 = vld [vmem:[%s173 + $0x68] sm:$0xff]
      %v200 = vld [vmem:[%s173 + $0x70] sm:$0xff]
      %v201 = vld [vmem:[%s173 + $0x78] sm:$0xff]
      %v202 = vld [vmem:[%s173 + $0x80] sm:$0xff]
      %v203 = vld [vmem:[%s173 + $0x88] sm:$0xff]
      %v204 = vld [vmem:[%s173 + $0x90] sm:$0xff]
      %v205 = vld [vmem:[%s173 + $0x98] sm:$0xff]
      %v206 = vld [vmem:[%s173 + $0xa0] sm:$0xff]
      %v207 = vld [vmem:[%s173 + $0xa8] sm:$0xff]
      %v208 = vld [vmem:[%s173 + $0xb0] sm:$0xff]
      %v209 = vld [vmem:[%s173 + $0xb8] sm:$0xff]
      %v210 = vld [vmem:[%s173 + $0xc0] sm:$0xff]
      %v211 = vld [vmem:[%s173 + $0xc8] sm:$0xff]
      %v212 = vld [vmem:[%s173 + $0xd0] sm:$0xff]
      %v213 = vld [vmem:[%s173 + $0xd8] sm:$0xff]
      %v214 = vld [vmem:[%s173 + $0xe0] sm:$0xff]
      %v215 = vld [vmem:[%s173 + $0xe8] sm:$0xff]
      %v216 = vld [vmem:[%s173 + $0xf0] sm:$0xff]
      %v217 = vld [vmem:[%s173 + $0xf8] sm:$0xff]
      %v218 = vpack.c.bf16 %v187, %v186
      %v219 = vpack.c.bf16 %v189, %v188
      %v220 = vpack.c.bf16 %v191, %v190
      %v221 = vpack.c.bf16 %v193, %v192
      %v222 = vpack.c.bf16 %v195, %v194
      %v223 = vpack.c.bf16 %v197, %v196
      %v224 = vpack.c.bf16 %v199, %v198
      %v225 = vpack.c.bf16 %v201, %v200
      %v226 = vpack.c.bf16 %v203, %v202
      %v227 = vpack.c.bf16 %v205, %v204
      %v228 = vpack.c.bf16 %v207, %v206
      %v229 = vpack.c.bf16 %v209, %v208
      %v230 = vpack.c.bf16 %v211, %v210
      %v231 = vpack.c.bf16 %v213, %v212
      %v232 = vpack.c.bf16 %v215, %v214
      %v233 = vpack.c.bf16 %v217, %v216
      %v234 = vld [vmem:[%s1] sm:$0xf]
      %v235 = vld [vmem:[%s1 + $0x4] sm:$0xf]
      %v236 = vld [vmem:[%s1 + $0x8] sm:$0xf]
      %v237 = vld [vmem:[%s1 + $0xc] sm:$0xf]
      %v238 = vld [vmem:[%s1 + $0x10] sm:$0xf]
      %v239 = vld [vmem:[%s1 + $0x14] sm:$0xf]
      %v240 = vld [vmem:[%s1 + $0x18] sm:$0xf]
      %v241 = vld [vmem:[%s1 + $0x1c] sm:$0xf]
      %v242 = vld [vmem:[%s1 + $0x20] sm:$0xf]
      %v243 = vld [vmem:[%s1 + $0x24] sm:$0xf]
      %v244 = vld [vmem:[%s1 + $0x28] sm:$0xf]
      %v245 = vld [vmem:[%s1 + $0x2c] sm:$0xf]
      %v246 = vld [vmem:[%s1 + $0x30] sm:$0xf]
      %v247 = vld [vmem:[%s1 + $0x34] sm:$0xf]
      %v248 = vld [vmem:[%s1 + $0x38] sm:$0xf]
      %v249 = vld [vmem:[%s1 + $0x3c] sm:$0xf]
      %v266 = vunpack.c.l.b16 %v234
      %v267 = vunpack.c.l.b16 %v235
      %v268 = vunpack.c.l.b16 %v236
      %v269 = vunpack.c.l.b16 %v237
      %v270 = vunpack.c.l.b16 %v238
      %v271 = vunpack.c.l.b16 %v239
      %v272 = vunpack.c.l.b16 %v240
      %v273 = vunpack.c.l.b16 %v241
      %v274 = vunpack.c.l.b16 %v242
      %v275 = vunpack.c.l.b16 %v243
      %v276 = vunpack.c.l.b16 %v244
      %v277 = vunpack.c.l.b16 %v245
      %v278 = vunpack.c.l.b16 %v246
      %v279 = vunpack.c.l.b16 %v247
      %v280 = vunpack.c.l.b16 %v248
      %v281 = vunpack.c.l.b16 %v249
      %v282 = vpack.c.b16 %v267, %v266
      %v283 = vpack.c.b16 %v269, %v268
      %v284 = vpack.c.b16 %v271, %v270
      %v285 = vpack.c.b16 %v273, %v272
      %v286 = vpack.c.b16 %v275, %v274
      %v287 = vpack.c.b16 %v277, %v276
      %v288 = vpack.c.b16 %v279, %v278
      %v289 = vpack.c.b16 %v281, %v280
      %298 = vmatprep.subr.bf16.mxu0 0
      %299 = vmatpush1.bf16.msra.mxu0 %v282
      %300 = vmatprep.subr.bf16.mxu0 0
      %301 = vmatpush1.bf16.msra.mxu0 %v283
      %302 = vmatprep.subr.bf16.mxu0 0
      %303 = vmatpush1.bf16.msra.mxu0 %v284
      %304 = vmatprep.subr.bf16.mxu0 0
      %305 = vmatpush1.bf16.msra.mxu0 %v285
      %306 = vmatprep.subr.bf16.mxu0 0
      %307 = vmatpush1.bf16.msra.mxu0 %v286
      %308 = vmatprep.subr.bf16.mxu0 0
      %309 = vmatpush1.bf16.msra.mxu0 %v287
      %310 = vmatprep.subr.bf16.mxu0 0
      %311 = vmatpush1.bf16.msra.mxu0 %v288
      %312 = vmatprep.subr.bf16.mxu0 0
      %313 = vmatpush1.bf16.msra.mxu0 %v289
      %314 = vmatprep.subr.bf16.mxu0 0
      %315 = vmatpush1.bf16.msra.mxu0 0
      %316 = vmatprep.subr.bf16.mxu0 0
      %317 = vmatpush1.bf16.msra.mxu0 0
      %318 = vmatprep.subr.bf16.mxu0 0
      %319 = vmatpush1.bf16.msra.mxu0 0
      %320 = vmatprep.subr.bf16.mxu0 0
      %321 = vmatpush1.bf16.msra.mxu0 0
      %322 = vmatprep.subr.bf16.mxu0 0
      %323 = vmatpush1.bf16.msra.mxu0 0
      %324 = vmatprep.subr.bf16.mxu0 0
      %325 = vmatpush1.bf16.msra.mxu0 0
      %326 = vmatprep.subr.bf16.mxu0 0
      %327 = vmatpush1.bf16.msra.mxu0 0
      %328 = vmatprep.subr.bf16.mxu0 0
      %329 = vmatpush1.bf16.msra.mxu0 0
      %330 = vmatprep.mubr.bf16.mxu0 0
      %331 = vmatmul.mubr.bf16.gmra.mrb[0].mxu0 %v218
      %v332 = vpop.f32.mrb[0].mxu0
      %v333 = vadd.f32 0.0, %v332
      %v334 = vpop.f32.mrb[0].mxu0
      %v335 = vpop.f32.mrb[0].mxu0
      %v336 = vadd.f32 0.0, %v335
      %v337 = vpop.f32.mrb[0].mxu0
      %338 = vmatprep.mubr.bf16.mxu0 0
      %339 = vmatmul.mubr.bf16.gmra.mrb[0].mxu0 %v219
      %v340 = vpop.f32.mrb[0].mxu0
      %v341 = vadd.f32 0.0, %v340
      %v342 = vpop.f32.mrb[0].mxu0
      %v343 = vpop.f32.mrb[0].mxu0
      %v344 = vadd.f32 0.0, %v343
      %v345 = vpop.f32.mrb[0].mxu0
      %346 = vmatprep.mubr.bf16.mxu0 0
      %347 = vmatmul.mubr.bf16.gmra.mrb[0].mxu0 %v220
      %v348 = vpop.f32.mrb[0].mxu0
      %v349 = vadd.f32 0.0, %v348
      %v350 = vpop.f32.mrb[0].mxu0
      %v351 = vpop.f32.mrb[0].mxu0
      %v352 = vadd.f32 0.0, %v351
      %v353 = vpop.f32.mrb[0].mxu0
      %354 = vmatprep.mubr.bf16.mxu0 0
      %355 = vmatmul.mubr.bf16.gmra.mrb[0].mxu0 %v221
      %v356 = vpop.f32.mrb[0].mxu0
      %v357 = vadd.f32 0.0, %v356
      %v358 = vpop.f32.mrb[0].mxu0
      %v359 = vpop.f32.mrb[0].mxu0
      %v360 = vadd.f32 0.0, %v359
      %v361 = vpop.f32.mrb[0].mxu0
      %362 = vmatprep.mubr.bf16.mxu0 0
      %363 = vmatmul.mubr.bf16.gmra.mrb[0].mxu0 %v222
      %v364 = vpop.f32.mrb[0].mxu0
      %v365 = vadd.f32 0.0, %v364
      %v366 = vpop.f32.mrb[0].mxu0
      %v367 = vpop.f32.mrb[0].mxu0
      %v368 = vadd.f32 0.0, %v367
      %v369 = vpop.f32.mrb[0].mxu0
      %370 = vmatprep.mubr.bf16.mxu0 0
      %371 = vmatmul.mubr.bf16.gmra.mrb[0].mxu0 %v223
      %v372 = vpop.f32.mrb[0].mxu0
      %v373 = vadd.f32 0.0, %v372
      %v374 = vpop.f32.mrb[0].mxu0
      %v375 = vpop.f32.mrb[0].mxu0
      %v376 = vadd.f32 0.0, %v375
      %v377 = vpop.f32.mrb[0].mxu0
      %378 = vmatprep.mubr.bf16.mxu0 0
      %379 = vmatmul.mubr.bf16.gmra.mrb[0].mxu0 %v224
      %v380 = vpop.f32.mrb[0].mxu0
      %v381 = vadd.f32 0.0, %v380
      %v382 = vpop.f32.mrb[0].mxu0
      %v383 = vpop.f32.mrb[0].mxu0
      %v384 = vadd.f32 0.0, %v383
      %v385 = vpop.f32.mrb[0].mxu0
      %386 = vmatprep.mubr.bf16.mxu0 0
      %387 = vmatmul.mubr.bf16.gmra.mrb[0].mxu0 %v225
      %v388 = vpop.f32.mrb[0].mxu0
      %v389 = vadd.f32 0.0, %v388
      %v390 = vpop.f32.mrb[0].mxu0
      %v391 = vpop.f32.mrb[0].mxu0
      %v392 = vadd.f32 0.0, %v391
      %v393 = vpop.f32.mrb[0].mxu0
      %394 = vmatprep.mubr.bf16.mxu0 0
      %395 = vmatmul.mubr.bf16.gmra.mrb[0].mxu0 %v226
      %v396 = vpop.f32.mrb[0].mxu0
      %v397 = vadd.f32 0.0, %v396
      %v398 = vpop.f32.mrb[0].mxu0
      %v399 = vpop.f32.mrb[0].mxu0
      %v400 = vadd.f32 0.0, %v399
      %v401 = vpop.f32.mrb[0].mxu0
      %402 = vmatprep.mubr.bf16.mxu0 0
      %403 = vmatmul.mubr.bf16.gmra.mrb[0].mxu0 %v227
      %v404 = vpop.f32.mrb[0].mxu0
      %v405 = vadd.f32 0.0, %v404
      %v406 = vpop.f32.mrb[0].mxu0
      %v407 = vpop.f32.mrb[0].mxu0
      %v408 = vadd.f32 0.0, %v407
      %v409 = vpop.f32.mrb[0].mxu0
      %410 = vmatprep.mubr.bf16.mxu0 0
      %411 = vmatmul.mubr.bf16.gmra.mrb[0].mxu0 %v228
      %v412 = vpop.f32.mrb[0].mxu0
      %v413 = vadd.f32 0.0, %v412
      %v414 = vpop.f32.mrb[0].mxu0
      %v415 = vpop.f32.mrb[0].mxu0
      %v416 = vadd.f32 0.0, %v415
      %v417 = vpop.f32.mrb[0].mxu0
      %418 = vmatprep.mubr.bf16.mxu0 0
      %419 = vmatmul.mubr.bf16.gmra.mrb[0].mxu0 %v229
      %v420 = vpop.f32.mrb[0].mxu0
      %v421 = vadd.f32 0.0, %v420
      %v422 = vpop.f32.mrb[0].mxu0
      %v423 = vpop.f32.mrb[0].mxu0
      %v424 = vadd.f32 0.0, %v423
      %v425 = vpop.f32.mrb[0].mxu0
      %426 = vmatprep.mubr.bf16.mxu0 0
      %427 = vmatmul.mubr.bf16.gmra.mrb[0].mxu0 %v230
      %v428 = vpop.f32.mrb[0].mxu0
      %v429 = vadd.f32 0.0, %v428
      %v430 = vpop.f32.mrb[0].mxu0
      %v431 = vpop.f32.mrb[0].mxu0
      %v432 = vadd.f32 0.0, %v431
      %v433 = vpop.f32.mrb[0].mxu0
      %434 = vmatprep.mubr.bf16.mxu0 0
      %435 = vmatmul.mubr.bf16.gmra.mrb[0].mxu0 %v231
      %v436 = vpop.f32.mrb[0].mxu0
      %v437 = vadd.f32 0.0, %v436
      %v438 = vpop.f32.mrb[0].mxu0
      %v439 = vpop.f32.mrb[0].mxu0
      %v440 = vadd.f32 0.0, %v439
      %v441 = vpop.f32.mrb[0].mxu0
      %442 = vmatprep.mubr.bf16.mxu0 0
      %443 = vmatmul.mubr.bf16.gmra.mrb[0].mxu0 %v232
      %v444 = vpop.f32.mrb[0].mxu0
      %v445 = vadd.f32 0.0, %v444
      %v446 = vpop.f32.mrb[0].mxu0
      %v447 = vpop.f32.mrb[0].mxu0
      %v448 = vadd.f32 0.0, %v447
      %v449 = vpop.f32.mrb[0].mxu0
      %450 = vmatprep.mubr.bf16.mxu0 0
      %451 = vmatmul.mubr.bf16.gmra.mrb[0].mxu0 %v233
      %v452 = vpop.f32.mrb[0].mxu0
      %v453 = vadd.f32 0.0, %v452
      %v454 = vpop.f32.mrb[0].mxu0
      %v455 = vpop.f32.mrb[0].mxu0
      %v456 = vadd.f32 0.0, %v455
      %v457 = vpop.f32.mrb[0].mxu0
      %458 = vdwg.mxu0
      %v459 = vpack.c.bf16 %v336, %v333
      %v460 = vpack.c.bf16 %v344, %v341
      %v461 = vpack.c.bf16 %v352, %v349
      %v462 = vpack.c.bf16 %v360, %v357
      %v463 = vpack.c.bf16 %v368, %v365
      %v464 = vpack.c.bf16 %v376, %v373
      %v465 = vpack.c.bf16 %v384, %v381
      %v466 = vpack.c.bf16 %v392, %v389
      %v467 = vpack.c.bf16 %v400, %v397
      %v468 = vpack.c.bf16 %v408, %v405
      %v469 = vpack.c.bf16 %v416, %v413
      %v470 = vpack.c.bf16 %v424, %v421
      %v471 = vpack.c.bf16 %v432, %v429
      %v472 = vpack.c.bf16 %v440, %v437
      %v473 = vpack.c.bf16 %v448, %v445
      %v474 = vpack.c.bf16 %v456, %v453
      %v491 = vunpack.c.l.b16 %v459
      %v492 = vunpack.c.h.b16 %v459
      %v493 = vunpack.c.l.b16 %v460
      %v494 = vunpack.c.h.b16 %v460
      %v495 = vunpack.c.l.b16 %v461
      %v496 = vunpack.c.h.b16 %v461
      %v497 = vunpack.c.l.b16 %v462
      %v498 = vunpack.c.h.b16 %v462
      %v499 = vunpack.c.l.b16 %v463
      %v500 = vunpack.c.h.b16 %v463
      %v501 = vunpack.c.l.b16 %v464
      %v502 = vunpack.c.h.b16 %v464
      %v503 = vunpack.c.l.b16 %v465
      %v504 = vunpack.c.h.b16 %v465
      %v505 = vunpack.c.l.b16 %v466
      %v506 = vunpack.c.h.b16 %v466
      %v507 = vunpack.c.l.b16 %v467
      %v508 = vunpack.c.h.b16 %v467
      %v509 = vunpack.c.l.b16 %v468
      %v510 = vunpack.c.h.b16 %v468
      %v511 = vunpack.c.l.b16 %v469
      %v512 = vunpack.c.h.b16 %v469
      %v513 = vunpack.c.l.b16 %v470
      %v514 = vunpack.c.h.b16 %v470
      %v515 = vunpack.c.l.b16 %v471
      %v516 = vunpack.c.h.b16 %v471
      %v517 = vunpack.c.l.b16 %v472
      %v518 = vunpack.c.h.b16 %v472
      %v519 = vunpack.c.l.b16 %v473
      %v520 = vunpack.c.h.b16 %v473
      %v521 = vunpack.c.l.b16 %v474
      %v522 = vunpack.c.h.b16 %v474
      %v523 = vpack.c.b16 %v491, %v491
      %v524 = vpack.c.b16 %v492, %v492
      %v525 = vpack.c.b16 %v493, %v493
      %v526 = vpack.c.b16 %v494, %v494
      %v527 = vpack.c.b16 %v495, %v495
      %v528 = vpack.c.b16 %v496, %v496
      %v529 = vpack.c.b16 %v497, %v497
      %v530 = vpack.c.b16 %v498, %v498
      %v531 = vpack.c.b16 %v499, %v499
      %v532 = vpack.c.b16 %v500, %v500
      %v533 = vpack.c.b16 %v501, %v501
      %v534 = vpack.c.b16 %v502, %v502
      %v535 = vpack.c.b16 %v503, %v503
      %v536 = vpack.c.b16 %v504, %v504
      %v537 = vpack.c.b16 %v505, %v505
      %v538 = vpack.c.b16 %v506, %v506
      %v539 = vpack.c.b16 %v507, %v507
      %v540 = vpack.c.b16 %v508, %v508
      %v541 = vpack.c.b16 %v509, %v509
      %v542 = vpack.c.b16 %v510, %v510
      %v543 = vpack.c.b16 %v511, %v511
      %v544 = vpack.c.b16 %v512, %v512
      %v545 = vpack.c.b16 %v513, %v513
      %v546 = vpack.c.b16 %v514, %v514
      %v547 = vpack.c.b16 %v515, %v515
      %v548 = vpack.c.b16 %v516, %v516
      %v549 = vpack.c.b16 %v517, %v517
      %v550 = vpack.c.b16 %v518, %v518
      %v551 = vpack.c.b16 %v519, %v519
      %v552 = vpack.c.b16 %v520, %v520
      %v553 = vpack.c.b16 %v521, %v521
      %v554 = vpack.c.b16 %v522, %v522
      %587 = vst [vmem:[%s179] sm:$0xf] %v523
      %588 = vst [vmem:[%s179 + $0x4] sm:$0xf] %v524
      %589 = vst [vmem:[%s179 + $0x8] sm:$0xf] %v525
      %590 = vst [vmem:[%s179 + $0xc] sm:$0xf] %v526
      %591 = vst [vmem:[%s179 + $0x10] sm:$0xf] %v527
      %592 = vst [vmem:[%s179 + $0x14] sm:$0xf] %v528
      %593 = vst [vmem:[%s179 + $0x18] sm:$0xf] %v529
      %594 = vst [vmem:[%s179 + $0x1c] sm:$0xf] %v530
      %595 = vst [vmem:[%s179 + $0x20] sm:$0xf] %v531
      %596 = vst [vmem:[%s179 + $0x24] sm:$0xf] %v532
      %597 = vst [vmem:[%s179 + $0x28] sm:$0xf] %v533
      %598 = vst [vmem:[%s179 + $0x2c] sm:$0xf] %v534
      %599 = vst [vmem:[%s179 + $0x30] sm:$0xf] %v535
      %600 = vst [vmem:[%s179 + $0x34] sm:$0xf] %v536
      %601 = vst [vmem:[%s179 + $0x38] sm:$0xf] %v537
      %602 = vst [vmem:[%s179 + $0x3c] sm:$0xf] %v538
      %603 = vst [vmem:[%s179 + $0x40] sm:$0xf] %v539
      %604 = vst [vmem:[%s179 + $0x44] sm:$0xf] %v540
      %605 = vst [vmem:[%s179 + $0x48] sm:$0xf] %v541
      %606 = vst [vmem:[%s179 + $0x4c] sm:$0xf] %v542
      %607 = vst [vmem:[%s179 + $0x50] sm:$0xf] %v543
      %608 = vst [vmem:[%s179 + $0x54] sm:$0xf] %v544
      %609 = vst [vmem:[%s179 + $0x58] sm:$0xf] %v545
      %610 = vst [vmem:[%s179 + $0x5c] sm:$0xf] %v546
      %611 = vst [vmem:[%s179 + $0x60] sm:$0xf] %v547
      %612 = vst [vmem:[%s179 + $0x64] sm:$0xf] %v548
      %613 = vst [vmem:[%s179 + $0x68] sm:$0xf] %v549
      %614 = vst [vmem:[%s179 + $0x6c] sm:$0xf] %v550
      %615 = vst [vmem:[%s179 + $0x70] sm:$0xf] %v551
      %616 = vst [vmem:[%s179 + $0x74] sm:$0xf] %v552
      %617 = vst [vmem:[%s179 + $0x78] sm:$0xf] %v553
      %618 = vst [vmem:[%s179 + $0x7c] sm:$0xf] %v554
      %v619 = vadd.f32 %v333, %v336
      %v620 = vadd.f32 %v619, %v341
      %v621 = vadd.f32 %v620, %v344
      %v622 = vadd.f32 %v621, %v349
      %v623 = vadd.f32 %v622, %v352
      %v624 = vadd.f32 %v623, %v357
      %v625 = vadd.f32 %v624, %v360
      %v626 = vadd.f32 %v625, %v365
      %v627 = vadd.f32 %v626, %v368
      %v628 = vadd.f32 %v627, %v373
      %v629 = vadd.f32 %v628, %v376
      %v630 = vadd.f32 %v629, %v381
      %v631 = vadd.f32 %v630, %v384
      %v632 = vadd.f32 %v631, %v389
      %v633 = vadd.f32 %v632, %v392
      %v634 = vadd.f32 %v633, %v397
      %v635 = vadd.f32 %v634, %v400
      %v636 = vadd.f32 %v635, %v405
      %v637 = vadd.f32 %v636, %v408
      %v638 = vadd.f32 %v637, %v413
      %v639 = vadd.f32 %v638, %v416
      %v640 = vadd.f32 %v639, %v421
      %v641 = vadd.f32 %v640, %v424
      %v642 = vadd.f32 %v641, %v429
      %v643 = vadd.f32 %v642, %v432
      %v644 = vadd.f32 %v643, %v437
      %v645 = vadd.f32 %v644, %v440
      %v646 = vadd.f32 %v645, %v445
      %v647 = vadd.f32 %v646, %v448
      %v648 = vadd.f32 %v647, %v453
      %v649 = vadd.f32 %v648, %v456
      %v650 = vrot.slane %v649, 4
      %v651 = vadd.f32 %v649, %v650
      %v652 = vrot.slane %v651, 2
      %v653 = vadd.f32 %v651, %v652
      %v654 = vrot.slane %v653, 1
      %v655 = vadd.f32 %v653, %v654
      %v656 = vmul.f32 %v333, %v333
      %v657 = vmul.f32 %v336, %v336
      %v658 = vmul.f32 %v341, %v341
      %v659 = vmul.f32 %v344, %v344
      %v660 = vmul.f32 %v349, %v349
      %v661 = vmul.f32 %v352, %v352
      %v662 = vmul.f32 %v357, %v357
      %v663 = vmul.f32 %v360, %v360
      %v664 = vmul.f32 %v365, %v365
      %v665 = vmul.f32 %v368, %v368
      %v666 = vmul.f32 %v373, %v373
      %v667 = vmul.f32 %v376, %v376
      %v668 = vmul.f32 %v381, %v381
      %v669 = vmul.f32 %v384, %v384
      %v670 = vmul.f32 %v389, %v389
      %v671 = vmul.f32 %v392, %v392
      %v672 = vmul.f32 %v397, %v397
      %v673 = vmul.f32 %v400, %v400
      %v674 = vmul.f32 %v405, %v405
      %v675 = vmul.f32 %v408, %v408
      %v676 = vmul.f32 %v413, %v413
      %v677 = vmul.f32 %v416, %v416
      %v678 = vmul.f32 %v421, %v421
      %v679 = vmul.f32 %v424, %v424
      %v680 = vmul.f32 %v429, %v429
      %v681 = vmul.f32 %v432, %v432
      %v682 = vmul.f32 %v437, %v437
      %v683 = vmul.f32 %v440, %v440
      %v684 = vmul.f32 %v445, %v445
      %v685 = vmul.f32 %v448, %v448
      %v686 = vmul.f32 %v453, %v453
      %v687 = vmul.f32 %v456, %v456
      %v688 = vadd.f32 %v656, %v657
      %v689 = vadd.f32 %v688, %v658
      %v690 = vadd.f32 %v689, %v659
      %v691 = vadd.f32 %v690, %v660
      %v692 = vadd.f32 %v691, %v661
      %v693 = vadd.f32 %v692, %v662
      %v694 = vadd.f32 %v693, %v663
      %v695 = vadd.f32 %v694, %v664
      %v696 = vadd.f32 %v695, %v665
      %v697 = vadd.f32 %v696, %v666
      %v698 = vadd.f32 %v697, %v667
      %v699 = vadd.f32 %v698, %v668
      %v700 = vadd.f32 %v699, %v669
      %v701 = vadd.f32 %v700, %v670
      %v702 = vadd.f32 %v701, %v671
      %v703 = vadd.f32 %v702, %v672
      %v704 = vadd.f32 %v703, %v673
      %v705 = vadd.f32 %v704, %v674
      %v706 = vadd.f32 %v705, %v675
      %v707 = vadd.f32 %v706, %v676
      %v708 = vadd.f32 %v707, %v677
      %v709 = vadd.f32 %v708, %v678
      %v710 = vadd.f32 %v709, %v679
      %v711 = vadd.f32 %v710, %v680
      %v712 = vadd.f32 %v711, %v681
      %v713 = vadd.f32 %v712, %v682
      %v714 = vadd.f32 %v713, %v683
      %v715 = vadd.f32 %v714, %v684
      %v716 = vadd.f32 %v715, %v685
      %v717 = vadd.f32 %v716, %v686
      %v718 = vadd.f32 %v717, %v687
      %v719 = vrot.slane %v718, 4
      %v720 = vadd.f32 %v718, %v719
      %v721 = vrot.slane %v720, 2
      %v722 = vadd.f32 %v720, %v721
      %v723 = vrot.slane %v722, 1
      %v724 = vadd.f32 %v722, %v723
      %v725 = vlaneseq
      %v726 = vshrl.u32 %v725, 7
      %vm727 = vcmp.eq.s32.totalorder %v726, 0
      %v728 = vsel %vm727, %v655, 0.0
      %vm729 = vcmp.eq.s32.totalorder %v726, 1
      %v730 = vsel %vm729, %v724, 0.0
      %v731 = vadd.f32 %v728, %v730
      %732 = vst [vmem:[%s184] sm:$0xff] %v731
      %s733 = smul.u32 32, %s15
      %p734 = scmp.lt.s32.totalorder %s733, 63
      %s735 = scalar_select %p734, %s733, 63
      %s736 = smul.addr %s735, 4
      %s737 = scalar_lea.vmem %s2, %s736
      %p738 = scmp.lt.s32.totalorder %s15, 1
      %s739 = scalar_select %p738, %s15, 1
      %s740 = smul.addr %s739, 8
      %s741 = scalar_lea.vmem %s3, %s740
      // Predicated region
      $region29: #{bottleneck_forward.4} parent=27 // pred_check
        %p742 = pneg %p80
      $region30: #{bottleneck_forward.4} parent=27 // pred_check_branch
        %744 = sbr.rel (%p742) target = $region32
      $region31: #{bottleneck_forward.4} parent=27 // pred_region
        %s745 = smul.u32 32, %s15
      $region32: #{bottleneck_forward.4} parent=27 // pred_fallthru
        _
      // Predicated region
      $region33: #{bottleneck_forward.4} parent=27 // pred_check
        %p746 = pneg %p106
      $region34: #{bottleneck_forward.4} parent=27 // pred_check_branch
        %748 = sbr.rel (%p746) target = $region36
      $region35: #{bottleneck_forward.4} parent=27 // pred_region
        _
      $region36: #{bottleneck_forward.4} parent=27 // pred_fallthru
        _
    $region28: #{bottleneck_forward.4} parent=5 // pred_fallthru
      _
    %p749 = scmp.le.s32.totalorder 2, %s10
    // Predicated region
    $region37: #{bottleneck_forward.4} parent=5 // pred_check
      %p750 = pneg %p749
    $region38: #{bottleneck_forward.4} parent=5 // pred_check_branch
      %752 = sbr.rel (%p750) target = $region40
    $region39: #{bottleneck_forward.4} parent=5 // pred_region
      %s753 = ssub.s32 %s10, 2
      // Predicated region
      $region41: #{bottleneck_forward.4} parent=39 // pred_check
        %p754 = pneg %p86
      $region42: #{bottleneck_forward.4} parent=39 // pred_check_branch
        %756 = sbr.rel (%p754) target = $region44
      $region43: #{bottleneck_forward.4} parent=39 // pred_region
        %s757 = smul.u32 32, %s16
        %p758 = scmp.lt.s32.totalorder %s757, 63
        %s759 = scalar_select %p758, %s757, 63
        %s760 = smul.addr %s759, 4
        %s761 = scalar_lea.vmem %s2, %s760
      $region44: #{bottleneck_forward.4} parent=39 // pred_fallthru
        _
      // Predicated region
      $region45: #{bottleneck_forward.4} parent=39 // pred_check
        %p762 = pneg %p112
      $region46: #{bottleneck_forward.4} parent=39 // pred_check_branch
        %764 = sbr.rel (%p762) target = $region48
      $region47: #{bottleneck_forward.4} parent=39 // pred_region
        %p765 = scmp.lt.s32.totalorder %s16, 1
        %s766 = scalar_select %p765, %s16, 1
        %s767 = smul.addr %s766, 8
        %s768 = scalar_lea.vmem %s3, %s767
      $region48: #{bottleneck_forward.4} parent=39 // pred_fallthru
        _
    $region40: #{bottleneck_forward.4} parent=5 // pred_fallthru
      _
  $region6: #{bottleneck_forward.4} parent=0 // loop_footer
    %s14 = sadd.s32 1, %s10
  $region7: #{bottleneck_forward.4} parent=0 // loop_footer_branch
    %9 = sbr.rel target = $region3
  $region8: #{bottleneck_forward.4} parent=0 // loop_exit
    _

// kernel: bottleneck_forward.6
$region0: #{bottleneck_forward.6}
  #allocation0 [shape = 'u32[]', space=smem, size = 0x4, offset = 0x4, fixed_abs, tag = 'smem constant byte address 0x4 - core index']
  #allocation1 [shape = 'u32[144,128]{1,0:T(1,128)}', space=vmem, size = 0x12000, scoped, tag = 'internal scratch']
  %s0 = inlined_call_operand.vmem [shape: bf16[512,128], index: 0, kind: input, shape index: {}]
  %s1 = inlined_call_operand.vmem [shape: f32[1,128], index: 1, kind: input, shape index: {}]
  %s2 = inlined_call_operand.vmem [shape: f32[1,128], index: 2, kind: input, shape index: {}]
  %s3 = inlined_call_operand.vmem [shape: bf16[128,128], index: 3, kind: input, shape index: {}]
  %s4 = inlined_call_operand.vmem [shape: f32[512,128], index: 4, kind: output, shape index: {0}]
  %s5 = inlined_call_operand.vmem [shape: f32[2,8,128], index: 5, kind: output, shape index: {1}]
  %6 = xla_tuple %s4, %s5
  %s7 = sld [smem:[#allocation0]]
  $region57: #{bottleneck_forward.6} parent=0
    _
  %s9 = ssub.s32 1, %s7
  %s10 = scalar_select 0, %s9, %s7
  loop: start=0, step=1, limit=4
  $region2: #{bottleneck_forward.6} parent=0 // loop_pre_header
    _
  $region3: #{bottleneck_forward.6} parent=0 // loop_header
    %s12 = sphi 0, %s16
    %p13 = scmp.ge.s32.totalorder %s12, 4
    %s22 = sphi 0, %s24
    %s25 = sphi 0, %s22
    %s26 = sphi 0, %s25
    %s42 = sphi 0, %s26
    %s46 = sphi 0, %s46
    %s48 = sphi 0, %s46
    %s49 = sphi 0, %s48
    %s63 = sphi 0, %s49
    %s67 = sphi 0, %s67
    %s69 = sphi 0, %s67
    %s70 = sphi 0, %s69
    %s84 = sphi 0, %s70
    %s88 = sphi 0, %s88
    %s90 = sphi 0, %s88
    %s91 = sphi 0, %s90
    %s105 = sphi 0, %s91
    %s111 = sphi 0, %s113
    %s114 = sphi 0, %s111
    %s115 = sphi 0, %s114
    %s131 = sphi 0, %s115
    %s137 = sphi 0, %s139
    %s140 = sphi 0, %s137
    %s141 = sphi 0, %s140
    %s157 = sphi 0, %s141
  $region4: #{bottleneck_forward.6} parent=0 // loop_header_branch
    %15 = sbr.rel (%p13) target = $region8
  $region5: #{bottleneck_forward.6} parent=0 // loop_body
    %s17 = ssub.s32 %s12, 1
    %s18 = ssub.s32 %s12, 2
    %s19 = sadd.s32 %s12, 1
    %s20 = ssub.s32 %s12, %s19
    %p21 = scmp.eq.s32.totalorder %s20, 0
    %s23 = sadd.s32 %s22, 1
    %s24 = scalar_select %p21, %s22, %s23
    %p27 = pneg %p21
    %p28 = scmp.eq.s32.totalorder %s12, 1
    %p29 = por %p27, %p28
    %p30 = scmp.ne.s32.totalorder %s22, %s25
    %p31 = scmp.eq.s32.totalorder %s12, 0
    %p32 = por %p30, %p31
    %p33 = scmp.ne.s32.totalorder %s22, %s25
    %p34 = scmp.eq.s32.totalorder %s17, 1
    %p35 = por %p33, %p34
    %p36 = scmp.ne.s32.totalorder %s25, %s26
    %p37 = scmp.eq.s32.totalorder %s17, 0
    %p38 = por %p36, %p37
    %p39 = scmp.ne.s32.totalorder %s25, %s26
    %p40 = scmp.eq.s32.totalorder %s18, 1
    %p41 = por %p39, %p40
    %p43 = scmp.ne.s32.totalorder %s26, %s42
    %p44 = scmp.eq.s32.totalorder %s18, 0
    %p45 = por %p43, %p44
    %s47 = sadd.s32 %s46, 1
    %p50 = scmp.eq.s32.totalorder %s12, 1
    %p51 = scmp.ne.s32.totalorder %s46, %s48
    %p52 = scmp.eq.s32.totalorder %s12, 0
    %p53 = por %p51, %p52
    %p54 = scmp.ne.s32.totalorder %s46, %s48
    %p55 = scmp.eq.s32.totalorder %s17, 1
    %p56 = por %p54, %p55
    %p57 = scmp.ne.s32.totalorder %s48, %s49
    %p58 = scmp.eq.s32.totalorder %s17, 0
    %p59 = por %p57, %p58
    %p60 = scmp.ne.s32.totalorder %s48, %s49
    %p61 = scmp.eq.s32.totalorder %s18, 1
    %p62 = por %p60, %p61
    %p64 = scmp.ne.s32.totalorder %s49, %s63
    %p65 = scmp.eq.s32.totalorder %s18, 0
    %p66 = por %p64, %p65
    %s68 = sadd.s32 %s67, 1
    %p71 = scmp.eq.s32.totalorder %s12, 1
    %p72 = scmp.ne.s32.totalorder %s67, %s69
    %p73 = scmp.eq.s32.totalorder %s12, 0
    %p74 = por %p72, %p73
    %p75 = scmp.ne.s32.totalorder %s67, %s69
    %p76 = scmp.eq.s32.totalorder %s17, 1
    %p77 = por %p75, %p76
    %p78 = scmp.ne.s32.totalorder %s69, %s70
    %p79 = scmp.eq.s32.totalorder %s17, 0
    %p80 = por %p78, %p79
    %p81 = scmp.ne.s32.totalorder %s69, %s70
    %p82 = scmp.eq.s32.totalorder %s18, 1
    %p83 = por %p81, %p82
    %p85 = scmp.ne.s32.totalorder %s70, %s84
    %p86 = scmp.eq.s32.totalorder %s18, 0
    %p87 = por %p85, %p86
    %s89 = sadd.s32 %s88, 1
    %p92 = scmp.eq.s32.totalorder %s12, 1
    %p93 = scmp.ne.s32.totalorder %s88, %s90
    %p94 = scmp.eq.s32.totalorder %s12, 0
    %p95 = por %p93, %p94
    %p96 = scmp.ne.s32.totalorder %s88, %s90
    %p97 = scmp.eq.s32.totalorder %s17, 1
    %p98 = por %p96, %p97
    %p99 = scmp.ne.s32.totalorder %s90, %s91
    %p100 = scmp.eq.s32.totalorder %s17, 0
    %p101 = por %p99, %p100
    %p102 = scmp.ne.s32.totalorder %s90, %s91
    %p103 = scmp.eq.s32.totalorder %s18, 1
    %p104 = por %p102, %p103
    %p106 = scmp.ne.s32.totalorder %s91, %s105
    %p107 = scmp.eq.s32.totalorder %s18, 0
    %p108 = por %p106, %p107
    %s109 = ssub.s32 %s12, %s19
    %p110 = scmp.eq.s32.totalorder %s109, 0
    %s112 = sadd.s32 %s111, 1
    %s113 = scalar_select %p110, %s111, %s112
    %p116 = pneg %p110
    %p117 = scmp.eq.s32.totalorder %s12, 1
    %p118 = por %p116, %p117
    %p119 = scmp.ne.s32.totalorder %s111, %s114
    %p120 = scmp.eq.s32.totalorder %s12, 0
    %p121 = por %p119, %p120
    %p122 = scmp.ne.s32.totalorder %s111, %s114
    %p123 = scmp.eq.s32.totalorder %s17, 1
    %p124 = por %p122, %p123
    %p125 = scmp.ne.s32.totalorder %s114, %s115
    %p126 = scmp.eq.s32.totalorder %s17, 0
    %p127 = por %p125, %p126
    %p128 = scmp.ne.s32.totalorder %s114, %s115
    %p129 = scmp.eq.s32.totalorder %s18, 1
    %p130 = por %p128, %p129
    %p132 = scmp.ne.s32.totalorder %s115, %s131
    %p133 = scmp.eq.s32.totalorder %s18, 0
    %p134 = por %p132, %p133
    %s135 = ssub.s32 %s12, %s19
    %p136 = scmp.eq.s32.totalorder %s135, 0
    %s138 = sadd.s32 %s137, 1
    %s139 = scalar_select %p136, %s137, %s138
    %p142 = pneg %p136
    %p143 = scmp.eq.s32.totalorder %s12, 1
    %p144 = por %p142, %p143
    %p145 = scmp.ne.s32.totalorder %s137, %s140
    %p146 = scmp.eq.s32.totalorder %s12, 0
    %p147 = por %p145, %p146
    %p148 = scmp.ne.s32.totalorder %s137, %s140
    %p149 = scmp.eq.s32.totalorder %s17, 1
    %p150 = por %p148, %p149
    %p151 = scmp.ne.s32.totalorder %s140, %s141
    %p152 = scmp.eq.s32.totalorder %s17, 0
    %p153 = por %p151, %p152
    %p154 = scmp.ne.s32.totalorder %s140, %s141
    %p155 = scmp.eq.s32.totalorder %s18, 1
    %p156 = por %p154, %p155
    %p158 = scmp.ne.s32.totalorder %s141, %s157
    %p159 = scmp.eq.s32.totalorder %s18, 0
    %p160 = por %p158, %p159
    %p161 = scmp.le.s32.totalorder 1, %s12
    %p162 = scmp.lt.s32.totalorder %s12, 3
    %p163 = pnand %p161, %p162
    %p164 = pneg %p163
    // Predicated region
    $region9: #{bottleneck_forward.6} parent=5 // pred_check
      _
    $region10: #{bottleneck_forward.6} parent=5 // pred_check_branch
      %166 = sbr.rel (%p163) target = $region12
    $region11: #{bottleneck_forward.6} parent=5 // pred_region
      %s167 = ssub.s32 %s12, 1
      // Predicated region
      $region13: #{bottleneck_forward.6} parent=11 // pred_check
        %p168 = pneg %p59
      $region14: #{bottleneck_forward.6} parent=11 // pred_check_branch
        %170 = sbr.rel (%p168) target = $region16
      $region15: #{bottleneck_forward.6} parent=11 // pred_region
        _
      $region16: #{bottleneck_forward.6} parent=11 // pred_fallthru
        _
      // Predicated region
      $region17: #{bottleneck_forward.6} parent=11 // pred_check
        %p171 = pneg %p80
      $region18: #{bottleneck_forward.6} parent=11 // pred_check_branch
        %173 = sbr.rel (%p171) target = $region20
      $region19: #{bottleneck_forward.6} parent=11 // pred_region
        _
      $region20: #{bottleneck_forward.6} parent=11 // pred_fallthru
        _
      // Predicated region
      $region21: #{bottleneck_forward.6} parent=11 // pred_check
        %p174 = pneg %p101
      $region22: #{bottleneck_forward.6} parent=11 // pred_check_branch
        %176 = sbr.rel (%p174) target = $region24
      $region23: #{bottleneck_forward.6} parent=11 // pred_region
        _
      $region24: #{bottleneck_forward.6} parent=11 // pred_fallthru
        _
    $region12: #{bottleneck_forward.6} parent=5 // pred_fallthru
      _
    %p177 = scmp.lt.s32.totalorder %s12, 2
    // Predicated region
    $region25: #{bottleneck_forward.6} parent=5 // pred_check
      %p178 = pneg %p177
    $region26: #{bottleneck_forward.6} parent=5 // pred_check_branch
      %180 = sbr.rel (%p178) target = $region28
    $region27: #{bottleneck_forward.6} parent=5 // pred_region
      // Predicated region
      $region29: #{bottleneck_forward.6} parent=27 // pred_check
        %p181 = pneg %p32
      $region30: #{bottleneck_forward.6} parent=27 // pred_check_branch
        %183 = sbr.rel (%p181) target = $region32
      $region31: #{bottleneck_forward.6} parent=27 // pred_region
        %s184 = smul.u32 32, %s12
        %p185 = scmp.lt.s32.totalorder %s184, 63
        %s186 = scalar_select %p185, %s184, 63
        %s187 = smul.addr %s186, 4
        %s188 = scalar_lea.vmem %s0, %s187
        %s189 = smul.u32 32, %s12
      $region32: #{bottleneck_forward.6} parent=27 // pred_fallthru
        _
    $region28: #{bottleneck_forward.6} parent=5 // pred_fallthru
      _
    %p190 = scmp.le.s32.totalorder 1, %s12
    %p191 = scmp.lt.s32.totalorder %s12, 3
    %p192 = pnand %p190, %p191
    %p193 = pneg %p192
    // Predicated region
    $region33: #{bottleneck_forward.6} parent=5 // pred_check
      _
    $region34: #{bottleneck_forward.6} parent=5 // pred_check_branch
      %195 = sbr.rel (%p192) target = $region36
    $region35: #{bottleneck_forward.6} parent=5 // pred_region
      %s196 = ssub.s32 %s12, 1
      %s197 = smul.u32 32, %s17
      %p198 = scmp.lt.s32.totalorder %s197, 63
      %s199 = scalar_select %p198, %s197, 63
      %s200 = smul.addr %s199, 4
      %s201 = scalar_lea.vmem %s0, %s200
      %p202 = pneg %p38
      %p203 = pneg %p35
      %p204 = pneg %p59
      %p205 = pneg %p56
      %p206 = pneg %p80
      %p207 = pneg %p77
      %p208 = pneg %p101
      %p209 = pneg %p98
      %p210 = pneg %p127
      %p211 = pneg %p124
      %s212 = smul.u32 32, %s17
      %p213 = scmp.lt.s32.totalorder %s212, 63
      %s214 = scalar_select %p213, %s212, 63
      %s215 = smul.addr %s214, 8
      %s216 = scalar_lea.vmem %s4, %s215
      %p217 = pneg %p153
      %p218 = pneg %p150
      %p219 = scmp.lt.s32.totalorder %s17, 1
      %s220 = scalar_select %p219, %s17, 1
      %s221 = smul.addr %s220, 8
      %s222 = scalar_lea.vmem %s5, %s221
      %s223 = smul.u32 32, %s17
      %p224 = scmp.lt.s32.totalorder %s223, 63
      %s225 = scalar_select %p224, %s223, 63
      %s226 = smul.addr %s225, 4
      %s227 = scalar_lea.vmem %s0, %s226
      %s228 = smul.u32 32, %s17
      %s229 = smul.u32 32, %s17
      %p230 = scmp.lt.s32.totalorder %s229, 63
      %s231 = scalar_select %p230, %s229, 63
      %s232 = smul.addr %s231, 8
      %s233 = scalar_lea.vmem %s4, %s232
      %s234 = smul.u32 32, %s17
      %p235 = scmp.lt.s32.totalorder %s17, 1
      %s236 = scalar_select %p235, %s17, 1
      %s237 = smul.addr %s236, 8
      %s238 = scalar_lea.vmem %s5, %s237
      %v240 = vld [vmem:[%s227] sm:$0xf]
      %v241 = vld [vmem:[%s227 + $0x4] sm:$0xf]
      %v242 = vld [vmem:[%s227 + $0x8] sm:$0xf]
      %v243 = vld [vmem:[%s227 + $0xc] sm:$0xf]
      %v244 = vld [vmem:[%s227 + $0x10] sm:$0xf]
      %v245 = vld [vmem:[%s227 + $0x14] sm:$0xf]
      %v246 = vld [vmem:[%s227 + $0x18] sm:$0xf]
      %v247 = vld [vmem:[%s227 + $0x1c] sm:$0xf]
      %v248 = vld [vmem:[%s227 + $0x20] sm:$0xf]
      %v249 = vld [vmem:[%s227 + $0x24] sm:$0xf]
      %v250 = vld [vmem:[%s227 + $0x28] sm:$0xf]
      %v251 = vld [vmem:[%s227 + $0x2c] sm:$0xf]
      %v252 = vld [vmem:[%s227 + $0x30] sm:$0xf]
      %v253 = vld [vmem:[%s227 + $0x34] sm:$0xf]
      %v254 = vld [vmem:[%s227 + $0x38] sm:$0xf]
      %v255 = vld [vmem:[%s227 + $0x3c] sm:$0xf]
      %v256 = vld [vmem:[%s227 + $0x40] sm:$0xf]
      %v257 = vld [vmem:[%s227 + $0x44] sm:$0xf]
      %v258 = vld [vmem:[%s227 + $0x48] sm:$0xf]
      %v259 = vld [vmem:[%s227 + $0x4c] sm:$0xf]
      %v260 = vld [vmem:[%s227 + $0x50] sm:$0xf]
      %v261 = vld [vmem:[%s227 + $0x54] sm:$0xf]
      %v262 = vld [vmem:[%s227 + $0x58] sm:$0xf]
      %v263 = vld [vmem:[%s227 + $0x5c] sm:$0xf]
      %v264 = vld [vmem:[%s227 + $0x60] sm:$0xf]
      %v265 = vld [vmem:[%s227 + $0x64] sm:$0xf]
      %v266 = vld [vmem:[%s227 + $0x68] sm:$0xf]
      %v267 = vld [vmem:[%s227 + $0x6c] sm:$0xf]
      %v268 = vld [vmem:[%s227 + $0x70] sm:$0xf]
      %v269 = vld [vmem:[%s227 + $0x74] sm:$0xf]
      %v270 = vld [vmem:[%s227 + $0x78] sm:$0xf]
      %v271 = vld [vmem:[%s227 + $0x7c] sm:$0xf]
      %v272 = vunpack.c.l.bf16 %v240
      %v273 = vunpack.c.l.bf16 %v241
      %v274 = vunpack.c.l.bf16 %v242
      %v275 = vunpack.c.l.bf16 %v243
      %v276 = vunpack.c.l.bf16 %v244
      %v277 = vunpack.c.l.bf16 %v245
      %v278 = vunpack.c.l.bf16 %v246
      %v279 = vunpack.c.l.bf16 %v247
      %v280 = vunpack.c.l.bf16 %v248
      %v281 = vunpack.c.l.bf16 %v249
      %v282 = vunpack.c.l.bf16 %v250
      %v283 = vunpack.c.l.bf16 %v251
      %v284 = vunpack.c.l.bf16 %v252
      %v285 = vunpack.c.l.bf16 %v253
      %v286 = vunpack.c.l.bf16 %v254
      %v287 = vunpack.c.l.bf16 %v255
      %v288 = vunpack.c.l.bf16 %v256
      %v289 = vunpack.c.l.bf16 %v257
      %v290 = vunpack.c.l.bf16 %v258
      %v291 = vunpack.c.l.bf16 %v259
      %v292 = vunpack.c.l.bf16 %v260
      %v293 = vunpack.c.l.bf16 %v261
      %v294 = vunpack.c.l.bf16 %v262
      %v295 = vunpack.c.l.bf16 %v263
      %v296 = vunpack.c.l.bf16 %v264
      %v297 = vunpack.c.l.bf16 %v265
      %v298 = vunpack.c.l.bf16 %v266
      %v299 = vunpack.c.l.bf16 %v267
      %v300 = vunpack.c.l.bf16 %v268
      %v301 = vunpack.c.l.bf16 %v269
      %v302 = vunpack.c.l.bf16 %v270
      %v303 = vunpack.c.l.bf16 %v271
      %v304 = vld [vmem:[%s1] sm:$0x1]
      %v306 = vlaneseq
      %v307 = vshrl.u32 %v306, 7
      %v308 = vsub.s32 0, %v307
      %v309 = vrot.slane %v304, %v308
      %v311 = vmul.f32 %v272, %v309
      %v312 = vmul.f32 %v273, %v309
      %v313 = vmul.f32 %v274, %v309
      %v314 = vmul.f32 %v275, %v309
      %v315 = vmul.f32 %v276, %v309
      %v316 = vmul.f32 %v277, %v309
      %v317 = vmul.f32 %v278, %v309
      %v318 = vmul.f32 %v279, %v309
      %v319 = vmul.f32 %v280, %v309
      %v320 = vmul.f32 %v281, %v309
      %v321 = vmul.f32 %v282, %v309
      %v322 = vmul.f32 %v283, %v309
      %v323 = vmul.f32 %v284, %v309
      %v324 = vmul.f32 %v285, %v309
      %v325 = vmul.f32 %v286, %v309
      %v326 = vmul.f32 %v287, %v309
      %v327 = vmul.f32 %v288, %v309
      %v328 = vmul.f32 %v289, %v309
      %v329 = vmul.f32 %v290, %v309
      %v330 = vmul.f32 %v291, %v309
      %v331 = vmul.f32 %v292, %v309
      %v332 = vmul.f32 %v293, %v309
      %v333 = vmul.f32 %v294, %v309
      %v334 = vmul.f32 %v295, %v309
      %v335 = vmul.f32 %v296, %v309
      %v336 = vmul.f32 %v297, %v309
      %v337 = vmul.f32 %v298, %v309
      %v338 = vmul.f32 %v299, %v309
      %v339 = vmul.f32 %v300, %v309
      %v340 = vmul.f32 %v301, %v309
      %v341 = vmul.f32 %v302, %v309
      %v342 = vmul.f32 %v303, %v309
      %v343 = vld [vmem:[%s2] sm:$0x1]
      %v345 = vlaneseq
      %v346 = vshrl.u32 %v345, 7
      %v347 = vsub.s32 0, %v346
      %v348 = vrot.slane %v343, %v347
      %v350 = vadd.f32 %v311, %v348
      %v351 = vadd.f32 %v312, %v348
      %v352 = vadd.f32 %v313, %v348
      %v353 = vadd.f32 %v314, %v348
      %v354 = vadd.f32 %v315, %v348
      %v355 = vadd.f32 %v316, %v348
      %v356 = vadd.f32 %v317, %v348
      %v357 = vadd.f32 %v318, %v348
      %v358 = vadd.f32 %v319, %v348
      %v359 = vadd.f32 %v320, %v348
      %v360 = vadd.f32 %v321, %v348
      %v361 = vadd.f32 %v322, %v348
      %v362 = vadd.f32 %v323, %v348
      %v363 = vadd.f32 %v324, %v348
      %v364 = vadd.f32 %v325, %v348
      %v365 = vadd.f32 %v326, %v348
      %v366 = vadd.f32 %v327, %v348
      %v367 = vadd.f32 %v328, %v348
      %v368 = vadd.f32 %v329, %v348
      %v369 = vadd.f32 %v330, %v348
      %v370 = vadd.f32 %v331, %v348
      %v371 = vadd.f32 %v332, %v348
      %v372 = vadd.f32 %v333, %v348
      %v373 = vadd.f32 %v334, %v348
      %v374 = vadd.f32 %v335, %v348
      %v375 = vadd.f32 %v336, %v348
      %v376 = vadd.f32 %v337, %v348
      %v377 = vadd.f32 %v338, %v348
      %v378 = vadd.f32 %v339, %v348
      %v379 = vadd.f32 %v340, %v348
      %v380 = vadd.f32 %v341, %v348
      %v381 = vadd.f32 %v342, %v348
      %v382 = vmax.f32 %v350, 0.0
      %v383 = vmax.f32 %v351, 0.0
      %v384 = vmax.f32 %v352, 0.0
      %v385 = vmax.f32 %v353, 0.0
      %v386 = vmax.f32 %v354, 0.0
      %v387 = vmax.f32 %v355, 0.0
      %v388 = vmax.f32 %v356, 0.0
      %v389 = vmax.f32 %v357, 0.0
      %v390 = vmax.f32 %v358, 0.0
      %v391 = vmax.f32 %v359, 0.0
      %v392 = vmax.f32 %v360, 0.0
      %v393 = vmax.f32 %v361, 0.0
      %v394 = vmax.f32 %v362, 0.0
      %v395 = vmax.f32 %v363, 0.0
      %v396 = vmax.f32 %v364, 0.0
      %v397 = vmax.f32 %v365, 0.0
      %v398 = vmax.f32 %v366, 0.0
      %v399 = vmax.f32 %v367, 0.0
      %v400 = vmax.f32 %v368, 0.0
      %v401 = vmax.f32 %v369, 0.0
      %v402 = vmax.f32 %v370, 0.0
      %v403 = vmax.f32 %v371, 0.0
      %v404 = vmax.f32 %v372, 0.0
      %v405 = vmax.f32 %v373, 0.0
      %v406 = vmax.f32 %v374, 0.0
      %v407 = vmax.f32 %v375, 0.0
      %v408 = vmax.f32 %v376, 0.0
      %v409 = vmax.f32 %v377, 0.0
      %v410 = vmax.f32 %v378, 0.0
      %v411 = vmax.f32 %v379, 0.0
      %v412 = vmax.f32 %v380, 0.0
      %v413 = vmax.f32 %v381, 0.0
      %v414 = vpack.c.bf16 %v383, %v382
      %v415 = vpack.c.bf16 %v385, %v384
      %v416 = vpack.c.bf16 %v387, %v386
      %v417 = vpack.c.bf16 %v389, %v388
      %v418 = vpack.c.bf16 %v391, %v390
      %v419 = vpack.c.bf16 %v393, %v392
      %v420 = vpack.c.bf16 %v395, %v394
      %v421 = vpack.c.bf16 %v397, %v396
      %v422 = vpack.c.bf16 %v399, %v398
      %v423 = vpack.c.bf16 %v401, %v400
      %v424 = vpack.c.bf16 %v403, %v402
      %v425 = vpack.c.bf16 %v405, %v404
      %v426 = vpack.c.bf16 %v407, %v406
      %v427 = vpack.c.bf16 %v409, %v408
      %v428 = vpack.c.bf16 %v411, %v410
      %v429 = vpack.c.bf16 %v413, %v412
      %v430 = vld [vmem:[%s3] sm:$0xf]
      %v431 = vld [vmem:[%s3 + $0x4] sm:$0xf]
      %v432 = vld [vmem:[%s3 + $0x8] sm:$0xf]
      %v433 = vld [vmem:[%s3 + $0xc] sm:$0xf]
      %v434 = vld [vmem:[%s3 + $0x10] sm:$0xf]
      %v435 = vld [vmem:[%s3 + $0x14] sm:$0xf]
      %v436 = vld [vmem:[%s3 + $0x18] sm:$0xf]
      %v437 = vld [vmem:[%s3 + $0x1c] sm:$0xf]
      %v438 = vld [vmem:[%s3 + $0x20] sm:$0xf]
      %v439 = vld [vmem:[%s3 + $0x24] sm:$0xf]
      %v440 = vld [vmem:[%s3 + $0x28] sm:$0xf]
      %v441 = vld [vmem:[%s3 + $0x2c] sm:$0xf]
      %v442 = vld [vmem:[%s3 + $0x30] sm:$0xf]
      %v443 = vld [vmem:[%s3 + $0x34] sm:$0xf]
      %v444 = vld [vmem:[%s3 + $0x38] sm:$0xf]
      %v445 = vld [vmem:[%s3 + $0x3c] sm:$0xf]
      %v462 = vunpack.c.l.b16 %v430
      %v463 = vunpack.c.l.b16 %v431
      %v464 = vunpack.c.l.b16 %v432
      %v465 = vunpack.c.l.b16 %v433
      %v466 = vunpack.c.l.b16 %v434
      %v467 = vunpack.c.l.b16 %v435
      %v468 = vunpack.c.l.b16 %v436
      %v469 = vunpack.c.l.b16 %v437
      %v470 = vunpack.c.l.b16 %v438
      %v471 = vunpack.c.l.b16 %v439
      %v472 = vunpack.c.l.b16 %v440
      %v473 = vunpack.c.l.b16 %v441
      %v474 = vunpack.c.l.b16 %v442
      %v475 = vunpack.c.l.b16 %v443
      %v476 = vunpack.c.l.b16 %v444
      %v477 = vunpack.c.l.b16 %v445
      %v478 = vpack.c.b16 %v463, %v462
      %v479 = vpack.c.b16 %v465, %v464
      %v480 = vpack.c.b16 %v467, %v466
      %v481 = vpack.c.b16 %v469, %v468
      %v482 = vpack.c.b16 %v471, %v470
      %v483 = vpack.c.b16 %v473, %v472
      %v484 = vpack.c.b16 %v475, %v474
      %v485 = vpack.c.b16 %v477, %v476
      %494 = vmatprep.subr.bf16.mxu0 0
      %495 = vmatpush1.bf16.msra.mxu0 %v478
      %496 = vmatprep.subr.bf16.mxu0 0
      %497 = vmatpush1.bf16.msra.mxu0 %v479
      %498 = vmatprep.subr.bf16.mxu0 0
      %499 = vmatpush1.bf16.msra.mxu0 %v480
      %500 = vmatprep.subr.bf16.mxu0 0
      %501 = vmatpush1.bf16.msra.mxu0 %v481
      %502 = vmatprep.subr.bf16.mxu0 0
      %503 = vmatpush1.bf16.msra.mxu0 %v482
      %504 = vmatprep.subr.bf16.mxu0 0
      %505 = vmatpush1.bf16.msra.mxu0 %v483
      %506 = vmatprep.subr.bf16.mxu0 0
      %507 = vmatpush1.bf16.msra.mxu0 %v484
      %508 = vmatprep.subr.bf16.mxu0 0
      %509 = vmatpush1.bf16.msra.mxu0 %v485
      %510 = vmatprep.subr.bf16.mxu0 0
      %511 = vmatpush1.bf16.msra.mxu0 0
      %512 = vmatprep.subr.bf16.mxu0 0
      %513 = vmatpush1.bf16.msra.mxu0 0
      %514 = vmatprep.subr.bf16.mxu0 0
      %515 = vmatpush1.bf16.msra.mxu0 0
      %516 = vmatprep.subr.bf16.mxu0 0
      %517 = vmatpush1.bf16.msra.mxu0 0
      %518 = vmatprep.subr.bf16.mxu0 0
      %519 = vmatpush1.bf16.msra.mxu0 0
      %520 = vmatprep.subr.bf16.mxu0 0
      %521 = vmatpush1.bf16.msra.mxu0 0
      %522 = vmatprep.subr.bf16.mxu0 0
      %523 = vmatpush1.bf16.msra.mxu0 0
      %524 = vmatprep.subr.bf16.mxu0 0
      %525 = vmatpush1.bf16.msra.mxu0 0
      %526 = vmatprep.mubr.bf16.mxu0 0
      %527 = vmatmul.mubr.bf16.gmra.mrb[0].mxu0 %v414
      %v528 = vpop.f32.mrb[0].mxu0
      %v529 = vadd.f32 0.0, %v528
      %v530 = vpop.f32.mrb[0].mxu0
      %v531 = vpop.f32.mrb[0].mxu0
      %v532 = vadd.f32 0.0, %v531
      %v533 = vpop.f32.mrb[0].mxu0
      %534 = vmatprep.mubr.bf16.mxu0 0
      %535 = vmatmul.mubr.bf16.gmra.mrb[0].mxu0 %v415
      %v536 = vpop.f32.mrb[0].mxu0
      %v537 = vadd.f32 0.0, %v536
      %v538 = vpop.f32.mrb[0].mxu0
      %v539 = vpop.f32.mrb[0].mxu0
      %v540 = vadd.f32 0.0, %v539
      %v541 = vpop.f32.mrb[0].mxu0
      %542 = vmatprep.mubr.bf16.mxu0 0
      %543 = vmatmul.mubr.bf16.gmra.mrb[0].mxu0 %v416
      %v544 = vpop.f32.mrb[0].mxu0
      %v545 = vadd.f32 0.0, %v544
      %v546 = vpop.f32.mrb[0].mxu0
      %v547 = vpop.f32.mrb[0].mxu0
      %v548 = vadd.f32 0.0, %v547
      %v549 = vpop.f32.mrb[0].mxu0
      %550 = vmatprep.mubr.bf16.mxu0 0
      %551 = vmatmul.mubr.bf16.gmra.mrb[0].mxu0 %v417
      %v552 = vpop.f32.mrb[0].mxu0
      %v553 = vadd.f32 0.0, %v552
      %v554 = vpop.f32.mrb[0].mxu0
      %v555 = vpop.f32.mrb[0].mxu0
      %v556 = vadd.f32 0.0, %v555
      %v557 = vpop.f32.mrb[0].mxu0
      %558 = vmatprep.mubr.bf16.mxu0 0
      %559 = vmatmul.mubr.bf16.gmra.mrb[0].mxu0 %v418
      %v560 = vpop.f32.mrb[0].mxu0
      %v561 = vadd.f32 0.0, %v560
      %v562 = vpop.f32.mrb[0].mxu0
      %v563 = vpop.f32.mrb[0].mxu0
      %v564 = vadd.f32 0.0, %v563
      %v565 = vpop.f32.mrb[0].mxu0
      %566 = vmatprep.mubr.bf16.mxu0 0
      %567 = vmatmul.mubr.bf16.gmra.mrb[0].mxu0 %v419
      %v568 = vpop.f32.mrb[0].mxu0
      %v569 = vadd.f32 0.0, %v568
      %v570 = vpop.f32.mrb[0].mxu0
      %v571 = vpop.f32.mrb[0].mxu0
      %v572 = vadd.f32 0.0, %v571
      %v573 = vpop.f32.mrb[0].mxu0
      %574 = vmatprep.mubr.bf16.mxu0 0
      %575 = vmatmul.mubr.bf16.gmra.mrb[0].mxu0 %v420
      %v576 = vpop.f32.mrb[0].mxu0
      %v577 = vadd.f32 0.0, %v576
      %v578 = vpop.f32.mrb[0].mxu0
      %v579 = vpop.f32.mrb[0].mxu0
      %v580 = vadd.f32 0.0, %v579
      %v581 = vpop.f32.mrb[0].mxu0
      %582 = vmatprep.mubr.bf16.mxu0 0
      %583 = vmatmul.mubr.bf16.gmra.mrb[0].mxu0 %v421
      %v584 = vpop.f32.mrb[0].mxu0
      %v585 = vadd.f32 0.0, %v584
      %v586 = vpop.f32.mrb[0].mxu0
      %v587 = vpop.f32.mrb[0].mxu0
      %v588 = vadd.f32 0.0, %v587
      %v589 = vpop.f32.mrb[0].mxu0
      %590 = vmatprep.mubr.bf16.mxu0 0
      %591 = vmatmul.mubr.bf16.gmra.mrb[0].mxu0 %v422
      %v592 = vpop.f32.mrb[0].mxu0
      %v593 = vadd.f32 0.0, %v592
      %v594 = vpop.f32.mrb[0].mxu0
      %v595 = vpop.f32.mrb[0].mxu0
      %v596 = vadd.f32 0.0, %v595
      %v597 = vpop.f32.mrb[0].mxu0
      %598 = vmatprep.mubr.bf16.mxu0 0
      %599 = vmatmul.mubr.bf16.gmra.mrb[0].mxu0 %v423
      %v600 = vpop.f32.mrb[0].mxu0
      %v601 = vadd.f32 0.0, %v600
      %v602 = vpop.f32.mrb[0].mxu0
      %v603 = vpop.f32.mrb[0].mxu0
      %v604 = vadd.f32 0.0, %v603
      %v605 = vpop.f32.mrb[0].mxu0
      %606 = vmatprep.mubr.bf16.mxu0 0
      %607 = vmatmul.mubr.bf16.gmra.mrb[0].mxu0 %v424
      %v608 = vpop.f32.mrb[0].mxu0
      %v609 = vadd.f32 0.0, %v608
      %v610 = vpop.f32.mrb[0].mxu0
      %v611 = vpop.f32.mrb[0].mxu0
      %v612 = vadd.f32 0.0, %v611
      %v613 = vpop.f32.mrb[0].mxu0
      %614 = vmatprep.mubr.bf16.mxu0 0
      %615 = vmatmul.mubr.bf16.gmra.mrb[0].mxu0 %v425
      %v616 = vpop.f32.mrb[0].mxu0
      %v617 = vadd.f32 0.0, %v616
      %v618 = vpop.f32.mrb[0].mxu0
      %v619 = vpop.f32.mrb[0].mxu0
      %v620 = vadd.f32 0.0, %v619
      %v621 = vpop.f32.mrb[0].mxu0
      %622 = vmatprep.mubr.bf16.mxu0 0
      %623 = vmatmul.mubr.bf16.gmra.mrb[0].mxu0 %v426
      %v624 = vpop.f32.mrb[0].mxu0
      %v625 = vadd.f32 0.0, %v624
      %v626 = vpop.f32.mrb[0].mxu0
      %v627 = vpop.f32.mrb[0].mxu0
      %v628 = vadd.f32 0.0, %v627
      %v629 = vpop.f32.mrb[0].mxu0
      %630 = vmatprep.mubr.bf16.mxu0 0
      %631 = vmatmul.mubr.bf16.gmra.mrb[0].mxu0 %v427
      %v632 = vpop.f32.mrb[0].mxu0
      %v633 = vadd.f32 0.0, %v632
      %v634 = vpop.f32.mrb[0].mxu0
      %v635 = vpop.f32.mrb[0].mxu0
      %v636 = vadd.f32 0.0, %v635
      %v637 = vpop.f32.mrb[0].mxu0
      %638 = vmatprep.mubr.bf16.mxu0 0
      %639 = vmatmul.mubr.bf16.gmra.mrb[0].mxu0 %v428
      %v640 = vpop.f32.mrb[0].mxu0
      %v641 = vadd.f32 0.0, %v640
      %v642 = vpop.f32.mrb[0].mxu0
      %v643 = vpop.f32.mrb[0].mxu0
      %v644 = vadd.f32 0.0, %v643
      %v645 = vpop.f32.mrb[0].mxu0
      %646 = vmatprep.mubr.bf16.mxu0 0
      %647 = vmatmul.mubr.bf16.gmra.mrb[0].mxu0 %v429
      %v648 = vpop.f32.mrb[0].mxu0
      %v649 = vadd.f32 0.0, %v648
      %v650 = vpop.f32.mrb[0].mxu0
      %v651 = vpop.f32.mrb[0].mxu0
      %v652 = vadd.f32 0.0, %v651
      %v653 = vpop.f32.mrb[0].mxu0
      %654 = vdwg.mxu0
      %655 = vst [vmem:[%s233] sm:$0xff] %v529
      %656 = vst [vmem:[%s233 + $0x8] sm:$0xff] %v532
      %657 = vst [vmem:[%s233 + $0x10] sm:$0xff] %v537
      %658 = vst [vmem:[%s233 + $0x18] sm:$0xff] %v540
      %659 = vst [vmem:[%s233 + $0x20] sm:$0xff] %v545
      %660 = vst [vmem:[%s233 + $0x28] sm:$0xff] %v548
      %661 = vst [vmem:[%s233 + $0x30] sm:$0xff] %v553
      %662 = vst [vmem:[%s233 + $0x38] sm:$0xff] %v556
      %663 = vst [vmem:[%s233 + $0x40] sm:$0xff] %v561
      %664 = vst [vmem:[%s233 + $0x48] sm:$0xff] %v564
      %665 = vst [vmem:[%s233 + $0x50] sm:$0xff] %v569
      %666 = vst [vmem:[%s233 + $0x58] sm:$0xff] %v572
      %667 = vst [vmem:[%s233 + $0x60] sm:$0xff] %v577
      %668 = vst [vmem:[%s233 + $0x68] sm:$0xff] %v580
      %669 = vst [vmem:[%s233 + $0x70] sm:$0xff] %v585
      %670 = vst [vmem:[%s233 + $0x78] sm:$0xff] %v588
      %671 = vst [vmem:[%s233 + $0x80] sm:$0xff] %v593
      %672 = vst [vmem:[%s233 + $0x88] sm:$0xff] %v596
      %673 = vst [vmem:[%s233 + $0x90] sm:$0xff] %v601
      %674 = vst [vmem:[%s233 + $0x98] sm:$0xff] %v604
      %675 = vst [vmem:[%s233 + $0xa0] sm:$0xff] %v609
      %676 = vst [vmem:[%s233 + $0xa8] sm:$0xff] %v612
      %677 = vst [vmem:[%s233 + $0xb0] sm:$0xff] %v617
      %678 = vst [vmem:[%s233 + $0xb8] sm:$0xff] %v620
      %679 = vst [vmem:[%s233 + $0xc0] sm:$0xff] %v625
      %680 = vst [vmem:[%s233 + $0xc8] sm:$0xff] %v628
      %681 = vst [vmem:[%s233 + $0xd0] sm:$0xff] %v633
      %682 = vst [vmem:[%s233 + $0xd8] sm:$0xff] %v636
      %683 = vst [vmem:[%s233 + $0xe0] sm:$0xff] %v641
      %684 = vst [vmem:[%s233 + $0xe8] sm:$0xff] %v644
      %685 = vst [vmem:[%s233 + $0xf0] sm:$0xff] %v649
      %686 = vst [vmem:[%s233 + $0xf8] sm:$0xff] %v652
      %v687 = vadd.f32 %v529, %v532
      %v688 = vadd.f32 %v687, %v537
      %v689 = vadd.f32 %v688, %v540
      %v690 = vadd.f32 %v689, %v545
      %v691 = vadd.f32 %v690, %v548
      %v692 = vadd.f32 %v691, %v553
      %v693 = vadd.f32 %v692, %v556
      %v694 = vadd.f32 %v693, %v561
      %v695 = vadd.f32 %v694, %v564
      %v696 = vadd.f32 %v695, %v569
      %v697 = vadd.f32 %v696, %v572
      %v698 = vadd.f32 %v697, %v577
      %v699 = vadd.f32 %v698, %v580
      %v700 = vadd.f32 %v699, %v585
      %v701 = vadd.f32 %v700, %v588
      %v702 = vadd.f32 %v701, %v593
      %v703 = vadd.f32 %v702, %v596
      %v704 = vadd.f32 %v703, %v601
      %v705 = vadd.f32 %v704, %v604
      %v706 = vadd.f32 %v705, %v609
      %v707 = vadd.f32 %v706, %v612
      %v708 = vadd.f32 %v707, %v617
      %v709 = vadd.f32 %v708, %v620
      %v710 = vadd.f32 %v709, %v625
      %v711 = vadd.f32 %v710, %v628
      %v712 = vadd.f32 %v711, %v633
      %v713 = vadd.f32 %v712, %v636
      %v714 = vadd.f32 %v713, %v641
      %v715 = vadd.f32 %v714, %v644
      %v716 = vadd.f32 %v715, %v649
      %v717 = vadd.f32 %v716, %v652
      %v718 = vrot.slane %v717, 4
      %v719 = vadd.f32 %v717, %v718
      %v720 = vrot.slane %v719, 2
      %v721 = vadd.f32 %v719, %v720
      %v722 = vrot.slane %v721, 1
      %v723 = vadd.f32 %v721, %v722
      %v724 = vmul.f32 %v529, %v529
      %v725 = vmul.f32 %v532, %v532
      %v726 = vmul.f32 %v537, %v537
      %v727 = vmul.f32 %v540, %v540
      %v728 = vmul.f32 %v545, %v545
      %v729 = vmul.f32 %v548, %v548
      %v730 = vmul.f32 %v553, %v553
      %v731 = vmul.f32 %v556, %v556
      %v732 = vmul.f32 %v561, %v561
      %v733 = vmul.f32 %v564, %v564
      %v734 = vmul.f32 %v569, %v569
      %v735 = vmul.f32 %v572, %v572
      %v736 = vmul.f32 %v577, %v577
      %v737 = vmul.f32 %v580, %v580
      %v738 = vmul.f32 %v585, %v585
      %v739 = vmul.f32 %v588, %v588
      %v740 = vmul.f32 %v593, %v593
      %v741 = vmul.f32 %v596, %v596
      %v742 = vmul.f32 %v601, %v601
      %v743 = vmul.f32 %v604, %v604
      %v744 = vmul.f32 %v609, %v609
      %v745 = vmul.f32 %v612, %v612
      %v746 = vmul.f32 %v617, %v617
      %v747 = vmul.f32 %v620, %v620
      %v748 = vmul.f32 %v625, %v625
      %v749 = vmul.f32 %v628, %v628
      %v750 = vmul.f32 %v633, %v633
      %v751 = vmul.f32 %v636, %v636
      %v752 = vmul.f32 %v641, %v641
      %v753 = vmul.f32 %v644, %v644
      %v754 = vmul.f32 %v649, %v649
      %v755 = vmul.f32 %v652, %v652
      %v756 = vadd.f32 %v724, %v725
      %v757 = vadd.f32 %v756, %v726
      %v758 = vadd.f32 %v757, %v727
      %v759 = vadd.f32 %v758, %v728
      %v760 = vadd.f32 %v759, %v729
      %v761 = vadd.f32 %v760, %v730
      %v762 = vadd.f32 %v761, %v731
      %v763 = vadd.f32 %v762, %v732
      %v764 = vadd.f32 %v763, %v733
      %v765 = vadd.f32 %v764, %v734
      %v766 = vadd.f32 %v765, %v735
      %v767 = vadd.f32 %v766, %v736
      %v768 = vadd.f32 %v767, %v737
      %v769 = vadd.f32 %v768, %v738
      %v770 = vadd.f32 %v769, %v739
      %v771 = vadd.f32 %v770, %v740
      %v772 = vadd.f32 %v771, %v741
      %v773 = vadd.f32 %v772, %v742
      %v774 = vadd.f32 %v773, %v743
      %v775 = vadd.f32 %v774, %v744
      %v776 = vadd.f32 %v775, %v745
      %v777 = vadd.f32 %v776, %v746
      %v778 = vadd.f32 %v777, %v747
      %v779 = vadd.f32 %v778, %v748
      %v780 = vadd.f32 %v779, %v749
      %v781 = vadd.f32 %v780, %v750
      %v782 = vadd.f32 %v781, %v751
      %v783 = vadd.f32 %v782, %v752
      %v784 = vadd.f32 %v783, %v753
      %v785 = vadd.f32 %v784, %v754
      %v786 = vadd.f32 %v785, %v755
      %v787 = vrot.slane %v786, 4
      %v788 = vadd.f32 %v786, %v787
      %v789 = vrot.slane %v788, 2
      %v790 = vadd.f32 %v788, %v789
      %v791 = vrot.slane %v790, 1
      %v792 = vadd.f32 %v790, %v791
      %v793 = vlaneseq
      %v794 = vshrl.u32 %v793, 7
      %vm795 = vcmp.eq.s32.totalorder %v794, 0
      %v796 = vsel %vm795, %v723, 0.0
      %vm797 = vcmp.eq.s32.totalorder %v794, 1
      %v798 = vsel %vm797, %v792, 0.0
      %v799 = vadd.f32 %v796, %v798
      %800 = vst [vmem:[%s238] sm:$0xff] %v799
      %s801 = smul.u32 32, %s17
      %p802 = scmp.lt.s32.totalorder %s801, 63
      %s803 = scalar_select %p802, %s801, 63
      %s804 = smul.addr %s803, 8
      %s805 = scalar_lea.vmem %s4, %s804
      %p806 = scmp.lt.s32.totalorder %s17, 1
      %s807 = scalar_select %p806, %s17, 1
      %s808 = smul.addr %s807, 8
      %s809 = scalar_lea.vmem %s5, %s808
      // Predicated region
      $region37: #{bottleneck_forward.6} parent=35 // pred_check
        %p810 = pneg %p124
      $region38: #{bottleneck_forward.6} parent=35 // pred_check_branch
        %812 = sbr.rel (%p810) target = $region40
      $region39: #{bottleneck_forward.6} parent=35 // pred_region
        %s813 = smul.u32 32, %s17
      $region40: #{bottleneck_forward.6} parent=35 // pred_fallthru
        _
      // Predicated region
      $region41: #{bottleneck_forward.6} parent=35 // pred_check
        %p814 = pneg %p150
      $region42: #{bottleneck_forward.6} parent=35 // pred_check_branch
        %816 = sbr.rel (%p814) target = $region44
      $region43: #{bottleneck_forward.6} parent=35 // pred_region
        _
      $region44: #{bottleneck_forward.6} parent=35 // pred_fallthru
        _
    $region36: #{bottleneck_forward.6} parent=5 // pred_fallthru
      _
    %p817 = scmp.le.s32.totalorder 2, %s12
    // Predicated region
    $region45: #{bottleneck_forward.6} parent=5 // pred_check
      %p818 = pneg %p817
    $region46: #{bottleneck_forward.6} parent=5 // pred_check_branch
      %820 = sbr.rel (%p818) target = $region48
    $region47: #{bottleneck_forward.6} parent=5 // pred_region
      %s821 = ssub.s32 %s12, 2
      // Predicated region
      $region49: #{bottleneck_forward.6} parent=47 // pred_check
        %p822 = pneg %p130
      $region50: #{bottleneck_forward.6} parent=47 // pred_check_branch
        %824 = sbr.rel (%p822) target = $region52
      $region51: #{bottleneck_forward.6} parent=47 // pred_region
        %s825 = smul.u32 32, %s18
        %p826 = scmp.lt.s32.totalorder %s825, 63
        %s827 = scalar_select %p826, %s825, 63
        %s828 = smul.addr %s827, 8
        %s829 = scalar_lea.vmem %s4, %s828
      $region52: #{bottleneck_forward.6} parent=47 // pred_fallthru
        _
      // Predicated region
      $region53: #{bottleneck_forward.6} parent=47 // pred_check
        %p830 = pneg %p156
      $region54: #{bottleneck_forward.6} parent=47 // pred_check_branch
        %832 = sbr.rel (%p830) target = $region56
      $region55: #{bottleneck_forward.6} parent=47 // pred_region
        %p833 = scmp.lt.s32.totalorder %s18, 1
        %s834 = scalar_select %p833, %s18, 1
        %s835 = smul.addr %s834, 8
        %s836 = scalar_lea.vmem %s5, %s835
      $region56: #{bottleneck_forward.6} parent=47 // pred_fallthru
        _
    $region48: #{bottleneck_forward.6} parent=5 // pred_fallthru
      _
  $region6: #{bottleneck_forward.6} parent=0 // loop_footer
    %s16 = sadd.s32 1, %s12
  $region7: #{bottleneck_forward.6} parent=0 // loop_footer_branch
    %11 = sbr.rel target = $region3
  $region8: #{bottleneck_forward.6} parent=0 // loop_exit
    _

// kernel: bottleneck_forward.5
$region0: #{bottleneck_forward.5}
  #allocation0 [shape = 'u32[]', space=smem, size = 0x4, offset = 0x4, fixed_abs, tag = 'smem constant byte address 0x4 - core index']
  #allocation1 [shape = 'u32[144,128]{1,0:T(1,128)}', space=vmem, size = 0x12000, scoped, tag = 'internal scratch']
  #allocation2 [shape = 'bf16[288,384]{1,0:T(16,128)(2,1)}', space=vmem, size = 0x36000, scoped, tag = 'scratch operand']
  %s0 = inlined_call_operand.vmem [shape: bf16[512,128], index: 0, kind: input, shape index: {}]
  %s1 = inlined_call_operand.vmem [shape: f32[1,128], index: 1, kind: input, shape index: {}]
  %s2 = inlined_call_operand.vmem [shape: f32[1,128], index: 2, kind: input, shape index: {}]
  %s3 = inlined_call_operand.vmem [shape: bf16[3,384,128], index: 3, kind: input, shape index: {}]
  %s4 = inlined_call_operand.vmem [shape: bf16[512,128], index: 4, kind: output, shape index: {0}]
  %s5 = inlined_call_operand.vmem [shape: f32[2,8,128], index: 5, kind: output, shape index: {1}]
  %6 = xla_tuple %s4, %s5
  %s7 = sld [smem:[#allocation0]]
  $region57: #{bottleneck_forward.5} parent=0
    _
  %s9 = ssub.s32 1, %s7
  %s10 = scalar_select 0, %s9, %s7
  loop: start=0, step=1, limit=4
  $region2: #{bottleneck_forward.5} parent=0 // loop_pre_header
    _
  $region3: #{bottleneck_forward.5} parent=0 // loop_header
    %s12 = sphi 0, %s16
    %p13 = scmp.ge.s32.totalorder %s12, 4
    %s22 = sphi 0, %s24
    %s25 = sphi 0, %s22
    %s26 = sphi 0, %s25
    %s42 = sphi 0, %s26
    %s46 = sphi 0, %s46
    %s48 = sphi 0, %s46
    %s49 = sphi 0, %s48
    %s63 = sphi 0, %s49
    %s67 = sphi 0, %s67
    %s69 = sphi 0, %s67
    %s70 = sphi 0, %s69
    %s84 = sphi 0, %s70
    %s88 = sphi 0, %s88
    %s90 = sphi 0, %s88
    %s91 = sphi 0, %s90
    %s105 = sphi 0, %s91
    %s111 = sphi 0, %s113
    %s114 = sphi 0, %s111
    %s115 = sphi 0, %s114
    %s131 = sphi 0, %s115
    %s137 = sphi 0, %s139
    %s140 = sphi 0, %s137
    %s141 = sphi 0, %s140
    %s157 = sphi 0, %s141
  $region4: #{bottleneck_forward.5} parent=0 // loop_header_branch
    %15 = sbr.rel (%p13) target = $region8
  $region5: #{bottleneck_forward.5} parent=0 // loop_body
    %s17 = ssub.s32 %s12, 1
    %s18 = ssub.s32 %s12, 2
    %s19 = sadd.s32 %s12, 1
    %s20 = ssub.s32 %s12, %s19
    %p21 = scmp.eq.s32.totalorder %s20, 0
    %s23 = sadd.s32 %s22, 1
    %s24 = scalar_select %p21, %s22, %s23
    %p27 = pneg %p21
    %p28 = scmp.eq.s32.totalorder %s12, 1
    %p29 = por %p27, %p28
    %p30 = scmp.ne.s32.totalorder %s22, %s25
    %p31 = scmp.eq.s32.totalorder %s12, 0
    %p32 = por %p30, %p31
    %p33 = scmp.ne.s32.totalorder %s22, %s25
    %p34 = scmp.eq.s32.totalorder %s17, 1
    %p35 = por %p33, %p34
    %p36 = scmp.ne.s32.totalorder %s25, %s26
    %p37 = scmp.eq.s32.totalorder %s17, 0
    %p38 = por %p36, %p37
    %p39 = scmp.ne.s32.totalorder %s25, %s26
    %p40 = scmp.eq.s32.totalorder %s18, 1
    %p41 = por %p39, %p40
    %p43 = scmp.ne.s32.totalorder %s26, %s42
    %p44 = scmp.eq.s32.totalorder %s18, 0
    %p45 = por %p43, %p44
    %s47 = sadd.s32 %s46, 1
    %p50 = scmp.eq.s32.totalorder %s12, 1
    %p51 = scmp.ne.s32.totalorder %s46, %s48
    %p52 = scmp.eq.s32.totalorder %s12, 0
    %p53 = por %p51, %p52
    %p54 = scmp.ne.s32.totalorder %s46, %s48
    %p55 = scmp.eq.s32.totalorder %s17, 1
    %p56 = por %p54, %p55
    %p57 = scmp.ne.s32.totalorder %s48, %s49
    %p58 = scmp.eq.s32.totalorder %s17, 0
    %p59 = por %p57, %p58
    %p60 = scmp.ne.s32.totalorder %s48, %s49
    %p61 = scmp.eq.s32.totalorder %s18, 1
    %p62 = por %p60, %p61
    %p64 = scmp.ne.s32.totalorder %s49, %s63
    %p65 = scmp.eq.s32.totalorder %s18, 0
    %p66 = por %p64, %p65
    %s68 = sadd.s32 %s67, 1
    %p71 = scmp.eq.s32.totalorder %s12, 1
    %p72 = scmp.ne.s32.totalorder %s67, %s69
    %p73 = scmp.eq.s32.totalorder %s12, 0
    %p74 = por %p72, %p73
    %p75 = scmp.ne.s32.totalorder %s67, %s69
    %p76 = scmp.eq.s32.totalorder %s17, 1
    %p77 = por %p75, %p76
    %p78 = scmp.ne.s32.totalorder %s69, %s70
    %p79 = scmp.eq.s32.totalorder %s17, 0
    %p80 = por %p78, %p79
    %p81 = scmp.ne.s32.totalorder %s69, %s70
    %p82 = scmp.eq.s32.totalorder %s18, 1
    %p83 = por %p81, %p82
    %p85 = scmp.ne.s32.totalorder %s70, %s84
    %p86 = scmp.eq.s32.totalorder %s18, 0
    %p87 = por %p85, %p86
    %s89 = sadd.s32 %s88, 1
    %p92 = scmp.eq.s32.totalorder %s12, 1
    %p93 = scmp.ne.s32.totalorder %s88, %s90
    %p94 = scmp.eq.s32.totalorder %s12, 0
    %p95 = por %p93, %p94
    %p96 = scmp.ne.s32.totalorder %s88, %s90
    %p97 = scmp.eq.s32.totalorder %s17, 1
    %p98 = por %p96, %p97
    %p99 = scmp.ne.s32.totalorder %s90, %s91
    %p100 = scmp.eq.s32.totalorder %s17, 0
    %p101 = por %p99, %p100
    %p102 = scmp.ne.s32.totalorder %s90, %s91
    %p103 = scmp.eq.s32.totalorder %s18, 1
    %p104 = por %p102, %p103
    %p106 = scmp.ne.s32.totalorder %s91, %s105
    %p107 = scmp.eq.s32.totalorder %s18, 0
    %p108 = por %p106, %p107
    %s109 = ssub.s32 %s12, %s19
    %p110 = scmp.eq.s32.totalorder %s109, 0
    %s112 = sadd.s32 %s111, 1
    %s113 = scalar_select %p110, %s111, %s112
    %p116 = pneg %p110
    %p117 = scmp.eq.s32.totalorder %s12, 1
    %p118 = por %p116, %p117
    %p119 = scmp.ne.s32.totalorder %s111, %s114
    %p120 = scmp.eq.s32.totalorder %s12, 0
    %p121 = por %p119, %p120
    %p122 = scmp.ne.s32.totalorder %s111, %s114
    %p123 = scmp.eq.s32.totalorder %s17, 1
    %p124 = por %p122, %p123
    %p125 = scmp.ne.s32.totalorder %s114, %s115
    %p126 = scmp.eq.s32.totalorder %s17, 0
    %p127 = por %p125, %p126
    %p128 = scmp.ne.s32.totalorder %s114, %s115
    %p129 = scmp.eq.s32.totalorder %s18, 1
    %p130 = por %p128, %p129
    %p132 = scmp.ne.s32.totalorder %s115, %s131
    %p133 = scmp.eq.s32.totalorder %s18, 0
    %p134 = por %p132, %p133
    %s135 = ssub.s32 %s12, %s19
    %p136 = scmp.eq.s32.totalorder %s135, 0
    %s138 = sadd.s32 %s137, 1
    %s139 = scalar_select %p136, %s137, %s138
    %p142 = pneg %p136
    %p143 = scmp.eq.s32.totalorder %s12, 1
    %p144 = por %p142, %p143
    %p145 = scmp.ne.s32.totalorder %s137, %s140
    %p146 = scmp.eq.s32.totalorder %s12, 0
    %p147 = por %p145, %p146
    %p148 = scmp.ne.s32.totalorder %s137, %s140
    %p149 = scmp.eq.s32.totalorder %s17, 1
    %p150 = por %p148, %p149
    %p151 = scmp.ne.s32.totalorder %s140, %s141
    %p152 = scmp.eq.s32.totalorder %s17, 0
    %p153 = por %p151, %p152
    %p154 = scmp.ne.s32.totalorder %s140, %s141
    %p155 = scmp.eq.s32.totalorder %s18, 1
    %p156 = por %p154, %p155
    %p158 = scmp.ne.s32.totalorder %s141, %s157
    %p159 = scmp.eq.s32.totalorder %s18, 0
    %p160 = por %p158, %p159
    %p161 = scmp.le.s32.totalorder 1, %s12
    %p162 = scmp.lt.s32.totalorder %s12, 3
    %p163 = pnand %p161, %p162
    %p164 = pneg %p163
    // Predicated region
    $region9: #{bottleneck_forward.5} parent=5 // pred_check
      _
    $region10: #{bottleneck_forward.5} parent=5 // pred_check_branch
      %166 = sbr.rel (%p163) target = $region12
    $region11: #{bottleneck_forward.5} parent=5 // pred_region
      %s167 = ssub.s32 %s12, 1
      // Predicated region
      $region13: #{bottleneck_forward.5} parent=11 // pred_check
        %p168 = pneg %p59
      $region14: #{bottleneck_forward.5} parent=11 // pred_check_branch
        %170 = sbr.rel (%p168) target = $region16
      $region15: #{bottleneck_forward.5} parent=11 // pred_region
        _
      $region16: #{bottleneck_forward.5} parent=11 // pred_fallthru
        _
      // Predicated region
      $region17: #{bottleneck_forward.5} parent=11 // pred_check
        %p171 = pneg %p80
      $region18: #{bottleneck_forward.5} parent=11 // pred_check_branch
        %173 = sbr.rel (%p171) target = $region20
      $region19: #{bottleneck_forward.5} parent=11 // pred_region
        _
      $region20: #{bottleneck_forward.5} parent=11 // pred_fallthru
        _
      // Predicated region
      $region21: #{bottleneck_forward.5} parent=11 // pred_check
        %p174 = pneg %p101
      $region22: #{bottleneck_forward.5} parent=11 // pred_check_branch
        %176 = sbr.rel (%p174) target = $region24
      $region23: #{bottleneck_forward.5} parent=11 // pred_region
        _
      $region24: #{bottleneck_forward.5} parent=11 // pred_fallthru
        _
    $region12: #{bottleneck_forward.5} parent=5 // pred_fallthru
      _
    %p177 = scmp.lt.s32.totalorder %s12, 2
    // Predicated region
    $region25: #{bottleneck_forward.5} parent=5 // pred_check
      %p178 = pneg %p177
    $region26: #{bottleneck_forward.5} parent=5 // pred_check_branch
      %180 = sbr.rel (%p178) target = $region28
    $region27: #{bottleneck_forward.5} parent=5 // pred_region
      // Predicated region
      $region29: #{bottleneck_forward.5} parent=27 // pred_check
        %p181 = pneg %p32
      $region30: #{bottleneck_forward.5} parent=27 // pred_check_branch
        %183 = sbr.rel (%p181) target = $region32
      $region31: #{bottleneck_forward.5} parent=27 // pred_region
        %s184 = smul.u32 32, %s12
        %p185 = scmp.lt.s32.totalorder %s184, 63
        %s186 = scalar_select %p185, %s184, 63
        %s187 = smul.addr %s186, 4
        %s188 = scalar_lea.vmem %s0, %s187
        %s189 = smul.u32 32, %s12
      $region32: #{bottleneck_forward.5} parent=27 // pred_fallthru
        _
    $region28: #{bottleneck_forward.5} parent=5 // pred_fallthru
      _
    %p190 = scmp.le.s32.totalorder 1, %s12
    %p191 = scmp.lt.s32.totalorder %s12, 3
    %p192 = pnand %p190, %p191
    %p193 = pneg %p192
    // Predicated region
    $region33: #{bottleneck_forward.5} parent=5 // pred_check
      _
    $region34: #{bottleneck_forward.5} parent=5 // pred_check_branch
      %195 = sbr.rel (%p192) target = $region36
    $region35: #{bottleneck_forward.5} parent=5 // pred_region
      %s196 = ssub.s32 %s12, 1
      %s197 = smul.u32 32, %s17
      %p198 = scmp.lt.s32.totalorder %s197, 63
      %s199 = scalar_select %p198, %s197, 63
      %s200 = smul.addr %s199, 4
      %s201 = scalar_lea.vmem %s0, %s200
      %p202 = pneg %p38
      %p203 = pneg %p35
      %p204 = pneg %p59
      %p205 = pneg %p56
      %p206 = pneg %p80
      %p207 = pneg %p77
      %p208 = pneg %p101
      %p209 = pneg %p98
      %p210 = pneg %p127
      %p211 = pneg %p124
      %s212 = smul.u32 32, %s17
      %p213 = scmp.lt.s32.totalorder %s212, 63
      %s214 = scalar_select %p213, %s212, 63
      %s215 = smul.addr %s214, 4
      %s216 = scalar_lea.vmem %s4, %s215
      %p217 = pneg %p153
      %p218 = pneg %p150
      %p219 = scmp.lt.s32.totalorder %s17, 1
      %s220 = scalar_select %p219, %s17, 1
      %s221 = smul.addr %s220, 8
      %s222 = scalar_lea.vmem %s5, %s221
      %s223 = smul.u32 32, %s17
      %p224 = scmp.lt.s32.totalorder %s223, 63
      %s225 = scalar_select %p224, %s223, 63
      %s226 = smul.addr %s225, 4
      %s227 = scalar_lea.vmem %s0, %s226
      %s228 = smul.u32 32, %s17
      %s229 = smul.u32 32, %s17
      %p230 = scmp.lt.s32.totalorder %s229, 63
      %s231 = scalar_select %p230, %s229, 63
      %s232 = smul.addr %s231, 4
      %s233 = scalar_lea.vmem %s4, %s232
      %s234 = smul.u32 32, %s17
      %p235 = scmp.lt.s32.totalorder %s17, 1
      %s236 = scalar_select %p235, %s17, 1
      %s237 = smul.addr %s236, 8
      %s238 = scalar_lea.vmem %s5, %s237
      %v240 = vld [vmem:[%s227] sm:$0xf]
      %v241 = vld [vmem:[%s227 + $0x4] sm:$0xf]
      %v242 = vld [vmem:[%s227 + $0x8] sm:$0xf]
      %v243 = vld [vmem:[%s227 + $0xc] sm:$0xf]
      %v244 = vld [vmem:[%s227 + $0x10] sm:$0xf]
      %v245 = vld [vmem:[%s227 + $0x14] sm:$0xf]
      %v246 = vld [vmem:[%s227 + $0x18] sm:$0xf]
      %v247 = vld [vmem:[%s227 + $0x1c] sm:$0xf]
      %v248 = vld [vmem:[%s227 + $0x20] sm:$0xf]
      %v249 = vld [vmem:[%s227 + $0x24] sm:$0xf]
      %v250 = vld [vmem:[%s227 + $0x28] sm:$0xf]
      %v251 = vld [vmem:[%s227 + $0x2c] sm:$0xf]
      %v252 = vld [vmem:[%s227 + $0x30] sm:$0xf]
      %v253 = vld [vmem:[%s227 + $0x34] sm:$0xf]
      %v254 = vld [vmem:[%s227 + $0x38] sm:$0xf]
      %v255 = vld [vmem:[%s227 + $0x3c] sm:$0xf]
      %v256 = vld [vmem:[%s227 + $0x40] sm:$0xf]
      %v257 = vld [vmem:[%s227 + $0x44] sm:$0xf]
      %v258 = vld [vmem:[%s227 + $0x48] sm:$0xf]
      %v259 = vld [vmem:[%s227 + $0x4c] sm:$0xf]
      %v260 = vld [vmem:[%s227 + $0x50] sm:$0xf]
      %v261 = vld [vmem:[%s227 + $0x54] sm:$0xf]
      %v262 = vld [vmem:[%s227 + $0x58] sm:$0xf]
      %v263 = vld [vmem:[%s227 + $0x5c] sm:$0xf]
      %v264 = vld [vmem:[%s227 + $0x60] sm:$0xf]
      %v265 = vld [vmem:[%s227 + $0x64] sm:$0xf]
      %v266 = vld [vmem:[%s227 + $0x68] sm:$0xf]
      %v267 = vld [vmem:[%s227 + $0x6c] sm:$0xf]
      %v268 = vld [vmem:[%s227 + $0x70] sm:$0xf]
      %v269 = vld [vmem:[%s227 + $0x74] sm:$0xf]
      %v270 = vld [vmem:[%s227 + $0x78] sm:$0xf]
      %v271 = vld [vmem:[%s227 + $0x7c] sm:$0xf]
      %v272 = vunpack.c.l.bf16 %v240
      %v273 = vunpack.c.l.bf16 %v241
      %v274 = vunpack.c.l.bf16 %v242
      %v275 = vunpack.c.l.bf16 %v243
      %v276 = vunpack.c.l.bf16 %v244
      %v277 = vunpack.c.l.bf16 %v245
      %v278 = vunpack.c.l.bf16 %v246
      %v279 = vunpack.c.l.bf16 %v247
      %v280 = vunpack.c.l.bf16 %v248
      %v281 = vunpack.c.l.bf16 %v249
      %v282 = vunpack.c.l.bf16 %v250
      %v283 = vunpack.c.l.bf16 %v251
      %v284 = vunpack.c.l.bf16 %v252
      %v285 = vunpack.c.l.bf16 %v253
      %v286 = vunpack.c.l.bf16 %v254
      %v287 = vunpack.c.l.bf16 %v255
      %v288 = vunpack.c.l.bf16 %v256
      %v289 = vunpack.c.l.bf16 %v257
      %v290 = vunpack.c.l.bf16 %v258
      %v291 = vunpack.c.l.bf16 %v259
      %v292 = vunpack.c.l.bf16 %v260
      %v293 = vunpack.c.l.bf16 %v261
      %v294 = vunpack.c.l.bf16 %v262
      %v295 = vunpack.c.l.bf16 %v263
      %v296 = vunpack.c.l.bf16 %v264
      %v297 = vunpack.c.l.bf16 %v265
      %v298 = vunpack.c.l.bf16 %v266
      %v299 = vunpack.c.l.bf16 %v267
      %v300 = vunpack.c.l.bf16 %v268
      %v301 = vunpack.c.l.bf16 %v269
      %v302 = vunpack.c.l.bf16 %v270
      %v303 = vunpack.c.l.bf16 %v271
      %v304 = vld [vmem:[%s1] sm:$0x1]
      %v306 = vlaneseq
      %v307 = vshrl.u32 %v306, 7
      %v308 = vsub.s32 0, %v307
      %v309 = vrot.slane %v304, %v308
      %v311 = vmul.f32 %v272, %v309
      %v312 = vmul.f32 %v273, %v309
      %v313 = vmul.f32 %v274, %v309
      %v314 = vmul.f32 %v275, %v309
      %v315 = vmul.f32 %v276, %v309
      %v316 = vmul.f32 %v277, %v309
      %v317 = vmul.f32 %v278, %v309
      %v318 = vmul.f32 %v279, %v309
      %v319 = vmul.f32 %v280, %v309
      %v320 = vmul.f32 %v281, %v309
      %v321 = vmul.f32 %v282, %v309
      %v322 = vmul.f32 %v283, %v309
      %v323 = vmul.f32 %v284, %v309
      %v324 = vmul.f32 %v285, %v309
      %v325 = vmul.f32 %v286, %v309
      %v326 = vmul.f32 %v287, %v309
      %v327 = vmul.f32 %v288, %v309
      %v328 = vmul.f32 %v289, %v309
      %v329 = vmul.f32 %v290, %v309
      %v330 = vmul.f32 %v291, %v309
      %v331 = vmul.f32 %v292, %v309
      %v332 = vmul.f32 %v293, %v309
      %v333 = vmul.f32 %v294, %v309
      %v334 = vmul.f32 %v295, %v309
      %v335 = vmul.f32 %v296, %v309
      %v336 = vmul.f32 %v297, %v309
      %v337 = vmul.f32 %v298, %v309
      %v338 = vmul.f32 %v299, %v309
      %v339 = vmul.f32 %v300, %v309
      %v340 = vmul.f32 %v301, %v309
      %v341 = vmul.f32 %v302, %v309
      %v342 = vmul.f32 %v303, %v309
      %v343 = vld [vmem:[%s2] sm:$0x1]
      %v345 = vlaneseq
      %v346 = vshrl.u32 %v345, 7
      %v347 = vsub.s32 0, %v346
      %v348 = vrot.slane %v343, %v347
      %v350 = vadd.f32 %v311, %v348
      %v351 = vadd.f32 %v312, %v348
      %v352 = vadd.f32 %v313, %v348
      %v353 = vadd.f32 %v314, %v348
      %v354 = vadd.f32 %v315, %v348
      %v355 = vadd.f32 %v316, %v348
      %v356 = vadd.f32 %v317, %v348
      %v357 = vadd.f32 %v318, %v348
      %v358 = vadd.f32 %v319, %v348
      %v359 = vadd.f32 %v320, %v348
      %v360 = vadd.f32 %v321, %v348
      %v361 = vadd.f32 %v322, %v348
      %v362 = vadd.f32 %v323, %v348
      %v363 = vadd.f32 %v324, %v348
      %v364 = vadd.f32 %v325, %v348
      %v365 = vadd.f32 %v326, %v348
      %v366 = vadd.f32 %v327, %v348
      %v367 = vadd.f32 %v328, %v348
      %v368 = vadd.f32 %v329, %v348
      %v369 = vadd.f32 %v330, %v348
      %v370 = vadd.f32 %v331, %v348
      %v371 = vadd.f32 %v332, %v348
      %v372 = vadd.f32 %v333, %v348
      %v373 = vadd.f32 %v334, %v348
      %v374 = vadd.f32 %v335, %v348
      %v375 = vadd.f32 %v336, %v348
      %v376 = vadd.f32 %v337, %v348
      %v377 = vadd.f32 %v338, %v348
      %v378 = vadd.f32 %v339, %v348
      %v379 = vadd.f32 %v340, %v348
      %v380 = vadd.f32 %v341, %v348
      %v381 = vadd.f32 %v342, %v348
      %v382 = vmax.f32 %v350, 0.0
      %v383 = vmax.f32 %v351, 0.0
      %v384 = vmax.f32 %v352, 0.0
      %v385 = vmax.f32 %v353, 0.0
      %v386 = vmax.f32 %v354, 0.0
      %v387 = vmax.f32 %v355, 0.0
      %v388 = vmax.f32 %v356, 0.0
      %v389 = vmax.f32 %v357, 0.0
      %v390 = vmax.f32 %v358, 0.0
      %v391 = vmax.f32 %v359, 0.0
      %v392 = vmax.f32 %v360, 0.0
      %v393 = vmax.f32 %v361, 0.0
      %v394 = vmax.f32 %v362, 0.0
      %v395 = vmax.f32 %v363, 0.0
      %v396 = vmax.f32 %v364, 0.0
      %v397 = vmax.f32 %v365, 0.0
      %v398 = vmax.f32 %v366, 0.0
      %v399 = vmax.f32 %v367, 0.0
      %v400 = vmax.f32 %v368, 0.0
      %v401 = vmax.f32 %v369, 0.0
      %v402 = vmax.f32 %v370, 0.0
      %v403 = vmax.f32 %v371, 0.0
      %v404 = vmax.f32 %v372, 0.0
      %v405 = vmax.f32 %v373, 0.0
      %v406 = vmax.f32 %v374, 0.0
      %v407 = vmax.f32 %v375, 0.0
      %v408 = vmax.f32 %v376, 0.0
      %v409 = vmax.f32 %v377, 0.0
      %v410 = vmax.f32 %v378, 0.0
      %v411 = vmax.f32 %v379, 0.0
      %v412 = vmax.f32 %v380, 0.0
      %v413 = vmax.f32 %v381, 0.0
      %v414 = vlaneseq
      %v415 = vshrl.u32 %v414, 7
      %v416 = vadd.s32 %v415, 8
      %v417 = vadd.s32 %v415, 16
      %v418 = vadd.s32 %v415, 24
      %v419 = vadd.s32 %v415, 32
      %v420 = vadd.s32 %v415, 40
      %v421 = vadd.s32 %v415, 48
      %v422 = vadd.s32 %v415, 56
      %v423 = vadd.s32 %v415, 64
      %v424 = vadd.s32 %v415, 72
      %v425 = vadd.s32 %v415, 80
      %v426 = vadd.s32 %v415, 88
      %v427 = vadd.s32 %v415, 96
      %v428 = vadd.s32 %v415, 104
      %v429 = vadd.s32 %v415, 112
      %v430 = vadd.s32 %v415, 120
      %v431 = vadd.s32 %v415, 128
      %v432 = vadd.s32 %v415, 136
      %v433 = vadd.s32 %v415, 144
      %v434 = vadd.s32 %v415, 152
      %v435 = vadd.s32 %v415, 160
      %v436 = vadd.s32 %v415, 168
      %v437 = vadd.s32 %v415, 176
      %v438 = vadd.s32 %v415, 184
      %v439 = vadd.s32 %v415, 192
      %v440 = vadd.s32 %v415, 200
      %v441 = vadd.s32 %v415, 208
      %v442 = vadd.s32 %v415, 216
      %v443 = vadd.s32 %v415, 224
      %v444 = vadd.s32 %v415, 232
      %v445 = vadd.s32 %v415, 240
      %v446 = vadd.s32 %v415, 248
      %vm447 = vcmp.lt.s32.totalorder %v415, 0
      %v448 = vsub.s32 0, %v415
      %v449 = vsel %vm447, %v448, %v415
      %v450 = vshrl.u32 %v449, 4
      %v451 = vand.u32 %v449, 15
      %v452 = vsub.s32 0, %v451
      %v453 = vsel %vm447, %v452, %v451
      %vm454 = vcmp.lt.s32.totalorder %v416, 0
      %v455 = vsub.s32 0, %v416
      %v456 = vsel %vm454, %v455, %v416
      %v457 = vshrl.u32 %v456, 4
      %v458 = vand.u32 %v456, 15
      %v459 = vsub.s32 0, %v458
      %v460 = vsel %vm454, %v459, %v458
      %vm461 = vcmp.lt.s32.totalorder %v417, 0
      %v462 = vsub.s32 0, %v417
      %v463 = vsel %vm461, %v462, %v417
      %v464 = vshrl.u32 %v463, 4
      %v465 = vand.u32 %v463, 15
      %v466 = vsub.s32 0, %v465
      %v467 = vsel %vm461, %v466, %v465
      %vm468 = vcmp.lt.s32.totalorder %v418, 0
      %v469 = vsub.s32 0, %v418
      %v470 = vsel %vm468, %v469, %v418
      %v471 = vshrl.u32 %v470, 4
      %v472 = vand.u32 %v470, 15
      %v473 = vsub.s32 0, %v472
      %v474 = vsel %vm468, %v473, %v472
      %vm475 = vcmp.lt.s32.totalorder %v419, 0
      %v476 = vsub.s32 0, %v419
      %v477 = vsel %vm475, %v476, %v419
      %v478 = vshrl.u32 %v477, 4
      %v479 = vand.u32 %v477, 15
      %v480 = vsub.s32 0, %v479
      %v481 = vsel %vm475, %v480, %v479
      %vm482 = vcmp.lt.s32.totalorder %v420, 0
      %v483 = vsub.s32 0, %v420
      %v484 = vsel %vm482, %v483, %v420
      %v485 = vshrl.u32 %v484, 4
      %v486 = vand.u32 %v484, 15
      %v487 = vsub.s32 0, %v486
      %v488 = vsel %vm482, %v487, %v486
      %vm489 = vcmp.lt.s32.totalorder %v421, 0
      %v490 = vsub.s32 0, %v421
      %v491 = vsel %vm489, %v490, %v421
      %v492 = vshrl.u32 %v491, 4
      %v493 = vand.u32 %v491, 15
      %v494 = vsub.s32 0, %v493
      %v495 = vsel %vm489, %v494, %v493
      %vm496 = vcmp.lt.s32.totalorder %v422, 0
      %v497 = vsub.s32 0, %v422
      %v498 = vsel %vm496, %v497, %v422
      %v499 = vshrl.u32 %v498, 4
      %v500 = vand.u32 %v498, 15
      %v501 = vsub.s32 0, %v500
      %v502 = vsel %vm496, %v501, %v500
      %vm503 = vcmp.lt.s32.totalorder %v423, 0
      %v504 = vsub.s32 0, %v423
      %v505 = vsel %vm503, %v504, %v423
      %v506 = vshrl.u32 %v505, 4
      %v507 = vand.u32 %v505, 15
      %v508 = vsub.s32 0, %v507
      %v509 = vsel %vm503, %v508, %v507
      %vm510 = vcmp.lt.s32.totalorder %v424, 0
      %v511 = vsub.s32 0, %v424
      %v512 = vsel %vm510, %v511, %v424
      %v513 = vshrl.u32 %v512, 4
      %v514 = vand.u32 %v512, 15
      %v515 = vsub.s32 0, %v514
      %v516 = vsel %vm510, %v515, %v514
      %vm517 = vcmp.lt.s32.totalorder %v425, 0
      %v518 = vsub.s32 0, %v425
      %v519 = vsel %vm517, %v518, %v425
      %v520 = vshrl.u32 %v519, 4
      %v521 = vand.u32 %v519, 15
      %v522 = vsub.s32 0, %v521
      %v523 = vsel %vm517, %v522, %v521
      %vm524 = vcmp.lt.s32.totalorder %v426, 0
      %v525 = vsub.s32 0, %v426
      %v526 = vsel %vm524, %v525, %v426
      %v527 = vshrl.u32 %v526, 4
      %v528 = vand.u32 %v526, 15
      %v529 = vsub.s32 0, %v528
      %v530 = vsel %vm524, %v529, %v528
      %vm531 = vcmp.lt.s32.totalorder %v427, 0
      %v532 = vsub.s32 0, %v427
      %v533 = vsel %vm531, %v532, %v427
      %v534 = vshrl.u32 %v533, 4
      %v535 = vand.u32 %v533, 15
      %v536 = vsub.s32 0, %v535
      %v537 = vsel %vm531, %v536, %v535
      %vm538 = vcmp.lt.s32.totalorder %v428, 0
      %v539 = vsub.s32 0, %v428
      %v540 = vsel %vm538, %v539, %v428
      %v541 = vshrl.u32 %v540, 4
      %v542 = vand.u32 %v540, 15
      %v543 = vsub.s32 0, %v542
      %v544 = vsel %vm538, %v543, %v542
      %vm545 = vcmp.lt.s32.totalorder %v429, 0
      %v546 = vsub.s32 0, %v429
      %v547 = vsel %vm545, %v546, %v429
      %v548 = vshrl.u32 %v547, 4
      %v549 = vand.u32 %v547, 15
      %v550 = vsub.s32 0, %v549
      %v551 = vsel %vm545, %v550, %v549
      %vm552 = vcmp.lt.s32.totalorder %v430, 0
      %v553 = vsub.s32 0, %v430
      %v554 = vsel %vm552, %v553, %v430
      %v555 = vshrl.u32 %v554, 4
      %v556 = vand.u32 %v554, 15
      %v557 = vsub.s32 0, %v556
      %v558 = vsel %vm552, %v557, %v556
      %vm559 = vcmp.lt.s32.totalorder %v431, 0
      %v560 = vsub.s32 0, %v431
      %v561 = vsel %vm559, %v560, %v431
      %v562 = vshrl.u32 %v561, 4
      %v563 = vand.u32 %v561, 15
      %v564 = vsub.s32 0, %v563
      %v565 = vsel %vm559, %v564, %v563
      %vm566 = vcmp.lt.s32.totalorder %v432, 0
      %v567 = vsub.s32 0, %v432
      %v568 = vsel %vm566, %v567, %v432
      %v569 = vshrl.u32 %v568, 4
      %v570 = vand.u32 %v568, 15
      %v571 = vsub.s32 0, %v570
      %v572 = vsel %vm566, %v571, %v570
      %vm573 = vcmp.lt.s32.totalorder %v433, 0
      %v574 = vsub.s32 0, %v433
      %v575 = vsel %vm573, %v574, %v433
      %v576 = vshrl.u32 %v575, 4
      %v577 = vand.u32 %v575, 15
      %v578 = vsub.s32 0, %v577
      %v579 = vsel %vm573, %v578, %v577
      %vm580 = vcmp.lt.s32.totalorder %v434, 0
      %v581 = vsub.s32 0, %v434
      %v582 = vsel %vm580, %v581, %v434
      %v583 = vshrl.u32 %v582, 4
      %v584 = vand.u32 %v582, 15
      %v585 = vsub.s32 0, %v584
      %v586 = vsel %vm580, %v585, %v584
      %vm587 = vcmp.lt.s32.totalorder %v435, 0
      %v588 = vsub.s32 0, %v435
      %v589 = vsel %vm587, %v588, %v435
      %v590 = vshrl.u32 %v589, 4
      %v591 = vand.u32 %v589, 15
      %v592 = vsub.s32 0, %v591
      %v593 = vsel %vm587, %v592, %v591
      %vm594 = vcmp.lt.s32.totalorder %v436, 0
      %v595 = vsub.s32 0, %v436
      %v596 = vsel %vm594, %v595, %v436
      %v597 = vshrl.u32 %v596, 4
      %v598 = vand.u32 %v596, 15
      %v599 = vsub.s32 0, %v598
      %v600 = vsel %vm594, %v599, %v598
      %vm601 = vcmp.lt.s32.totalorder %v437, 0
      %v602 = vsub.s32 0, %v437
      %v603 = vsel %vm601, %v602, %v437
      %v604 = vshrl.u32 %v603, 4
      %v605 = vand.u32 %v603, 15
      %v606 = vsub.s32 0, %v605
      %v607 = vsel %vm601, %v606, %v605
      %vm608 = vcmp.lt.s32.totalorder %v438, 0
      %v609 = vsub.s32 0, %v438
      %v610 = vsel %vm608, %v609, %v438
      %v611 = vshrl.u32 %v610, 4
      %v612 = vand.u32 %v610, 15
      %v613 = vsub.s32 0, %v612
      %v614 = vsel %vm608, %v613, %v612
      %vm615 = vcmp.lt.s32.totalorder %v439, 0
      %v616 = vsub.s32 0, %v439
      %v617 = vsel %vm615, %v616, %v439
      %v618 = vshrl.u32 %v617, 4
      %v619 = vand.u32 %v617, 15
      %v620 = vsub.s32 0, %v619
      %v621 = vsel %vm615, %v620, %v619
      %vm622 = vcmp.lt.s32.totalorder %v440, 0
      %v623 = vsub.s32 0, %v440
      %v624 = vsel %vm622, %v623, %v440
      %v625 = vshrl.u32 %v624, 4
      %v626 = vand.u32 %v624, 15
      %v627 = vsub.s32 0, %v626
      %v628 = vsel %vm622, %v627, %v626
      %vm629 = vcmp.lt.s32.totalorder %v441, 0
      %v630 = vsub.s32 0, %v441
      %v631 = vsel %vm629, %v630, %v441
      %v632 = vshrl.u32 %v631, 4
      %v633 = vand.u32 %v631, 15
      %v634 = vsub.s32 0, %v633
      %v635 = vsel %vm629, %v634, %v633
      %vm636 = vcmp.lt.s32.totalorder %v442, 0
      %v637 = vsub.s32 0, %v442
      %v638 = vsel %vm636, %v637, %v442
      %v639 = vshrl.u32 %v638, 4
      %v640 = vand.u32 %v638, 15
      %v641 = vsub.s32 0, %v640
      %v642 = vsel %vm636, %v641, %v640
      %vm643 = vcmp.lt.s32.totalorder %v443, 0
      %v644 = vsub.s32 0, %v443
      %v645 = vsel %vm643, %v644, %v443
      %v646 = vshrl.u32 %v645, 4
      %v647 = vand.u32 %v645, 15
      %v648 = vsub.s32 0, %v647
      %v649 = vsel %vm643, %v648, %v647
      %vm650 = vcmp.lt.s32.totalorder %v444, 0
      %v651 = vsub.s32 0, %v444
      %v652 = vsel %vm650, %v651, %v444
      %v653 = vshrl.u32 %v652, 4
      %v654 = vand.u32 %v652, 15
      %v655 = vsub.s32 0, %v654
      %v656 = vsel %vm650, %v655, %v654
      %vm657 = vcmp.lt.s32.totalorder %v445, 0
      %v658 = vsub.s32 0, %v445
      %v659 = vsel %vm657, %v658, %v445
      %v660 = vshrl.u32 %v659, 4
      %v661 = vand.u32 %v659, 15
      %v662 = vsub.s32 0, %v661
      %v663 = vsel %vm657, %v662, %v661
      %vm664 = vcmp.lt.s32.totalorder %v446, 0
      %v665 = vsub.s32 0, %v446
      %v666 = vsel %vm664, %v665, %v446
      %v667 = vshrl.u32 %v666, 4
      %v668 = vand.u32 %v666, 15
      %v669 = vsub.s32 0, %v668
      %v670 = vsel %vm664, %v669, %v668
      %vm671 = vcmp.ne.s32.totalorder %v453, 0
      %vm672 = vcmp.ne.s32.totalorder %v460, 0
      %vm673 = vcmp.ne.s32.totalorder %v467, 0
      %vm674 = vcmp.ne.s32.totalorder %v474, 0
      %vm675 = vcmp.ne.s32.totalorder %v481, 0
      %vm676 = vcmp.ne.s32.totalorder %v488, 0
      %vm677 = vcmp.ne.s32.totalorder %v495, 0
      %vm678 = vcmp.ne.s32.totalorder %v502, 0
      %vm679 = vcmp.ne.s32.totalorder %v509, 0
      %vm680 = vcmp.ne.s32.totalorder %v516, 0
      %vm681 = vcmp.ne.s32.totalorder %v523, 0
      %vm682 = vcmp.ne.s32.totalorder %v530, 0
      %vm683 = vcmp.ne.s32.totalorder %v537, 0
      %vm684 = vcmp.ne.s32.totalorder %v544, 0
      %vm685 = vcmp.ne.s32.totalorder %v551, 0
      %vm686 = vcmp.ne.s32.totalorder %v558, 0
      %vm687 = vcmp.ne.s32.totalorder %v565, 0
      %vm688 = vcmp.ne.s32.totalorder %v572, 0
      %vm689 = vcmp.ne.s32.totalorder %v579, 0
      %vm690 = vcmp.ne.s32.totalorder %v586, 0
      %vm691 = vcmp.ne.s32.totalorder %v593, 0
      %vm692 = vcmp.ne.s32.totalorder %v600, 0
      %vm693 = vcmp.ne.s32.totalorder %v607, 0
      %vm694 = vcmp.ne.s32.totalorder %v614, 0
      %vm695 = vcmp.ne.s32.totalorder %v621, 0
      %vm696 = vcmp.ne.s32.totalorder %v628, 0
      %vm697 = vcmp.ne.s32.totalorder %v635, 0
      %vm698 = vcmp.ne.s32.totalorder %v642, 0
      %vm699 = vcmp.ne.s32.totalorder %v649, 0
      %vm700 = vcmp.ne.s32.totalorder %v656, 0
      %vm701 = vcmp.ne.s32.totalorder %v663, 0
      %vm702 = vcmp.ne.s32.totalorder %v670, 0
      %vm703 = vcmp.lt.s32.totalorder %v453, 0
      %vm704 = vcmp.lt.s32.totalorder %v460, 0
      %vm705 = vcmp.lt.s32.totalorder %v467, 0
      %vm706 = vcmp.lt.s32.totalorder %v474, 0
      %vm707 = vcmp.lt.s32.totalorder %v481, 0
      %vm708 = vcmp.lt.s32.totalorder %v488, 0
      %vm709 = vcmp.lt.s32.totalorder %v495, 0
      %vm710 = vcmp.lt.s32.totalorder %v502, 0
      %vm711 = vcmp.lt.s32.totalorder %v509, 0
      %vm712 = vcmp.lt.s32.totalorder %v516, 0
      %vm713 = vcmp.lt.s32.totalorder %v523, 0
      %vm714 = vcmp.lt.s32.totalorder %v530, 0
      %vm715 = vcmp.lt.s32.totalorder %v537, 0
      %vm716 = vcmp.lt.s32.totalorder %v544, 0
      %vm717 = vcmp.lt.s32.totalorder %v551, 0
      %vm718 = vcmp.lt.s32.totalorder %v558, 0
      %vm719 = vcmp.lt.s32.totalorder %v565, 0
      %vm720 = vcmp.lt.s32.totalorder %v572, 0
      %vm721 = vcmp.lt.s32.totalorder %v579, 0
      %vm722 = vcmp.lt.s32.totalorder %v586, 0
      %vm723 = vcmp.lt.s32.totalorder %v593, 0
      %vm724 = vcmp.lt.s32.totalorder %v600, 0
      %vm725 = vcmp.lt.s32.totalorder %v607, 0
      %vm726 = vcmp.lt.s32.totalorder %v614, 0
      %vm727 = vcmp.lt.s32.totalorder %v621, 0
      %vm728 = vcmp.lt.s32.totalorder %v628, 0
      %vm729 = vcmp.lt.s32.totalorder %v635, 0
      %vm730 = vcmp.lt.s32.totalorder %v642, 0
      %vm731 = vcmp.lt.s32.totalorder %v649, 0
      %vm732 = vcmp.lt.s32.totalorder %v656, 0
      %vm733 = vcmp.lt.s32.totalorder %v663, 0
      %vm734 = vcmp.lt.s32.totalorder %v670, 0
      %vm735 = vmand %vm703, %vm671
      %vm736 = vmand %vm704, %vm672
      %vm737 = vmand %vm705, %vm673
      %vm738 = vmand %vm706, %vm674
      %vm739 = vmand %vm707, %vm675
      %vm740 = vmand %vm708, %vm676
      %vm741 = vmand %vm709, %vm677
      %vm742 = vmand %vm710, %vm678
      %vm743 = vmand %vm711, %vm679
      %vm744 = vmand %vm712, %vm680
      %vm745 = vmand %vm713, %vm681
      %vm746 = vmand %vm714, %vm682
      %vm747 = vmand %vm715, %vm683
      %vm748 = vmand %vm716, %vm684
      %vm749 = vmand %vm717, %vm685
      %vm750 = vmand %vm718, %vm686
      %vm751 = vmand %vm719, %vm687
      %vm752 = vmand %vm720, %vm688
      %vm753 = vmand %vm721, %vm689
      %vm754 = vmand %vm722, %vm690
      %vm755 = vmand %vm723, %vm691
      %vm756 = vmand %vm724, %vm692
      %vm757 = vmand %vm725, %vm693
      %vm758 = vmand %vm726, %vm694
      %vm759 = vmand %vm727, %vm695
      %vm760 = vmand %vm728, %vm696
      %vm761 = vmand %vm729, %vm697
      %vm762 = vmand %vm730, %vm698
      %vm763 = vmand %vm731, %vm699
      %vm764 = vmand %vm732, %vm700
      %vm765 = vmand %vm733, %vm701
      %vm766 = vmand %vm734, %vm702
      %v767 = vadd.s32 %v453, 16
      %v768 = vadd.s32 %v460, 16
      %v769 = vadd.s32 %v467, 16
      %v770 = vadd.s32 %v474, 16
      %v771 = vadd.s32 %v481, 16
      %v772 = vadd.s32 %v488, 16
      %v773 = vadd.s32 %v495, 16
      %v774 = vadd.s32 %v502, 16
      %v775 = vadd.s32 %v509, 16
      %v776 = vadd.s32 %v516, 16
      %v777 = vadd.s32 %v523, 16
      %v778 = vadd.s32 %v530, 16
      %v779 = vadd.s32 %v537, 16
      %v780 = vadd.s32 %v544, 16
      %v781 = vadd.s32 %v551, 16
      %v782 = vadd.s32 %v558, 16
      %v783 = vadd.s32 %v565, 16
      %v784 = vadd.s32 %v572, 16
      %v785 = vadd.s32 %v579, 16
      %v786 = vadd.s32 %v586, 16
      %v787 = vadd.s32 %v593, 16
      %v788 = vadd.s32 %v600, 16
      %v789 = vadd.s32 %v607, 16
      %v790 = vadd.s32 %v614, 16
      %v791 = vadd.s32 %v621, 16
      %v792 = vadd.s32 %v628, 16
      %v793 = vadd.s32 %v635, 16
      %v794 = vadd.s32 %v642, 16
      %v795 = vadd.s32 %v649, 16
      %v796 = vadd.s32 %v656, 16
      %v797 = vadd.s32 %v663, 16
      %v798 = vadd.s32 %v670, 16
      %v799 = vsel %vm735, %v767, %v453
      %v800 = vsel %vm736, %v768, %v460
      %v801 = vsel %vm737, %v769, %v467
      %v802 = vsel %vm738, %v770, %v474
      %v803 = vsel %vm739, %v771, %v481
      %v804 = vsel %vm740, %v772, %v488
      %v805 = vsel %vm741, %v773, %v495
      %v806 = vsel %vm742, %v774, %v502
      %v807 = vsel %vm743, %v775, %v509
      %v808 = vsel %vm744, %v776, %v516
      %v809 = vsel %vm745, %v777, %v523
      %v810 = vsel %vm746, %v778, %v530
      %v811 = vsel %vm747, %v779, %v537
      %v812 = vsel %vm748, %v780, %v544
      %v813 = vsel %vm749, %v781, %v551
      %v814 = vsel %vm750, %v782, %v558
      %v815 = vsel %vm751, %v783, %v565
      %v816 = vsel %vm752, %v784, %v572
      %v817 = vsel %vm753, %v785, %v579
      %v818 = vsel %vm754, %v786, %v586
      %v819 = vsel %vm755, %v787, %v593
      %v820 = vsel %vm756, %v788, %v600
      %v821 = vsel %vm757, %v789, %v607
      %v822 = vsel %vm758, %v790, %v614
      %v823 = vsel %vm759, %v791, %v621
      %v824 = vsel %vm760, %v792, %v628
      %v825 = vsel %vm761, %v793, %v635
      %v826 = vsel %vm762, %v794, %v642
      %v827 = vsel %vm763, %v795, %v649
      %v828 = vsel %vm764, %v796, %v656
      %v829 = vsel %vm765, %v797, %v663
      %v830 = vsel %vm766, %v798, %v670
      %vm831 = vcmp.eq.s32.totalorder %v799, 0
      %vm832 = vcmp.eq.s32.totalorder %v800, 0
      %vm833 = vcmp.eq.s32.totalorder %v801, 0
      %vm834 = vcmp.eq.s32.totalorder %v802, 0
      %vm835 = vcmp.eq.s32.totalorder %v803, 0
      %vm836 = vcmp.eq.s32.totalorder %v804, 0
      %vm837 = vcmp.eq.s32.totalorder %v805, 0
      %vm838 = vcmp.eq.s32.totalorder %v806, 0
      %vm839 = vcmp.eq.s32.totalorder %v807, 0
      %vm840 = vcmp.eq.s32.totalorder %v808, 0
      %vm841 = vcmp.eq.s32.totalorder %v809, 0
      %vm842 = vcmp.eq.s32.totalorder %v810, 0
      %vm843 = vcmp.eq.s32.totalorder %v811, 0
      %vm844 = vcmp.eq.s32.totalorder %v812, 0
      %vm845 = vcmp.eq.s32.totalorder %v813, 0
      %vm846 = vcmp.eq.s32.totalorder %v814, 0
      %vm847 = vcmp.eq.s32.totalorder %v815, 0
      %vm848 = vcmp.eq.s32.totalorder %v816, 0
      %vm849 = vcmp.eq.s32.totalorder %v817, 0
      %vm850 = vcmp.eq.s32.totalorder %v818, 0
      %vm851 = vcmp.eq.s32.totalorder %v819, 0
      %vm852 = vcmp.eq.s32.totalorder %v820, 0
      %vm853 = vcmp.eq.s32.totalorder %v821, 0
      %vm854 = vcmp.eq.s32.totalorder %v822, 0
      %vm855 = vcmp.eq.s32.totalorder %v823, 0
      %vm856 = vcmp.eq.s32.totalorder %v824, 0
      %vm857 = vcmp.eq.s32.totalorder %v825, 0
      %vm858 = vcmp.eq.s32.totalorder %v826, 0
      %vm859 = vcmp.eq.s32.totalorder %v827, 0
      %vm860 = vcmp.eq.s32.totalorder %v828, 0
      %vm861 = vcmp.eq.s32.totalorder %v829, 0
      %vm862 = vcmp.eq.s32.totalorder %v830, 0
      %vm895 = vcmask 1040384
      %v896 = vrot.slane %v382, 7
      %v897 = vrot.slane %v383, 7
      %v898 = vsel %vm895, %v896, %v897
      %v899 = vrot.slane %v384, 7
      %v900 = vsel %vm895, %v897, %v899
      %v901 = vrot.slane %v385, 7
      %v902 = vsel %vm895, %v899, %v901
      %v903 = vrot.slane %v386, 7
      %v904 = vsel %vm895, %v901, %v903
      %v905 = vrot.slane %v387, 7
      %v906 = vsel %vm895, %v903, %v905
      %v907 = vrot.slane %v388, 7
      %v908 = vsel %vm895, %v905, %v907
      %v909 = vrot.slane %v389, 7
      %v910 = vsel %vm895, %v907, %v909
      %v911 = vrot.slane %v390, 7
      %v912 = vsel %vm895, %v909, %v911
      %v913 = vrot.slane %v391, 7
      %v914 = vsel %vm895, %v911, %v913
      %v915 = vrot.slane %v392, 7
      %v916 = vsel %vm895, %v913, %v915
      %v917 = vrot.slane %v393, 7
      %v918 = vsel %vm895, %v915, %v917
      %v919 = vrot.slane %v394, 7
      %v920 = vsel %vm895, %v917, %v919
      %v921 = vrot.slane %v395, 7
      %v922 = vsel %vm895, %v919, %v921
      %v923 = vrot.slane %v396, 7
      %v924 = vsel %vm895, %v921, %v923
      %v925 = vrot.slane %v397, 7
      %v926 = vsel %vm895, %v923, %v925
      %v927 = vrot.slane %v398, 7
      %v928 = vsel %vm895, %v925, %v927
      %v929 = vrot.slane %v399, 7
      %v930 = vsel %vm895, %v927, %v929
      %v931 = vrot.slane %v400, 7
      %v932 = vsel %vm895, %v929, %v931
      %v933 = vrot.slane %v401, 7
      %v934 = vsel %vm895, %v931, %v933
      %v935 = vrot.slane %v402, 7
      %v936 = vsel %vm895, %v933, %v935
      %v937 = vrot.slane %v403, 7
      %v938 = vsel %vm895, %v935, %v937
      %v939 = vrot.slane %v404, 7
      %v940 = vsel %vm895, %v937, %v939
      %v941 = vrot.slane %v405, 7
      %v942 = vsel %vm895, %v939, %v941
      %v943 = vrot.slane %v406, 7
      %v944 = vsel %vm895, %v941, %v943
      %v945 = vrot.slane %v407, 7
      %v946 = vsel %vm895, %v943, %v945
      %v947 = vrot.slane %v408, 7
      %v948 = vsel %vm895, %v945, %v947
      %v949 = vrot.slane %v409, 7
      %v950 = vsel %vm895, %v947, %v949
      %v951 = vrot.slane %v410, 7
      %v952 = vsel %vm895, %v949, %v951
      %v953 = vrot.slane %v411, 7
      %v954 = vsel %vm895, %v951, %v953
      %v955 = vrot.slane %v412, 7
      %v956 = vsel %vm895, %v953, %v955
      %v957 = vrot.slane %v413, 7
      %v958 = vsel %vm895, %v955, %v957
      %v991 = vsel %vm895, 0.0, %v896
      %v992 = vsel %vm831, 0.0, %v991
      %v993 = vsel %vm832, 0.0, %v898
      %v994 = vsel %vm833, 0.0, %v900
      %v995 = vsel %vm834, 0.0, %v902
      %v996 = vsel %vm835, 0.0, %v904
      %v997 = vsel %vm836, 0.0, %v906
      %v998 = vsel %vm837, 0.0, %v908
      %v999 = vsel %vm838, 0.0, %v910
      %v1000 = vsel %vm839, 0.0, %v912
      %v1001 = vsel %vm840, 0.0, %v914
      %v1002 = vsel %vm841, 0.0, %v916
      %v1003 = vsel %vm842, 0.0, %v918
      %v1004 = vsel %vm843, 0.0, %v920
      %v1005 = vsel %vm844, 0.0, %v922
      %v1006 = vsel %vm845, 0.0, %v924
      %v1007 = vsel %vm846, 0.0, %v926
      %v1008 = vsel %vm847, 0.0, %v928
      %v1009 = vsel %vm848, 0.0, %v930
      %v1010 = vsel %vm849, 0.0, %v932
      %v1011 = vsel %vm850, 0.0, %v934
      %v1012 = vsel %vm851, 0.0, %v936
      %v1013 = vsel %vm852, 0.0, %v938
      %v1014 = vsel %vm853, 0.0, %v940
      %v1015 = vsel %vm854, 0.0, %v942
      %v1016 = vsel %vm855, 0.0, %v944
      %v1017 = vsel %vm856, 0.0, %v946
      %v1018 = vsel %vm857, 0.0, %v948
      %v1019 = vsel %vm858, 0.0, %v950
      %v1020 = vsel %vm859, 0.0, %v952
      %v1021 = vsel %vm860, 0.0, %v954
      %v1022 = vsel %vm861, 0.0, %v956
      %v1023 = vsel %vm862, 0.0, %v958
      %vm1024 = vcmp.eq.s32.totalorder %v799, 15
      %vm1025 = vcmp.eq.s32.totalorder %v800, 15
      %vm1026 = vcmp.eq.s32.totalorder %v801, 15
      %vm1027 = vcmp.eq.s32.totalorder %v802, 15
      %vm1028 = vcmp.eq.s32.totalorder %v803, 15
      %vm1029 = vcmp.eq.s32.totalorder %v804, 15
      %vm1030 = vcmp.eq.s32.totalorder %v805, 15
      %vm1031 = vcmp.eq.s32.totalorder %v806, 15
      %vm1032 = vcmp.eq.s32.totalorder %v807, 15
      %vm1033 = vcmp.eq.s32.totalorder %v808, 15
      %vm1034 = vcmp.eq.s32.totalorder %v809, 15
      %vm1035 = vcmp.eq.s32.totalorder %v810, 15
      %vm1036 = vcmp.eq.s32.totalorder %v811, 15
      %vm1037 = vcmp.eq.s32.totalorder %v812, 15
      %vm1038 = vcmp.eq.s32.totalorder %v813, 15
      %vm1039 = vcmp.eq.s32.totalorder %v814, 15
      %vm1040 = vcmp.eq.s32.totalorder %v815, 15
      %vm1041 = vcmp.eq.s32.totalorder %v816, 15
      %vm1042 = vcmp.eq.s32.totalorder %v817, 15
      %vm1043 = vcmp.eq.s32.totalorder %v818, 15
      %vm1044 = vcmp.eq.s32.totalorder %v819, 15
      %vm1045 = vcmp.eq.s32.totalorder %v820, 15
      %vm1046 = vcmp.eq.s32.totalorder %v821, 15
      %vm1047 = vcmp.eq.s32.totalorder %v822, 15
      %vm1048 = vcmp.eq.s32.totalorder %v823, 15
      %vm1049 = vcmp.eq.s32.totalorder %v824, 15
      %vm1050 = vcmp.eq.s32.totalorder %v825, 15
      %vm1051 = vcmp.eq.s32.totalorder %v826, 15
      %vm1052 = vcmp.eq.s32.totalorder %v827, 15
      %vm1053 = vcmp.eq.s32.totalorder %v828, 15
      %vm1054 = vcmp.eq.s32.totalorder %v829, 15
      %vm1055 = vcmp.eq.s32.totalorder %v830, 15
      %vm1056 = vcmask 1046528
      %v1057 = vrot.slane %v382, 1
      %v1058 = vrot.slane %v383, 1
      %v1059 = vsel %vm1056, %v1057, %v1058
      %v1060 = vrot.slane %v384, 1
      %v1061 = vsel %vm1056, %v1058, %v1060
      %v1062 = vrot.slane %v385, 1
      %v1063 = vsel %vm1056, %v1060, %v1062
      %v1064 = vrot.slane %v386, 1
      %v1065 = vsel %vm1056, %v1062, %v1064
      %v1066 = vrot.slane %v387, 1
      %v1067 = vsel %vm1056, %v1064, %v1066
      %v1068 = vrot.slane %v388, 1
      %v1069 = vsel %vm1056, %v1066, %v1068
      %v1070 = vrot.slane %v389, 1
      %v1071 = vsel %vm1056, %v1068, %v1070
      %v1072 = vrot.slane %v390, 1
      %v1073 = vsel %vm1056, %v1070, %v1072
      %v1074 = vrot.slane %v391, 1
      %v1075 = vsel %vm1056, %v1072, %v1074
      %v1076 = vrot.slane %v392, 1
      %v1077 = vsel %vm1056, %v1074, %v1076
      %v1078 = vrot.slane %v393, 1
      %v1079 = vsel %vm1056, %v1076, %v1078
      %v1080 = vrot.slane %v394, 1
      %v1081 = vsel %vm1056, %v1078, %v1080
      %v1082 = vrot.slane %v395, 1
      %v1083 = vsel %vm1056, %v1080, %v1082
      %v1084 = vrot.slane %v396, 1
      %v1085 = vsel %vm1056, %v1082, %v1084
      %v1086 = vrot.slane %v397, 1
      %v1087 = vsel %vm1056, %v1084, %v1086
      %v1088 = vrot.slane %v398, 1
      %v1089 = vsel %vm1056, %v1086, %v1088
      %v1090 = vrot.slane %v399, 1
      %v1091 = vsel %vm1056, %v1088, %v1090
      %v1092 = vrot.slane %v400, 1
      %v1093 = vsel %vm1056, %v1090, %v1092
      %v1094 = vrot.slane %v401, 1
      %v1095 = vsel %vm1056, %v1092, %v1094
      %v1096 = vrot.slane %v402, 1
      %v1097 = vsel %vm1056, %v1094, %v1096
      %v1098 = vrot.slane %v403, 1
      %v1099 = vsel %vm1056, %v1096, %v1098
      %v1100 = vrot.slane %v404, 1
      %v1101 = vsel %vm1056, %v1098, %v1100
      %v1102 = vrot.slane %v405, 1
      %v1103 = vsel %vm1056, %v1100, %v1102
      %v1104 = vrot.slane %v406, 1
      %v1105 = vsel %vm1056, %v1102, %v1104
      %v1106 = vrot.slane %v407, 1
      %v1107 = vsel %vm1056, %v1104, %v1106
      %v1108 = vrot.slane %v408, 1
      %v1109 = vsel %vm1056, %v1106, %v1108
      %v1110 = vrot.slane %v409, 1
      %v1111 = vsel %vm1056, %v1108, %v1110
      %v1112 = vrot.slane %v410, 1
      %v1113 = vsel %vm1056, %v1110, %v1112
      %v1114 = vrot.slane %v411, 1
      %v1115 = vsel %vm1056, %v1112, %v1114
      %v1116 = vrot.slane %v412, 1
      %v1117 = vsel %vm1056, %v1114, %v1116
      %v1118 = vrot.slane %v413, 1
      %v1119 = vsel %vm1056, %v1116, %v1118
      %v1152 = vsel %vm1056, %v1118, 0.0
      %v1153 = vsel %vm1024, 0.0, %v1059
      %v1154 = vsel %vm1025, 0.0, %v1061
      %v1155 = vsel %vm1026, 0.0, %v1063
      %v1156 = vsel %vm1027, 0.0, %v1065
      %v1157 = vsel %vm1028, 0.0, %v1067
      %v1158 = vsel %vm1029, 0.0, %v1069
      %v1159 = vsel %vm1030, 0.0, %v1071
      %v1160 = vsel %vm1031, 0.0, %v1073
      %v1161 = vsel %vm1032, 0.0, %v1075
      %v1162 = vsel %vm1033, 0.0, %v1077
      %v1163 = vsel %vm1034, 0.0, %v1079
      %v1164 = vsel %vm1035, 0.0, %v1081
      %v1165 = vsel %vm1036, 0.0, %v1083
      %v1166 = vsel %vm1037, 0.0, %v1085
      %v1167 = vsel %vm1038, 0.0, %v1087
      %v1168 = vsel %vm1039, 0.0, %v1089
      %v1169 = vsel %vm1040, 0.0, %v1091
      %v1170 = vsel %vm1041, 0.0, %v1093
      %v1171 = vsel %vm1042, 0.0, %v1095
      %v1172 = vsel %vm1043, 0.0, %v1097
      %v1173 = vsel %vm1044, 0.0, %v1099
      %v1174 = vsel %vm1045, 0.0, %v1101
      %v1175 = vsel %vm1046, 0.0, %v1103
      %v1176 = vsel %vm1047, 0.0, %v1105
      %v1177 = vsel %vm1048, 0.0, %v1107
      %v1178 = vsel %vm1049, 0.0, %v1109
      %v1179 = vsel %vm1050, 0.0, %v1111
      %v1180 = vsel %vm1051, 0.0, %v1113
      %v1181 = vsel %vm1052, 0.0, %v1115
      %v1182 = vsel %vm1053, 0.0, %v1117
      %v1183 = vsel %vm1054, 0.0, %v1119
      %v1184 = vsel %vm1055, 0.0, %v1152
      %1185 = vst [vmem:[#allocation2] sm:$0xff] 0
      %1186 = vst [vmem:[#allocation2 + $0x8] sm:$0xff] 0
      %1187 = vst [vmem:[#allocation2 + $0x10] sm:$0xff] 0
      %1188 = vst [vmem:[#allocation2 + $0x198] sm:$0xff] 0
      %1189 = vst [vmem:[#allocation2 + $0x1a0] sm:$0xff] 0
      %1190 = vst [vmem:[#allocation2 + $0x1a8] sm:$0xff] 0
      %v1191 = vpack.c.bf16 %v993, %v992
      %v1192 = vpack.c.bf16 %v995, %v994
      %v1193 = vpack.c.bf16 %v997, %v996
      %v1194 = vpack.c.bf16 %v999, %v998
      %v1195 = vpack.c.bf16 %v1001, %v1000
      %v1196 = vpack.c.bf16 %v1003, %v1002
      %v1197 = vpack.c.bf16 %v1005, %v1004
      %v1198 = vpack.c.bf16 %v1007, %v1006
      %v1199 = vpack.c.bf16 %v1009, %v1008
      %v1200 = vpack.c.bf16 %v1011, %v1010
      %v1201 = vpack.c.bf16 %v1013, %v1012
      %v1202 = vpack.c.bf16 %v1015, %v1014
      %v1203 = vpack.c.bf16 %v1017, %v1016
      %v1204 = vpack.c.bf16 %v1019, %v1018
      %v1205 = vpack.c.bf16 %v1021, %v1020
      %v1206 = vpack.c.bf16 %v1023, %v1022
      %1207 = vst [vmem:[#allocation2 + $0x18] sm:$0xff] %v1191
      %1208 = vst [vmem:[#allocation2 + $0x30] sm:$0xff] %v1192
      %1209 = vst [vmem:[#allocation2 + $0x48] sm:$0xff] %v1193
      %1210 = vst [vmem:[#allocation2 + $0x60] sm:$0xff] %v1194
      %1211 = vst [vmem:[#allocation2 + $0x78] sm:$0xff] %v1195
      %1212 = vst [vmem:[#allocation2 + $0x90] sm:$0xff] %v1196
      %1213 = vst [vmem:[#allocation2 + $0xa8] sm:$0xff] %v1197
      %1214 = vst [vmem:[#allocation2 + $0xc0] sm:$0xff] %v1198
      %1215 = vst [vmem:[#allocation2 + $0xd8] sm:$0xff] %v1199
      %1216 = vst [vmem:[#allocation2 + $0xf0] sm:$0xff] %v1200
      %1217 = vst [vmem:[#allocation2 + $0x108] sm:$0xff] %v1201
      %1218 = vst [vmem:[#allocation2 + $0x120] sm:$0xff] %v1202
      %1219 = vst [vmem:[#allocation2 + $0x138] sm:$0xff] %v1203
      %1220 = vst [vmem:[#allocation2 + $0x150] sm:$0xff] %v1204
      %1221 = vst [vmem:[#allocation2 + $0x168] sm:$0xff] %v1205
      %1222 = vst [vmem:[#allocation2 + $0x180] sm:$0xff] %v1206
      %v1223 = vpack.c.bf16 %v383, %v382
      %v1224 = vpack.c.bf16 %v385, %v384
      %v1225 = vpack.c.bf16 %v387, %v386
      %v1226 = vpack.c.bf16 %v389, %v388
      %v1227 = vpack.c.bf16 %v391, %v390
      %v1228 = vpack.c.bf16 %v393, %v392
      %v1229 = vpack.c.bf16 %v395, %v394
      %v1230 = vpack.c.bf16 %v397, %v396
      %v1231 = vpack.c.bf16 %v399, %v398
      %v1232 = vpack.c.bf16 %v401, %v400
      %v1233 = vpack.c.bf16 %v403, %v402
      %v1234 = vpack.c.bf16 %v405, %v404
      %v1235 = vpack.c.bf16 %v407, %v406
      %v1236 = vpack.c.bf16 %v409, %v408
      %v1237 = vpack.c.bf16 %v411, %v410
      %v1238 = vpack.c.bf16 %v413, %v412
      %1239 = vst [vmem:[#allocation2 + $0x20] sm:$0xff] %v1223
      %1240 = vst [vmem:[#allocation2 + $0x38] sm:$0xff] %v1224
      %1241 = vst [vmem:[#allocation2 + $0x50] sm:$0xff] %v1225
      %1242 = vst [vmem:[#allocation2 + $0x68] sm:$0xff] %v1226
      %1243 = vst [vmem:[#allocation2 + $0x80] sm:$0xff] %v1227
      %1244 = vst [vmem:[#allocation2 + $0x98] sm:$0xff] %v1228
      %1245 = vst [vmem:[#allocation2 + $0xb0] sm:$0xff] %v1229
      %1246 = vst [vmem:[#allocation2 + $0xc8] sm:$0xff] %v1230
      %1247 = vst [vmem:[#allocation2 + $0xe0] sm:$0xff] %v1231
      %1248 = vst [vmem:[#allocation2 + $0xf8] sm:$0xff] %v1232
      %1249 = vst [vmem:[#allocation2 + $0x110] sm:$0xff] %v1233
      %1250 = vst [vmem:[#allocation2 + $0x128] sm:$0xff] %v1234
      %1251 = vst [vmem:[#allocation2 + $0x140] sm:$0xff] %v1235
      %1252 = vst [vmem:[#allocation2 + $0x158] sm:$0xff] %v1236
      %1253 = vst [vmem:[#allocation2 + $0x170] sm:$0xff] %v1237
      %1254 = vst [vmem:[#allocation2 + $0x188] sm:$0xff] %v1238
      %v1255 = vpack.c.bf16 %v1154, %v1153
      %v1256 = vpack.c.bf16 %v1156, %v1155
      %v1257 = vpack.c.bf16 %v1158, %v1157
      %v1258 = vpack.c.bf16 %v1160, %v1159
      %v1259 = vpack.c.bf16 %v1162, %v1161
      %v1260 = vpack.c.bf16 %v1164, %v1163
      %v1261 = vpack.c.bf16 %v1166, %v1165
      %v1262 = vpack.c.bf16 %v1168, %v1167
      %v1263 = vpack.c.bf16 %v1170, %v1169
      %v1264 = vpack.c.bf16 %v1172, %v1171
      %v1265 = vpack.c.bf16 %v1174, %v1173
      %v1266 = vpack.c.bf16 %v1176, %v1175
      %v1267 = vpack.c.bf16 %v1178, %v1177
      %v1268 = vpack.c.bf16 %v1180, %v1179
      %v1269 = vpack.c.bf16 %v1182, %v1181
      %v1270 = vpack.c.bf16 %v1184, %v1183
      %1271 = vst [vmem:[#allocation2 + $0x28] sm:$0xff] %v1255
      %1272 = vst [vmem:[#allocation2 + $0x40] sm:$0xff] %v1256
      %1273 = vst [vmem:[#allocation2 + $0x58] sm:$0xff] %v1257
      %1274 = vst [vmem:[#allocation2 + $0x70] sm:$0xff] %v1258
      %1275 = vst [vmem:[#allocation2 + $0x88] sm:$0xff] %v1259
      %1276 = vst [vmem:[#allocation2 + $0xa0] sm:$0xff] %v1260
      %1277 = vst [vmem:[#allocation2 + $0xb8] sm:$0xff] %v1261
      %1278 = vst [vmem:[#allocation2 + $0xd0] sm:$0xff] %v1262
      %1279 = vst [vmem:[#allocation2 + $0xe8] sm:$0xff] %v1263
      %1280 = vst [vmem:[#allocation2 + $0x100] sm:$0xff] %v1264
      %1281 = vst [vmem:[#allocation2 + $0x118] sm:$0xff] %v1265
      %1282 = vst [vmem:[#allocation2 + $0x130] sm:$0xff] %v1266
      %1283 = vst [vmem:[#allocation2 + $0x148] sm:$0xff] %v1267
      %1284 = vst [vmem:[#allocation2 + $0x160] sm:$0xff] %v1268
      %1285 = vst [vmem:[#allocation2 + $0x178] sm:$0xff] %v1269
      %1286 = vst [vmem:[#allocation2 + $0x190] sm:$0xff] %v1270
      %v1287 = vld [vmem:[#allocation2] sm:$0xff]
      %v1288 = vld [vmem:[#allocation2 + $0x8] sm:$0xff]
      %v1289 = vld [vmem:[#allocation2 + $0x10] sm:$0xff]
      %v1290 = vld [vmem:[#allocation2 + $0x18] sm:$0xff]
      %v1291 = vld [vmem:[#allocation2 + $0x20] sm:$0xff]
      %v1292 = vld [vmem:[#allocation2 + $0x28] sm:$0xff]
      %v1293 = vld [vmem:[#allocation2 + $0x30] sm:$0xff]
      %v1294 = vld [vmem:[#allocation2 + $0x38] sm:$0xff]
      %v1295 = vld [vmem:[#allocation2 + $0x40] sm:$0xff]
      %v1296 = vld [vmem:[#allocation2 + $0x48] sm:$0xff]
      %v1297 = vld [vmem:[#allocation2 + $0x50] sm:$0xff]
      %v1298 = vld [vmem:[#allocation2 + $0x58] sm:$0xff]
      %v1299 = vld [vmem:[#allocation2 + $0x60] sm:$0xff]
      %v1300 = vld [vmem:[#allocation2 + $0x68] sm:$0xff]
      %v1301 = vld [vmem:[#allocation2 + $0x70] sm:$0xff]
      %v1302 = vld [vmem:[#allocation2 + $0x78] sm:$0xff]
      %v1303 = vld [vmem:[#allocation2 + $0x80] sm:$0xff]
      %v1304 = vld [vmem:[#allocation2 + $0x88] sm:$0xff]
      %v1305 = vld [vmem:[#allocation2 + $0x90] sm:$0xff]
      %v1306 = vld [vmem:[#allocation2 + $0x98] sm:$0xff]
      %v1307 = vld [vmem:[#allocation2 + $0xa0] sm:$0xff]
      %v1308 = vld [vmem:[#allocation2 + $0xa8] sm:$0xff]
      %v1309 = vld [vmem:[#allocation2 + $0xb0] sm:$0xff]
      %v1310 = vld [vmem:[#allocation2 + $0xb8] sm:$0xff]
      %v1311 = vld [vmem:[#allocation2 + $0xc0] sm:$0xff]
      %v1312 = vld [vmem:[#allocation2 + $0xc8] sm:$0xff]
      %v1313 = vld [vmem:[#allocation2 + $0xd0] sm:$0xff]
      %v1314 = vld [vmem:[#allocation2 + $0xd8] sm:$0xff]
      %v1315 = vld [vmem:[#allocation2 + $0xe0] sm:$0xff]
      %v1316 = vld [vmem:[#allocation2 + $0xe8] sm:$0xff]
      %v1317 = vld [vmem:[#allocation2 + $0xf0] sm:$0xff]
      %v1318 = vld [vmem:[#allocation2 + $0xf8] sm:$0xff]
      %v1319 = vld [vmem:[#allocation2 + $0x100] sm:$0xff]
      %v1320 = vld [vmem:[#allocation2 + $0x108] sm:$0xff]
      %v1321 = vld [vmem:[#allocation2 + $0x110] sm:$0xff]
      %v1322 = vld [vmem:[#allocation2 + $0x118] sm:$0xff]
      %v1323 = vld [vmem:[#allocation2 + $0x120] sm:$0xff]
      %v1324 = vld [vmem:[#allocation2 + $0x128] sm:$0xff]
      %v1325 = vld [vmem:[#allocation2 + $0x130] sm:$0xff]
      %v1326 = vld [vmem:[#allocation2 + $0x138] sm:$0xff]
      %v1327 = vld [vmem:[#allocation2 + $0x140] sm:$0xff]
      %v1328 = vld [vmem:[#allocation2 + $0x148] sm:$0xff]
      %v1329 = vld [vmem:[#allocation2 + $0x150] sm:$0xff]
      %v1330 = vld [vmem:[#allocation2 + $0x158] sm:$0xff]
      %v1331 = vld [vmem:[#allocation2 + $0x160] sm:$0xff]
      %v1332 = vld [vmem:[#allocation2 + $0x168] sm:$0xff]
      %v1333 = vld [vmem:[#allocation2 + $0x170] sm:$0xff]
      %v1334 = vld [vmem:[#allocation2 + $0x178] sm:$0xff]
      %v1335 = vld [vmem:[%s3] sm:$0xf]
      %v1336 = vld [vmem:[%s3 + $0x4] sm:$0xf]
      %v1337 = vld [vmem:[%s3 + $0x8] sm:$0xf]
      %v1338 = vld [vmem:[%s3 + $0xc] sm:$0xf]
      %v1339 = vld [vmem:[%s3 + $0x10] sm:$0xf]
      %v1340 = vld [vmem:[%s3 + $0x14] sm:$0xf]
      %v1341 = vld [vmem:[%s3 + $0x18] sm:$0xf]
      %v1342 = vld [vmem:[%s3 + $0x1c] sm:$0xf]
      %v1343 = vld [vmem:[%s3 + $0x20] sm:$0xf]
      %v1344 = vld [vmem:[%s3 + $0x24] sm:$0xf]
      %v1345 = vld [vmem:[%s3 + $0x28] sm:$0xf]
      %v1346 = vld [vmem:[%s3 + $0x2c] sm:$0xf]
      %v1347 = vld [vmem:[%s3 + $0x30] sm:$0xf]
      %v1348 = vld [vmem:[%s3 + $0x34] sm:$0xf]
      %v1349 = vld [vmem:[%s3 + $0x38] sm:$0xf]
      %v1350 = vld [vmem:[%s3 + $0x3c] sm:$0xf]
      %v1351 = vld [vmem:[%s3 + $0x40] sm:$0xf]
      %v1352 = vld [vmem:[%s3 + $0x44] sm:$0xf]
      %v1353 = vld [vmem:[%s3 + $0x48] sm:$0xf]
      %v1354 = vld [vmem:[%s3 + $0x4c] sm:$0xf]
      %v1355 = vld [vmem:[%s3 + $0x50] sm:$0xf]
      %v1356 = vld [vmem:[%s3 + $0x54] sm:$0xf]
      %v1357 = vld [vmem:[%s3 + $0x58] sm:$0xf]
      %v1358 = vld [vmem:[%s3 + $0x5c] sm:$0xf]
      %v1359 = vld [vmem:[%s3 + $0x60] sm:$0xf]
      %v1360 = vld [vmem:[%s3 + $0x64] sm:$0xf]
      %v1361 = vld [vmem:[%s3 + $0x68] sm:$0xf]
      %v1362 = vld [vmem:[%s3 + $0x6c] sm:$0xf]
      %v1363 = vld [vmem:[%s3 + $0x70] sm:$0xf]
      %v1364 = vld [vmem:[%s3 + $0x74] sm:$0xf]
      %v1365 = vld [vmem:[%s3 + $0x78] sm:$0xf]
      %v1366 = vld [vmem:[%s3 + $0x7c] sm:$0xf]
      %v1367 = vld [vmem:[%s3 + $0x80] sm:$0xf]
      %v1368 = vld [vmem:[%s3 + $0x84] sm:$0xf]
      %v1369 = vld [vmem:[%s3 + $0x88] sm:$0xf]
      %v1370 = vld [vmem:[%s3 + $0x8c] sm:$0xf]
      %v1371 = vld [vmem:[%s3 + $0x90] sm:$0xf]
      %v1372 = vld [vmem:[%s3 + $0x94] sm:$0xf]
      %v1373 = vld [vmem:[%s3 + $0x98] sm:$0xf]
      %v1374 = vld [vmem:[%s3 + $0x9c] sm:$0xf]
      %v1375 = vld [vmem:[%s3 + $0xa0] sm:$0xf]
      %v1376 = vld [vmem:[%s3 + $0xa4] sm:$0xf]
      %v1377 = vld [vmem:[%s3 + $0xa8] sm:$0xf]
      %v1378 = vld [vmem:[%s3 + $0xac] sm:$0xf]
      %v1379 = vld [vmem:[%s3 + $0xb0] sm:$0xf]
      %v1380 = vld [vmem:[%s3 + $0xb4] sm:$0xf]
      %v1381 = vld [vmem:[%s3 + $0xb8] sm:$0xf]
      %v1382 = vld [vmem:[%s3 + $0xbc] sm:$0xf]
      %v1383 = vld [vmem:[#allocation2 + $0x180] sm:$0xff]
      %v1384 = vld [vmem:[#allocation2 + $0x188] sm:$0xff]
      %v1385 = vld [vmem:[#allocation2 + $0x190] sm:$0xff]
      %s1386 = scalar_lea.vmem %s3, 192
      %v1387 = vld [vmem:[%s1386] sm:$0xf]
      %v1388 = vld [vmem:[%s1386 + $0x4] sm:$0xf]
      %v1389 = vld [vmem:[%s1386 + $0x8] sm:$0xf]
      %v1390 = vld [vmem:[%s1386 + $0xc] sm:$0xf]
      %v1391 = vld [vmem:[%s1386 + $0x10] sm:$0xf]
      %v1392 = vld [vmem:[%s1386 + $0x14] sm:$0xf]
      %v1393 = vld [vmem:[%s1386 + $0x18] sm:$0xf]
      %v1394 = vld [vmem:[%s1386 + $0x1c] sm:$0xf]
      %v1395 = vld [vmem:[%s1386 + $0x20] sm:$0xf]
      %v1396 = vld [vmem:[%s1386 + $0x24] sm:$0xf]
      %v1397 = vld [vmem:[%s1386 + $0x28] sm:$0xf]
      %v1398 = vld [vmem:[%s1386 + $0x2c] sm:$0xf]
      %v1399 = vld [vmem:[%s1386 + $0x30] sm:$0xf]
      %v1400 = vld [vmem:[%s1386 + $0x34] sm:$0xf]
      %v1401 = vld [vmem:[%s1386 + $0x38] sm:$0xf]
      %v1402 = vld [vmem:[%s1386 + $0x3c] sm:$0xf]
      %v1403 = vld [vmem:[%s1386 + $0x40] sm:$0xf]
      %v1404 = vld [vmem:[%s1386 + $0x44] sm:$0xf]
      %v1405 = vld [vmem:[%s1386 + $0x48] sm:$0xf]
      %v1406 = vld [vmem:[%s1386 + $0x4c] sm:$0xf]
      %v1407 = vld [vmem:[%s1386 + $0x50] sm:$0xf]
      %v1408 = vld [vmem:[%s1386 + $0x54] sm:$0xf]
      %v1409 = vld [vmem:[%s1386 + $0x58] sm:$0xf]
      %v1410 = vld [vmem:[%s1386 + $0x5c] sm:$0xf]
      %v1411 = vld [vmem:[%s1386 + $0x60] sm:$0xf]
      %v1412 = vld [vmem:[%s1386 + $0x64] sm:$0xf]
      %v1413 = vld [vmem:[%s1386 + $0x68] sm:$0xf]
      %v1414 = vld [vmem:[%s1386 + $0x6c] sm:$0xf]
      %v1415 = vld [vmem:[%s1386 + $0x70] sm:$0xf]
      %v1416 = vld [vmem:[%s1386 + $0x74] sm:$0xf]
      %v1417 = vld [vmem:[%s1386 + $0x78] sm:$0xf]
      %v1418 = vld [vmem:[%s1386 + $0x7c] sm:$0xf]
      %v1419 = vld [vmem:[%s1386 + $0x80] sm:$0xf]
      %v1420 = vld [vmem:[%s1386 + $0x84] sm:$0xf]
      %v1421 = vld [vmem:[%s1386 + $0x88] sm:$0xf]
      %v1422 = vld [vmem:[%s1386 + $0x8c] sm:$0xf]
      %v1423 = vld [vmem:[%s1386 + $0x90] sm:$0xf]
      %v1424 = vld [vmem:[%s1386 + $0x94] sm:$0xf]
      %v1425 = vld [vmem:[%s1386 + $0x98] sm:$0xf]
      %v1426 = vld [vmem:[%s1386 + $0x9c] sm:$0xf]
      %v1427 = vld [vmem:[%s1386 + $0xa0] sm:$0xf]
      %v1428 = vld [vmem:[%s1386 + $0xa4] sm:$0xf]
      %v1429 = vld [vmem:[%s1386 + $0xa8] sm:$0xf]
      %v1430 = vld [vmem:[%s1386 + $0xac] sm:$0xf]
      %v1431 = vld [vmem:[%s1386 + $0xb0] sm:$0xf]
      %v1432 = vld [vmem:[%s1386 + $0xb4] sm:$0xf]
      %v1433 = vld [vmem:[%s1386 + $0xb8] sm:$0xf]
      %v1434 = vld [vmem:[%s1386 + $0xbc] sm:$0xf]
      %v1483 = vunpack.c.l.b16 %v1387
      %v1484 = vunpack.c.l.b16 %v1388
      %v1485 = vunpack.c.l.b16 %v1389
      %v1486 = vunpack.c.l.b16 %v1390
      %v1487 = vunpack.c.l.b16 %v1391
      %v1488 = vunpack.c.l.b16 %v1392
      %v1489 = vunpack.c.l.b16 %v1393
      %v1490 = vunpack.c.l.b16 %v1394
      %v1491 = vunpack.c.l.b16 %v1395
      %v1492 = vunpack.c.l.b16 %v1396
      %v1493 = vunpack.c.l.b16 %v1397
      %v1494 = vunpack.c.l.b16 %v1398
      %v1495 = vunpack.c.l.b16 %v1399
      %v1496 = vunpack.c.l.b16 %v1400
      %v1497 = vunpack.c.l.b16 %v1401
      %v1498 = vunpack.c.l.b16 %v1402
      %v1499 = vunpack.c.l.b16 %v1403
      %v1500 = vunpack.c.l.b16 %v1404
      %v1501 = vunpack.c.l.b16 %v1405
      %v1502 = vunpack.c.l.b16 %v1406
      %v1503 = vunpack.c.l.b16 %v1407
      %v1504 = vunpack.c.l.b16 %v1408
      %v1505 = vunpack.c.l.b16 %v1409
      %v1506 = vunpack.c.l.b16 %v1410
      %v1507 = vunpack.c.l.b16 %v1411
      %v1508 = vunpack.c.l.b16 %v1412
      %v1509 = vunpack.c.l.b16 %v1413
      %v1510 = vunpack.c.l.b16 %v1414
      %v1511 = vunpack.c.l.b16 %v1415
      %v1512 = vunpack.c.l.b16 %v1416
      %v1513 = vunpack.c.l.b16 %v1417
      %v1514 = vunpack.c.l.b16 %v1418
      %v1515 = vunpack.c.l.b16 %v1419
      %v1516 = vunpack.c.l.b16 %v1420
      %v1517 = vunpack.c.l.b16 %v1421
      %v1518 = vunpack.c.l.b16 %v1422
      %v1519 = vunpack.c.l.b16 %v1423
      %v1520 = vunpack.c.l.b16 %v1424
      %v1521 = vunpack.c.l.b16 %v1425
      %v1522 = vunpack.c.l.b16 %v1426
      %v1523 = vunpack.c.l.b16 %v1427
      %v1524 = vunpack.c.l.b16 %v1428
      %v1525 = vunpack.c.l.b16 %v1429
      %v1526 = vunpack.c.l.b16 %v1430
      %v1527 = vunpack.c.l.b16 %v1431
      %v1528 = vunpack.c.l.b16 %v1432
      %v1529 = vunpack.c.l.b16 %v1433
      %v1530 = vunpack.c.l.b16 %v1434
      %v1531 = vpack.c.b16 %v1484, %v1483
      %v1532 = vpack.c.b16 %v1486, %v1485
      %v1533 = vpack.c.b16 %v1488, %v1487
      %v1534 = vpack.c.b16 %v1490, %v1489
      %v1535 = vpack.c.b16 %v1492, %v1491
      %v1536 = vpack.c.b16 %v1494, %v1493
      %v1537 = vpack.c.b16 %v1496, %v1495
      %v1538 = vpack.c.b16 %v1498, %v1497
      %v1539 = vpack.c.b16 %v1500, %v1499
      %v1540 = vpack.c.b16 %v1502, %v1501
      %v1541 = vpack.c.b16 %v1504, %v1503
      %v1542 = vpack.c.b16 %v1506, %v1505
      %v1543 = vpack.c.b16 %v1508, %v1507
      %v1544 = vpack.c.b16 %v1510, %v1509
      %v1545 = vpack.c.b16 %v1512, %v1511
      %v1546 = vpack.c.b16 %v1514, %v1513
      %v1547 = vpack.c.b16 %v1516, %v1515
      %v1548 = vpack.c.b16 %v1518, %v1517
      %v1549 = vpack.c.b16 %v1520, %v1519
      %v1550 = vpack.c.b16 %v1522, %v1521
      %v1551 = vpack.c.b16 %v1524, %v1523
      %v1552 = vpack.c.b16 %v1526, %v1525
      %v1553 = vpack.c.b16 %v1528, %v1527
      %v1554 = vpack.c.b16 %v1530, %v1529
      %1579 = vmatprep.subr.bf16.mxu0 0
      %1580 = vmatpush1.bf16.msra.mxu0 %v1531
      %1581 = vmatprep.subr.bf16.mxu0 0
      %1582 = vmatpush1.bf16.msra.mxu0 %v1532
      %1583 = vmatprep.subr.bf16.mxu0 0
      %1584 = vmatpush1.bf16.msra.mxu0 %v1533
      %1585 = vmatprep.subr.bf16.mxu0 0
      %1586 = vmatpush1.bf16.msra.mxu0 %v1534
      %1587 = vmatprep.subr.bf16.mxu0 0
      %1588 = vmatpush1.bf16.msra.mxu0 %v1535
      %1589 = vmatprep.subr.bf16.mxu0 0
      %1590 = vmatpush1.bf16.msra.mxu0 %v1536
      %1591 = vmatprep.subr.bf16.mxu0 0
      %1592 = vmatpush1.bf16.msra.mxu0 %v1537
      %1593 = vmatprep.subr.bf16.mxu0 0
      %1594 = vmatpush1.bf16.msra.mxu0 %v1538
      %1595 = vmatprep.subr.bf16.mxu0 0
      %1596 = vmatpush1.bf16.msra.mxu0 %v1539
      %1597 = vmatprep.subr.bf16.mxu0 0
      %1598 = vmatpush1.bf16.msra.mxu0 %v1540
      %1599 = vmatprep.subr.bf16.mxu0 0
      %1600 = vmatpush1.bf16.msra.mxu0 %v1541
      %1601 = vmatprep.subr.bf16.mxu0 0
      %1602 = vmatpush1.bf16.msra.mxu0 %v1542
      %1603 = vmatprep.subr.bf16.mxu0 0
      %1604 = vmatpush1.bf16.msra.mxu0 %v1543
      %1605 = vmatprep.subr.bf16.mxu0 0
      %1606 = vmatpush1.bf16.msra.mxu0 %v1544
      %1607 = vmatprep.subr.bf16.mxu0 0
      %1608 = vmatpush1.bf16.msra.mxu0 %v1545
      %1609 = vmatprep.subr.bf16.mxu0 0
      %1610 = vmatpush1.bf16.msra.mxu0 %v1546
      %1611 = vmatprep.mubr.bf16.mxu0 %v1291
      %1612 = vmatmul.mubr.bf16.gmra.mrb[0].mxu0 %v1290
      %v1613 = vpop.f32.mrb[0].mxu0
      %v1614 = vadd.f32 0.0, %v1613
      %v1615 = vpop.f32.mrb[0].mxu0
      %v1616 = vpop.f32.mrb[0].mxu0
      %v1617 = vadd.f32 0.0, %v1616
      %v1618 = vpop.f32.mrb[0].mxu0
      %1619 = vmatprep.mubr.bf16.mxu0 %v1294
      %1620 = vmatmul.mubr.bf16.gmra.mrb[0].mxu0 %v1293
      %v1621 = vpop.f32.mrb[0].mxu0
      %v1622 = vadd.f32 0.0, %v1621
      %v1623 = vpop.f32.mrb[0].mxu0
      %v1624 = vpop.f32.mrb[0].mxu0
      %v1625 = vadd.f32 0.0, %v1624
      %v1626 = vpop.f32.mrb[0].mxu0
      %1627 = vmatprep.mubr.bf16.mxu0 %v1297
      %1628 = vmatmul.mubr.bf16.gmra.mrb[0].mxu0 %v1296
      %v1629 = vpop.f32.mrb[0].mxu0
      %v1630 = vadd.f32 0.0, %v1629
      %v1631 = vpop.f32.mrb[0].mxu0
      %v1632 = vpop.f32.mrb[0].mxu0
      %v1633 = vadd.f32 0.0, %v1632
      %v1634 = vpop.f32.mrb[0].mxu0
      %1635 = vmatprep.mubr.bf16.mxu0 %v1300
      %1636 = vmatmul.mubr.bf16.gmra.mrb[0].mxu0 %v1299
      %v1637 = vpop.f32.mrb[0].mxu0
      %v1638 = vadd.f32 0.0, %v1637
      %v1639 = vpop.f32.mrb[0].mxu0
      %v1640 = vpop.f32.mrb[0].mxu0
      %v1641 = vadd.f32 0.0, %v1640
      %v1642 = vpop.f32.mrb[0].mxu0
      %1643 = vmatprep.mubr.bf16.mxu0 %v1303
      %1644 = vmatmul.mubr.bf16.gmra.mrb[0].mxu0 %v1302
      %v1645 = vpop.f32.mrb[0].mxu0
      %v1646 = vadd.f32 0.0, %v1645
      %v1647 = vpop.f32.mrb[0].mxu0
      %v1648 = vpop.f32.mrb[0].mxu0
      %v1649 = vadd.f32 0.0, %v1648
      %v1650 = vpop.f32.mrb[0].mxu0
      %1651 = vmatprep.mubr.bf16.mxu0 %v1306
      %1652 = vmatmul.mubr.bf16.gmra.mrb[0].mxu0 %v1305
      %v1653 = vpop.f32.mrb[0].mxu0
      %v1654 = vadd.f32 0.0, %v1653
      %v1655 = vpop.f32.mrb[0].mxu0
      %v1656 = vpop.f32.mrb[0].mxu0
      %v1657 = vadd.f32 0.0, %v1656
      %v1658 = vpop.f32.mrb[0].mxu0
      %1659 = vmatprep.mubr.bf16.mxu0 %v1309
      %1660 = vmatmul.mubr.bf16.gmra.mrb[0].mxu0 %v1308
      %v1661 = vpop.f32.mrb[0].mxu0
      %v1662 = vadd.f32 0.0, %v1661
      %v1663 = vpop.f32.mrb[0].mxu0
      %v1664 = vpop.f32.mrb[0].mxu0
      %v1665 = vadd.f32 0.0, %v1664
      %v1666 = vpop.f32.mrb[0].mxu0
      %1667 = vmatprep.mubr.bf16.mxu0 %v1312
      %1668 = vmatmul.mubr.bf16.gmra.mrb[0].mxu0 %v1311
      %v1669 = vpop.f32.mrb[0].mxu0
      %v1670 = vadd.f32 0.0, %v1669
      %v1671 = vpop.f32.mrb[0].mxu0
      %v1672 = vpop.f32.mrb[0].mxu0
      %v1673 = vadd.f32 0.0, %v1672
      %v1674 = vpop.f32.mrb[0].mxu0
      %1675 = vmatprep.mubr.bf16.mxu0 %v1315
      %1676 = vmatmul.mubr.bf16.gmra.mrb[0].mxu0 %v1314
      %v1677 = vpop.f32.mrb[0].mxu0
      %v1678 = vadd.f32 0.0, %v1677
      %v1679 = vpop.f32.mrb[0].mxu0
      %v1680 = vpop.f32.mrb[0].mxu0
      %v1681 = vadd.f32 0.0, %v1680
      %v1682 = vpop.f32.mrb[0].mxu0
      %1683 = vmatprep.mubr.bf16.mxu0 %v1318
      %1684 = vmatmul.mubr.bf16.gmra.mrb[0].mxu0 %v1317
      %v1685 = vpop.f32.mrb[0].mxu0
      %v1686 = vadd.f32 0.0, %v1685
      %v1687 = vpop.f32.mrb[0].mxu0
      %v1688 = vpop.f32.mrb[0].mxu0
      %v1689 = vadd.f32 0.0, %v1688
      %v1690 = vpop.f32.mrb[0].mxu0
      %1691 = vmatprep.mubr.bf16.mxu0 %v1321
      %1692 = vmatmul.mubr.bf16.gmra.mrb[0].mxu0 %v1320
      %v1693 = vpop.f32.mrb[0].mxu0
      %v1694 = vadd.f32 0.0, %v1693
      %v1695 = vpop.f32.mrb[0].mxu0
      %v1696 = vpop.f32.mrb[0].mxu0
      %v1697 = vadd.f32 0.0, %v1696
      %v1698 = vpop.f32.mrb[0].mxu0
      %1699 = vmatprep.mubr.bf16.mxu0 %v1324
      %1700 = vmatmul.mubr.bf16.gmra.mrb[0].mxu0 %v1323
      %v1701 = vpop.f32.mrb[0].mxu0
      %v1702 = vadd.f32 0.0, %v1701
      %v1703 = vpop.f32.mrb[0].mxu0
      %v1704 = vpop.f32.mrb[0].mxu0
      %v1705 = vadd.f32 0.0, %v1704
      %v1706 = vpop.f32.mrb[0].mxu0
      %1707 = vmatprep.mubr.bf16.mxu0 %v1327
      %1708 = vmatmul.mubr.bf16.gmra.mrb[0].mxu0 %v1326
      %v1709 = vpop.f32.mrb[0].mxu0
      %v1710 = vadd.f32 0.0, %v1709
      %v1711 = vpop.f32.mrb[0].mxu0
      %v1712 = vpop.f32.mrb[0].mxu0
      %v1713 = vadd.f32 0.0, %v1712
      %v1714 = vpop.f32.mrb[0].mxu0
      %1715 = vmatprep.mubr.bf16.mxu0 %v1330
      %1716 = vmatmul.mubr.bf16.gmra.mrb[0].mxu0 %v1329
      %v1717 = vpop.f32.mrb[0].mxu0
      %v1718 = vadd.f32 0.0, %v1717
      %v1719 = vpop.f32.mrb[0].mxu0
      %v1720 = vpop.f32.mrb[0].mxu0
      %v1721 = vadd.f32 0.0, %v1720
      %v1722 = vpop.f32.mrb[0].mxu0
      %1723 = vmatprep.mubr.bf16.mxu0 %v1333
      %1724 = vmatmul.mubr.bf16.gmra.mrb[0].mxu0 %v1332
      %v1725 = vpop.f32.mrb[0].mxu0
      %v1726 = vadd.f32 0.0, %v1725
      %v1727 = vpop.f32.mrb[0].mxu0
      %v1728 = vpop.f32.mrb[0].mxu0
      %v1729 = vadd.f32 0.0, %v1728
      %v1730 = vpop.f32.mrb[0].mxu0
      %1731 = vmatprep.mubr.bf16.mxu0 %v1384
      %1732 = vmatmul.mubr.bf16.gmra.mrb[0].mxu0 %v1383
      %v1733 = vpop.f32.mrb[0].mxu0
      %v1734 = vadd.f32 0.0, %v1733
      %v1735 = vpop.f32.mrb[0].mxu0
      %v1736 = vpop.f32.mrb[0].mxu0
      %v1737 = vadd.f32 0.0, %v1736
      %v1738 = vpop.f32.mrb[0].mxu0
      %1739 = vdwg.mxu0
      %1740 = vmatprep.subr.bf16.mxu0 0
      %1741 = vmatpush1.bf16.msra.mxu0 %v1547
      %1742 = vmatprep.subr.bf16.mxu0 0
      %1743 = vmatpush1.bf16.msra.mxu0 %v1548
      %1744 = vmatprep.subr.bf16.mxu0 0
      %1745 = vmatpush1.bf16.msra.mxu0 %v1549
      %1746 = vmatprep.subr.bf16.mxu0 0
      %1747 = vmatpush1.bf16.msra.mxu0 %v1550
      %1748 = vmatprep.subr.bf16.mxu0 0
      %1749 = vmatpush1.bf16.msra.mxu0 %v1551
      %1750 = vmatprep.subr.bf16.mxu0 0
      %1751 = vmatpush1.bf16.msra.mxu0 %v1552
      %1752 = vmatprep.subr.bf16.mxu0 0
      %1753 = vmatpush1.bf16.msra.mxu0 %v1553
      %1754 = vmatprep.subr.bf16.mxu0 0
      %1755 = vmatpush1.bf16.msra.mxu0 %v1554
      %1756 = vmatprep.subr.bf16.mxu0 0
      %1757 = vmatpush1.bf16.msra.mxu0 0
      %1758 = vmatprep.subr.bf16.mxu0 0
      %1759 = vmatpush1.bf16.msra.mxu0 0
      %1760 = vmatprep.subr.bf16.mxu0 0
      %1761 = vmatpush1.bf16.msra.mxu0 0
      %1762 = vmatprep.subr.bf16.mxu0 0
      %1763 = vmatpush1.bf16.msra.mxu0 0
      %1764 = vmatprep.subr.bf16.mxu0 0
      %1765 = vmatpush1.bf16.msra.mxu0 0
      %1766 = vmatprep.subr.bf16.mxu0 0
      %1767 = vmatpush1.bf16.msra.mxu0 0
      %1768 = vmatprep.subr.bf16.mxu0 0
      %1769 = vmatpush1.bf16.msra.mxu0 0
      %1770 = vmatprep.subr.bf16.mxu0 0
      %1771 = vmatpush1.bf16.msra.mxu0 0
      %1772 = vmatprep.mubr.bf16.mxu0 0
      %1773 = vmatmul.mubr.bf16.gmra.mrb[0].mxu0 %v1292
      %v1774 = vpop.f32.mrb[0].mxu0
      %v1775 = vadd.f32 %v1614, %v1774
      %v1776 = vpop.f32.mrb[0].mxu0
      %v1777 = vpop.f32.mrb[0].mxu0
      %v1778 = vadd.f32 %v1617, %v1777
      %v1779 = vpop.f32.mrb[0].mxu0
      %1780 = vmatprep.mubr.bf16.mxu0 0
      %1781 = vmatmul.mubr.bf16.gmra.mrb[0].mxu0 %v1295
      %v1782 = vpop.f32.mrb[0].mxu0
      %v1783 = vadd.f32 %v1622, %v1782
      %v1784 = vpop.f32.mrb[0].mxu0
      %v1785 = vpop.f32.mrb[0].mxu0
      %v1786 = vadd.f32 %v1625, %v1785
      %v1787 = vpop.f32.mrb[0].mxu0
      %1788 = vmatprep.mubr.bf16.mxu0 0
      %1789 = vmatmul.mubr.bf16.gmra.mrb[0].mxu0 %v1298
      %v1790 = vpop.f32.mrb[0].mxu0
      %v1791 = vadd.f32 %v1630, %v1790
      %v1792 = vpop.f32.mrb[0].mxu0
      %v1793 = vpop.f32.mrb[0].mxu0
      %v1794 = vadd.f32 %v1633, %v1793
      %v1795 = vpop.f32.mrb[0].mxu0
      %1796 = vmatprep.mubr.bf16.mxu0 0
      %1797 = vmatmul.mubr.bf16.gmra.mrb[0].mxu0 %v1301
      %v1798 = vpop.f32.mrb[0].mxu0
      %v1799 = vadd.f32 %v1638, %v1798
      %v1800 = vpop.f32.mrb[0].mxu0
      %v1801 = vpop.f32.mrb[0].mxu0
      %v1802 = vadd.f32 %v1641, %v1801
      %v1803 = vpop.f32.mrb[0].mxu0
      %1804 = vmatprep.mubr.bf16.mxu0 0
      %1805 = vmatmul.mubr.bf16.gmra.mrb[0].mxu0 %v1304
      %v1806 = vpop.f32.mrb[0].mxu0
      %v1807 = vadd.f32 %v1646, %v1806
      %v1808 = vpop.f32.mrb[0].mxu0
      %v1809 = vpop.f32.mrb[0].mxu0
      %v1810 = vadd.f32 %v1649, %v1809
      %v1811 = vpop.f32.mrb[0].mxu0
      %1812 = vmatprep.mubr.bf16.mxu0 0
      %1813 = vmatmul.mubr.bf16.gmra.mrb[0].mxu0 %v1307
      %v1814 = vpop.f32.mrb[0].mxu0
      %v1815 = vadd.f32 %v1654, %v1814
      %v1816 = vpop.f32.mrb[0].mxu0
      %v1817 = vpop.f32.mrb[0].mxu0
      %v1818 = vadd.f32 %v1657, %v1817
      %v1819 = vpop.f32.mrb[0].mxu0
      %1820 = vmatprep.mubr.bf16.mxu0 0
      %1821 = vmatmul.mubr.bf16.gmra.mrb[0].mxu0 %v1310
      %v1822 = vpop.f32.mrb[0].mxu0
      %v1823 = vadd.f32 %v1662, %v1822
      %v1824 = vpop.f32.mrb[0].mxu0
      %v1825 = vpop.f32.mrb[0].mxu0
      %v1826 = vadd.f32 %v1665, %v1825
      %v1827 = vpop.f32.mrb[0].mxu0
      %1828 = vmatprep.mubr.bf16.mxu0 0
      %1829 = vmatmul.mubr.bf16.gmra.mrb[0].mxu0 %v1313
      %v1830 = vpop.f32.mrb[0].mxu0
      %v1831 = vadd.f32 %v1670, %v1830
      %v1832 = vpop.f32.mrb[0].mxu0
      %v1833 = vpop.f32.mrb[0].mxu0
      %v1834 = vadd.f32 %v1673, %v1833
      %v1835 = vpop.f32.mrb[0].mxu0
      %1836 = vmatprep.mubr.bf16.mxu0 0
      %1837 = vmatmul.mubr.bf16.gmra.mrb[0].mxu0 %v1316
      %v1838 = vpop.f32.mrb[0].mxu0
      %v1839 = vadd.f32 %v1678, %v1838
      %v1840 = vpop.f32.mrb[0].mxu0
      %v1841 = vpop.f32.mrb[0].mxu0
      %v1842 = vadd.f32 %v1681, %v1841
      %v1843 = vpop.f32.mrb[0].mxu0
      %1844 = vmatprep.mubr.bf16.mxu0 0
      %1845 = vmatmul.mubr.bf16.gmra.mrb[0].mxu0 %v1319
      %v1846 = vpop.f32.mrb[0].mxu0
      %v1847 = vadd.f32 %v1686, %v1846
      %v1848 = vpop.f32.mrb[0].mxu0
      %v1849 = vpop.f32.mrb[0].mxu0
      %v1850 = vadd.f32 %v1689, %v1849
      %v1851 = vpop.f32.mrb[0].mxu0
      %1852 = vmatprep.mubr.bf16.mxu0 0
      %1853 = vmatmul.mubr.bf16.gmra.mrb[0].mxu0 %v1322
      %v1854 = vpop.f32.mrb[0].mxu0
      %v1855 = vadd.f32 %v1694, %v1854
      %v1856 = vpop.f32.mrb[0].mxu0
      %v1857 = vpop.f32.mrb[0].mxu0
      %v1858 = vadd.f32 %v1697, %v1857
      %v1859 = vpop.f32.mrb[0].mxu0
      %1860 = vmatprep.mubr.bf16.mxu0 0
      %1861 = vmatmul.mubr.bf16.gmra.mrb[0].mxu0 %v1325
      %v1862 = vpop.f32.mrb[0].mxu0
      %v1863 = vadd.f32 %v1702, %v1862
      %v1864 = vpop.f32.mrb[0].mxu0
      %v1865 = vpop.f32.mrb[0].mxu0
      %v1866 = vadd.f32 %v1705, %v1865
      %v1867 = vpop.f32.mrb[0].mxu0
      %1868 = vmatprep.mubr.bf16.mxu0 0
      %1869 = vmatmul.mubr.bf16.gmra.mrb[0].mxu0 %v1328
      %v1870 = vpop.f32.mrb[0].mxu0
      %v1871 = vadd.f32 %v1710, %v1870
      %v1872 = vpop.f32.mrb[0].mxu0
      %v1873 = vpop.f32.mrb[0].mxu0
      %v1874 = vadd.f32 %v1713, %v1873
      %v1875 = vpop.f32.mrb[0].mxu0
      %1876 = vmatprep.mubr.bf16.mxu0 0
      %1877 = vmatmul.mubr.bf16.gmra.mrb[0].mxu0 %v1331
      %v1878 = vpop.f32.mrb[0].mxu0
      %v1879 = vadd.f32 %v1718, %v1878
      %v1880 = vpop.f32.mrb[0].mxu0
      %v1881 = vpop.f32.mrb[0].mxu0
      %v1882 = vadd.f32 %v1721, %v1881
      %v1883 = vpop.f32.mrb[0].mxu0
      %1884 = vmatprep.mubr.bf16.mxu0 0
      %1885 = vmatmul.mubr.bf16.gmra.mrb[0].mxu0 %v1334
      %v1886 = vpop.f32.mrb[0].mxu0
      %v1887 = vadd.f32 %v1726, %v1886
      %v1888 = vpop.f32.mrb[0].mxu0
      %v1889 = vpop.f32.mrb[0].mxu0
      %v1890 = vadd.f32 %v1729, %v1889
      %v1891 = vpop.f32.mrb[0].mxu0
      %1892 = vmatprep.mubr.bf16.mxu0 0
      %1893 = vmatmul.mubr.bf16.gmra.mrb[0].mxu0 %v1385
      %v1894 = vpop.f32.mrb[0].mxu0
      %v1895 = vadd.f32 %v1734, %v1894
      %v1896 = vpop.f32.mrb[0].mxu0
      %v1897 = vpop.f32.mrb[0].mxu0
      %v1898 = vadd.f32 %v1737, %v1897
      %v1899 = vpop.f32.mrb[0].mxu0
      %1900 = vdwg.mxu0
      %v1949 = vunpack.c.l.b16 %v1335
      %v1950 = vunpack.c.l.b16 %v1336
      %v1951 = vunpack.c.l.b16 %v1337
      %v1952 = vunpack.c.l.b16 %v1338
      %v1953 = vunpack.c.l.b16 %v1339
      %v1954 = vunpack.c.l.b16 %v1340
      %v1955 = vunpack.c.l.b16 %v1341
      %v1956 = vunpack.c.l.b16 %v1342
      %v1957 = vunpack.c.l.b16 %v1343
      %v1958 = vunpack.c.l.b16 %v1344
      %v1959 = vunpack.c.l.b16 %v1345
      %v1960 = vunpack.c.l.b16 %v1346
      %v1961 = vunpack.c.l.b16 %v1347
      %v1962 = vunpack.c.l.b16 %v1348
      %v1963 = vunpack.c.l.b16 %v1349
      %v1964 = vunpack.c.l.b16 %v1350
      %v1965 = vunpack.c.l.b16 %v1351
      %v1966 = vunpack.c.l.b16 %v1352
      %v1967 = vunpack.c.l.b16 %v1353
      %v1968 = vunpack.c.l.b16 %v1354
      %v1969 = vunpack.c.l.b16 %v1355
      %v1970 = vunpack.c.l.b16 %v1356
      %v1971 = vunpack.c.l.b16 %v1357
      %v1972 = vunpack.c.l.b16 %v1358
      %v1973 = vunpack.c.l.b16 %v1359
      %v1974 = vunpack.c.l.b16 %v1360
      %v1975 = vunpack.c.l.b16 %v1361
      %v1976 = vunpack.c.l.b16 %v1362
      %v1977 = vunpack.c.l.b16 %v1363
      %v1978 = vunpack.c.l.b16 %v1364
      %v1979 = vunpack.c.l.b16 %v1365
      %v1980 = vunpack.c.l.b16 %v1366
      %v1981 = vunpack.c.l.b16 %v1367
      %v1982 = vunpack.c.l.b16 %v1368
      %v1983 = vunpack.c.l.b16 %v1369
      %v1984 = vunpack.c.l.b16 %v1370
      %v1985 = vunpack.c.l.b16 %v1371
      %v1986 = vunpack.c.l.b16 %v1372
      %v1987 = vunpack.c.l.b16 %v1373
      %v1988 = vunpack.c.l.b16 %v1374
      %v1989 = vunpack.c.l.b16 %v1375
      %v1990 = vunpack.c.l.b16 %v1376
      %v1991 = vunpack.c.l.b16 %v1377
      %v1992 = vunpack.c.l.b16 %v1378
      %v1993 = vunpack.c.l.b16 %v1379
      %v1994 = vunpack.c.l.b16 %v1380
      %v1995 = vunpack.c.l.b16 %v1381
      %v1996 = vunpack.c.l.b16 %v1382
      %v1997 = vpack.c.b16 %v1950, %v1949
      %v1998 = vpack.c.b16 %v1952, %v1951
      %v1999 = vpack.c.b16 %v1954, %v1953
      %v2000 = vpack.c.b16 %v1956, %v1955
      %v2001 = vpack.c.b16 %v1958, %v1957
      %v2002 = vpack.c.b16 %v1960, %v1959
      %v2003 = vpack.c.b16 %v1962, %v1961
      %v2004 = vpack.c.b16 %v1964, %v1963
      %v2005 = vpack.c.b16 %v1966, %v1965
      %v2006 = vpack.c.b16 %v1968, %v1967
      %v2007 = vpack.c.b16 %v1970, %v1969
      %v2008 = vpack.c.b16 %v1972, %v1971
      %v2009 = vpack.c.b16 %v1974, %v1973
      %v2010 = vpack.c.b16 %v1976, %v1975
      %v2011 = vpack.c.b16 %v1978, %v1977
      %v2012 = vpack.c.b16 %v1980, %v1979
      %v2013 = vpack.c.b16 %v1982, %v1981
      %v2014 = vpack.c.b16 %v1984, %v1983
      %v2015 = vpack.c.b16 %v1986, %v1985
      %v2016 = vpack.c.b16 %v1988, %v1987
      %v2017 = vpack.c.b16 %v1990, %v1989
      %v2018 = vpack.c.b16 %v1992, %v1991
      %v2019 = vpack.c.b16 %v1994, %v1993
      %v2020 = vpack.c.b16 %v1996, %v1995
      %2045 = vmatprep.subr.bf16.mxu0 0
      %2046 = vmatpush1.bf16.msra.mxu0 %v1997
      %2047 = vmatprep.subr.bf16.mxu0 0
      %2048 = vmatpush1.bf16.msra.mxu0 %v1998
      %2049 = vmatprep.subr.bf16.mxu0 0
      %2050 = vmatpush1.bf16.msra.mxu0 %v1999
      %2051 = vmatprep.subr.bf16.mxu0 0
      %2052 = vmatpush1.bf16.msra.mxu0 %v2000
      %2053 = vmatprep.subr.bf16.mxu0 0
      %2054 = vmatpush1.bf16.msra.mxu0 %v2001
      %2055 = vmatprep.subr.bf16.mxu0 0
      %2056 = vmatpush1.bf16.msra.mxu0 %v2002
      %2057 = vmatprep.subr.bf16.mxu0 0
      %2058 = vmatpush1.bf16.msra.mxu0 %v2003
      %2059 = vmatprep.subr.bf16.mxu0 0
      %2060 = vmatpush1.bf16.msra.mxu0 %v2004
      %2061 = vmatprep.subr.bf16.mxu0 0
      %2062 = vmatpush1.bf16.msra.mxu0 %v2005
      %2063 = vmatprep.subr.bf16.mxu0 0
      %2064 = vmatpush1.bf16.msra.mxu0 %v2006
      %2065 = vmatprep.subr.bf16.mxu0 0
      %2066 = vmatpush1.bf16.msra.mxu0 %v2007
      %2067 = vmatprep.subr.bf16.mxu0 0
      %2068 = vmatpush1.bf16.msra.mxu0 %v2008
      %2069 = vmatprep.subr.bf16.mxu0 0
      %2070 = vmatpush1.bf16.msra.mxu0 %v2009
      %2071 = vmatprep.subr.bf16.mxu0 0
      %2072 = vmatpush1.bf16.msra.mxu0 %v2010
      %2073 = vmatprep.subr.bf16.mxu0 0
      %2074 = vmatpush1.bf16.msra.mxu0 %v2011
      %2075 = vmatprep.subr.bf16.mxu0 0
      %2076 = vmatpush1.bf16.msra.mxu0 %v2012
      %2077 = vmatprep.mubr.bf16.mxu0 %v1288
      %2078 = vmatmul.mubr.bf16.gmra.mrb[0].mxu0 %v1287
      %v2079 = vpop.f32.mrb[0].mxu0
      %v2080 = vadd.f32 %v1775, %v2079
      %v2081 = vpop.f32.mrb[0].mxu0
      %v2082 = vpop.f32.mrb[0].mxu0
      %v2083 = vadd.f32 %v1778, %v2082
      %v2084 = vpop.f32.mrb[0].mxu0
      %2085 = vmatprep.mubr.bf16.mxu0 %v1291
      %2086 = vmatmul.mubr.bf16.gmra.mrb[0].mxu0 %v1290
      %v2087 = vpop.f32.mrb[0].mxu0
      %v2088 = vadd.f32 %v1783, %v2087
      %v2089 = vpop.f32.mrb[0].mxu0
      %v2090 = vpop.f32.mrb[0].mxu0
      %v2091 = vadd.f32 %v1786, %v2090
      %v2092 = vpop.f32.mrb[0].mxu0
      %2093 = vmatprep.mubr.bf16.mxu0 %v1294
      %2094 = vmatmul.mubr.bf16.gmra.mrb[0].mxu0 %v1293
      %v2095 = vpop.f32.mrb[0].mxu0
      %v2096 = vadd.f32 %v1791, %v2095
      %v2097 = vpop.f32.mrb[0].mxu0
      %v2098 = vpop.f32.mrb[0].mxu0
      %v2099 = vadd.f32 %v1794, %v2098
      %v2100 = vpop.f32.mrb[0].mxu0
      %2101 = vmatprep.mubr.bf16.mxu0 %v1297
      %2102 = vmatmul.mubr.bf16.gmra.mrb[0].mxu0 %v1296
      %v2103 = vpop.f32.mrb[0].mxu0
      %v2104 = vadd.f32 %v1799, %v2103
      %v2105 = vpop.f32.mrb[0].mxu0
      %v2106 = vpop.f32.mrb[0].mxu0
      %v2107 = vadd.f32 %v1802, %v2106
      %v2108 = vpop.f32.mrb[0].mxu0
      %2109 = vmatprep.mubr.bf16.mxu0 %v1300
      %2110 = vmatmul.mubr.bf16.gmra.mrb[0].mxu0 %v1299
      %v2111 = vpop.f32.mrb[0].mxu0
      %v2112 = vadd.f32 %v1807, %v2111
      %v2113 = vpop.f32.mrb[0].mxu0
      %v2114 = vpop.f32.mrb[0].mxu0
      %v2115 = vadd.f32 %v1810, %v2114
      %v2116 = vpop.f32.mrb[0].mxu0
      %2117 = vmatprep.mubr.bf16.mxu0 %v1303
      %2118 = vmatmul.mubr.bf16.gmra.mrb[0].mxu0 %v1302
      %v2119 = vpop.f32.mrb[0].mxu0
      %v2120 = vadd.f32 %v1815, %v2119
      %v2121 = vpop.f32.mrb[0].mxu0
      %v2122 = vpop.f32.mrb[0].mxu0
      %v2123 = vadd.f32 %v1818, %v2122
      %v2124 = vpop.f32.mrb[0].mxu0
      %2125 = vmatprep.mubr.bf16.mxu0 %v1306
      %2126 = vmatmul.mubr.bf16.gmra.mrb[0].mxu0 %v1305
      %v2127 = vpop.f32.mrb[0].mxu0
      %v2128 = vadd.f32 %v1823, %v2127
      %v2129 = vpop.f32.mrb[0].mxu0
      %v2130 = vpop.f32.mrb[0].mxu0
      %v2131 = vadd.f32 %v1826, %v2130
      %v2132 = vpop.f32.mrb[0].mxu0
      %2133 = vmatprep.mubr.bf16.mxu0 %v1309
      %2134 = vmatmul.mubr.bf16.gmra.mrb[0].mxu0 %v1308
      %v2135 = vpop.f32.mrb[0].mxu0
      %v2136 = vadd.f32 %v1831, %v2135
      %v2137 = vpop.f32.mrb[0].mxu0
      %v2138 = vpop.f32.mrb[0].mxu0
      %v2139 = vadd.f32 %v1834, %v2138
      %v2140 = vpop.f32.mrb[0].mxu0
      %2141 = vmatprep.mubr.bf16.mxu0 %v1312
      %2142 = vmatmul.mubr.bf16.gmra.mrb[0].mxu0 %v1311
      %v2143 = vpop.f32.mrb[0].mxu0
      %v2144 = vadd.f32 %v1839, %v2143
      %v2145 = vpop.f32.mrb[0].mxu0
      %v2146 = vpop.f32.mrb[0].mxu0
      %v2147 = vadd.f32 %v1842, %v2146
      %v2148 = vpop.f32.mrb[0].mxu0
      %2149 = vmatprep.mubr.bf16.mxu0 %v1315
      %2150 = vmatmul.mubr.bf16.gmra.mrb[0].mxu0 %v1314
      %v2151 = vpop.f32.mrb[0].mxu0
      %v2152 = vadd.f32 %v1847, %v2151
      %v2153 = vpop.f32.mrb[0].mxu0
      %v2154 = vpop.f32.mrb[0].mxu0
      %v2155 = vadd.f32 %v1850, %v2154
      %v2156 = vpop.f32.mrb[0].mxu0
      %2157 = vmatprep.mubr.bf16.mxu0 %v1318
      %2158 = vmatmul.mubr.bf16.gmra.mrb[0].mxu0 %v1317
      %v2159 = vpop.f32.mrb[0].mxu0
      %v2160 = vadd.f32 %v1855, %v2159
      %v2161 = vpop.f32.mrb[0].mxu0
      %v2162 = vpop.f32.mrb[0].mxu0
      %v2163 = vadd.f32 %v1858, %v2162
      %v2164 = vpop.f32.mrb[0].mxu0
      %2165 = vmatprep.mubr.bf16.mxu0 %v1321
      %2166 = vmatmul.mubr.bf16.gmra.mrb[0].mxu0 %v1320
      %v2167 = vpop.f32.mrb[0].mxu0
      %v2168 = vadd.f32 %v1863, %v2167
      %v2169 = vpop.f32.mrb[0].mxu0
      %v2170 = vpop.f32.mrb[0].mxu0
      %v2171 = vadd.f32 %v1866, %v2170
      %v2172 = vpop.f32.mrb[0].mxu0
      %2173 = vmatprep.mubr.bf16.mxu0 %v1324
      %2174 = vmatmul.mubr.bf16.gmra.mrb[0].mxu0 %v1323
      %v2175 = vpop.f32.mrb[0].mxu0
      %v2176 = vadd.f32 %v1871, %v2175
      %v2177 = vpop.f32.mrb[0].mxu0
      %v2178 = vpop.f32.mrb[0].mxu0
      %v2179 = vadd.f32 %v1874, %v2178
      %v2180 = vpop.f32.mrb[0].mxu0
      %2181 = vmatprep.mubr.bf16.mxu0 %v1327
      %2182 = vmatmul.mubr.bf16.gmra.mrb[0].mxu0 %v1326
      %v2183 = vpop.f32.mrb[0].mxu0
      %v2184 = vadd.f32 %v1879, %v2183
      %v2185 = vpop.f32.mrb[0].mxu0
      %v2186 = vpop.f32.mrb[0].mxu0
      %v2187 = vadd.f32 %v1882, %v2186
      %v2188 = vpop.f32.mrb[0].mxu0
      %2189 = vmatprep.mubr.bf16.mxu0 %v1330
      %2190 = vmatmul.mubr.bf16.gmra.mrb[0].mxu0 %v1329
      %v2191 = vpop.f32.mrb[0].mxu0
      %v2192 = vadd.f32 %v1887, %v2191
      %v2193 = vpop.f32.mrb[0].mxu0
      %v2194 = vpop.f32.mrb[0].mxu0
      %v2195 = vadd.f32 %v1890, %v2194
      %v2196 = vpop.f32.mrb[0].mxu0
      %2197 = vmatprep.mubr.bf16.mxu0 %v1333
      %2198 = vmatmul.mubr.bf16.gmra.mrb[0].mxu0 %v1332
      %v2199 = vpop.f32.mrb[0].mxu0
      %v2200 = vadd.f32 %v1895, %v2199
      %v2201 = vpop.f32.mrb[0].mxu0
      %v2202 = vpop.f32.mrb[0].mxu0
      %v2203 = vadd.f32 %v1898, %v2202
      %v2204 = vpop.f32.mrb[0].mxu0
      %2205 = vdwg.mxu0
      %2206 = vmatprep.subr.bf16.mxu0 0
      %2207 = vmatpush1.bf16.msra.mxu0 %v2013
      %2208 = vmatprep.subr.bf16.mxu0 0
      %2209 = vmatpush1.bf16.msra.mxu0 %v2014
      %2210 = vmatprep.subr.bf16.mxu0 0
      %2211 = vmatpush1.bf16.msra.mxu0 %v2015
      %2212 = vmatprep.subr.bf16.mxu0 0
      %2213 = vmatpush1.bf16.msra.mxu0 %v2016
      %2214 = vmatprep.subr.bf16.mxu0 0
      %2215 = vmatpush1.bf16.msra.mxu0 %v2017
      %2216 = vmatprep.subr.bf16.mxu0 0
      %2217 = vmatpush1.bf16.msra.mxu0 %v2018
      %2218 = vmatprep.subr.bf16.mxu0 0
      %2219 = vmatpush1.bf16.msra.mxu0 %v2019
      %2220 = vmatprep.subr.bf16.mxu0 0
      %2221 = vmatpush1.bf16.msra.mxu0 %v2020
      %2222 = vmatprep.subr.bf16.mxu0 0
      %2223 = vmatpush1.bf16.msra.mxu0 0
      %2224 = vmatprep.subr.bf16.mxu0 0
      %2225 = vmatpush1.bf16.msra.mxu0 0
      %2226 = vmatprep.subr.bf16.mxu0 0
      %2227 = vmatpush1.bf16.msra.mxu0 0
      %2228 = vmatprep.subr.bf16.mxu0 0
      %2229 = vmatpush1.bf16.msra.mxu0 0
      %2230 = vmatprep.subr.bf16.mxu0 0
      %2231 = vmatpush1.bf16.msra.mxu0 0
      %2232 = vmatprep.subr.bf16.mxu0 0
      %2233 = vmatpush1.bf16.msra.mxu0 0
      %2234 = vmatprep.subr.bf16.mxu0 0
      %2235 = vmatpush1.bf16.msra.mxu0 0
      %2236 = vmatprep.subr.bf16.mxu0 0
      %2237 = vmatpush1.bf16.msra.mxu0 0
      %2238 = vmatprep.mubr.bf16.mxu0 0
      %2239 = vmatmul.mubr.bf16.gmra.mrb[0].mxu0 %v1289
      %v2240 = vpop.f32.mrb[0].mxu0
      %v2241 = vadd.f32 %v2080, %v2240
      %v2242 = vpop.f32.mrb[0].mxu0
      %v2243 = vpop.f32.mrb[0].mxu0
      %v2244 = vadd.f32 %v2083, %v2243
      %v2245 = vpop.f32.mrb[0].mxu0
      %2246 = vmatprep.mubr.bf16.mxu0 0
      %2247 = vmatmul.mubr.bf16.gmra.mrb[0].mxu0 %v1292
      %v2248 = vpop.f32.mrb[0].mxu0
      %v2249 = vadd.f32 %v2088, %v2248
      %v2250 = vpop.f32.mrb[0].mxu0
      %v2251 = vpop.f32.mrb[0].mxu0
      %v2252 = vadd.f32 %v2091, %v2251
      %v2253 = vpop.f32.mrb[0].mxu0
      %2254 = vmatprep.mubr.bf16.mxu0 0
      %2255 = vmatmul.mubr.bf16.gmra.mrb[0].mxu0 %v1295
      %v2256 = vpop.f32.mrb[0].mxu0
      %v2257 = vadd.f32 %v2096, %v2256
      %v2258 = vpop.f32.mrb[0].mxu0
      %v2259 = vpop.f32.mrb[0].mxu0
      %v2260 = vadd.f32 %v2099, %v2259
      %v2261 = vpop.f32.mrb[0].mxu0
      %2262 = vmatprep.mubr.bf16.mxu0 0
      %2263 = vmatmul.mubr.bf16.gmra.mrb[0].mxu0 %v1298
      %v2264 = vpop.f32.mrb[0].mxu0
      %v2265 = vadd.f32 %v2104, %v2264
      %v2266 = vpop.f32.mrb[0].mxu0
      %v2267 = vpop.f32.mrb[0].mxu0
      %v2268 = vadd.f32 %v2107, %v2267
      %v2269 = vpop.f32.mrb[0].mxu0
      %2270 = vmatprep.mubr.bf16.mxu0 0
      %2271 = vmatmul.mubr.bf16.gmra.mrb[0].mxu0 %v1301
      %v2272 = vpop.f32.mrb[0].mxu0
      %v2273 = vadd.f32 %v2112, %v2272
      %v2274 = vpop.f32.mrb[0].mxu0
      %v2275 = vpop.f32.mrb[0].mxu0
      %v2276 = vadd.f32 %v2115, %v2275
      %v2277 = vpop.f32.mrb[0].mxu0
      %2278 = vmatprep.mubr.bf16.mxu0 0
      %2279 = vmatmul.mubr.bf16.gmra.mrb[0].mxu0 %v1304
      %v2280 = vpop.f32.mrb[0].mxu0
      %v2281 = vadd.f32 %v2120, %v2280
      %v2282 = vpop.f32.mrb[0].mxu0
      %v2283 = vpop.f32.mrb[0].mxu0
      %v2284 = vadd.f32 %v2123, %v2283
      %v2285 = vpop.f32.mrb[0].mxu0
      %2286 = vmatprep.mubr.bf16.mxu0 0
      %2287 = vmatmul.mubr.bf16.gmra.mrb[0].mxu0 %v1307
      %v2288 = vpop.f32.mrb[0].mxu0
      %v2289 = vadd.f32 %v2128, %v2288
      %v2290 = vpop.f32.mrb[0].mxu0
      %v2291 = vpop.f32.mrb[0].mxu0
      %v2292 = vadd.f32 %v2131, %v2291
      %v2293 = vpop.f32.mrb[0].mxu0
      %2294 = vmatprep.mubr.bf16.mxu0 0
      %2295 = vmatmul.mubr.bf16.gmra.mrb[0].mxu0 %v1310
      %v2296 = vpop.f32.mrb[0].mxu0
      %v2297 = vadd.f32 %v2136, %v2296
      %v2298 = vpop.f32.mrb[0].mxu0
      %v2299 = vpop.f32.mrb[0].mxu0
      %v2300 = vadd.f32 %v2139, %v2299
      %v2301 = vpop.f32.mrb[0].mxu0
      %2302 = vmatprep.mubr.bf16.mxu0 0
      %2303 = vmatmul.mubr.bf16.gmra.mrb[0].mxu0 %v1313
      %v2304 = vpop.f32.mrb[0].mxu0
      %v2305 = vadd.f32 %v2144, %v2304
      %v2306 = vpop.f32.mrb[0].mxu0
      %v2307 = vpop.f32.mrb[0].mxu0
      %v2308 = vadd.f32 %v2147, %v2307
      %v2309 = vpop.f32.mrb[0].mxu0
      %2310 = vmatprep.mubr.bf16.mxu0 0
      %2311 = vmatmul.mubr.bf16.gmra.mrb[0].mxu0 %v1316
      %v2312 = vpop.f32.mrb[0].mxu0
      %v2313 = vadd.f32 %v2152, %v2312
      %v2314 = vpop.f32.mrb[0].mxu0
      %v2315 = vpop.f32.mrb[0].mxu0
      %v2316 = vadd.f32 %v2155, %v2315
      %v2317 = vpop.f32.mrb[0].mxu0
      %2318 = vmatprep.mubr.bf16.mxu0 0
      %2319 = vmatmul.mubr.bf16.gmra.mrb[0].mxu0 %v1319
      %v2320 = vpop.f32.mrb[0].mxu0
      %v2321 = vadd.f32 %v2160, %v2320
      %v2322 = vpop.f32.mrb[0].mxu0
      %v2323 = vpop.f32.mrb[0].mxu0
      %v2324 = vadd.f32 %v2163, %v2323
      %v2325 = vpop.f32.mrb[0].mxu0
      %2326 = vmatprep.mubr.bf16.mxu0 0
      %2327 = vmatmul.mubr.bf16.gmra.mrb[0].mxu0 %v1322
      %v2328 = vpop.f32.mrb[0].mxu0
      %v2329 = vadd.f32 %v2168, %v2328
      %v2330 = vpop.f32.mrb[0].mxu0
      %v2331 = vpop.f32.mrb[0].mxu0
      %v2332 = vadd.f32 %v2171, %v2331
      %v2333 = vpop.f32.mrb[0].mxu0
      %2334 = vmatprep.mubr.bf16.mxu0 0
      %2335 = vmatmul.mubr.bf16.gmra.mrb[0].mxu0 %v1325
      %v2336 = vpop.f32.mrb[0].mxu0
      %v2337 = vadd.f32 %v2176, %v2336
      %v2338 = vpop.f32.mrb[0].mxu0
      %v2339 = vpop.f32.mrb[0].mxu0
      %v2340 = vadd.f32 %v2179, %v2339
      %v2341 = vpop.f32.mrb[0].mxu0
      %2342 = vmatprep.mubr.bf16.mxu0 0
      %2343 = vmatmul.mubr.bf16.gmra.mrb[0].mxu0 %v1328
      %v2344 = vpop.f32.mrb[0].mxu0
      %v2345 = vadd.f32 %v2184, %v2344
      %v2346 = vpop.f32.mrb[0].mxu0
      %v2347 = vpop.f32.mrb[0].mxu0
      %v2348 = vadd.f32 %v2187, %v2347
      %v2349 = vpop.f32.mrb[0].mxu0
      %2350 = vmatprep.mubr.bf16.mxu0 0
      %2351 = vmatmul.mubr.bf16.gmra.mrb[0].mxu0 %v1331
      %v2352 = vpop.f32.mrb[0].mxu0
      %v2353 = vadd.f32 %v2192, %v2352
      %v2354 = vpop.f32.mrb[0].mxu0
      %v2355 = vpop.f32.mrb[0].mxu0
      %v2356 = vadd.f32 %v2195, %v2355
      %v2357 = vpop.f32.mrb[0].mxu0
      %2358 = vmatprep.mubr.bf16.mxu0 0
      %2359 = vmatmul.mubr.bf16.gmra.mrb[0].mxu0 %v1334
      %v2360 = vpop.f32.mrb[0].mxu0
      %v2361 = vadd.f32 %v2200, %v2360
      %v2362 = vpop.f32.mrb[0].mxu0
      %v2363 = vpop.f32.mrb[0].mxu0
      %v2364 = vadd.f32 %v2203, %v2363
      %v2365 = vpop.f32.mrb[0].mxu0
      %2366 = vdwg.mxu0
      %v2367 = vld [vmem:[#allocation2 + $0x30] sm:$0xff]
      %v2368 = vld [vmem:[#allocation2 + $0x38] sm:$0xff]
      %v2369 = vld [vmem:[#allocation2 + $0x40] sm:$0xff]
      %v2370 = vld [vmem:[#allocation2 + $0x48] sm:$0xff]
      %v2371 = vld [vmem:[#allocation2 + $0x50] sm:$0xff]
      %v2372 = vld [vmem:[#allocation2 + $0x58] sm:$0xff]
      %v2373 = vld [vmem:[#allocation2 + $0x60] sm:$0xff]
      %v2374 = vld [vmem:[#allocation2 + $0x68] sm:$0xff]
      %v2375 = vld [vmem:[#allocation2 + $0x70] sm:$0xff]
      %v2376 = vld [vmem:[#allocation2 + $0x78] sm:$0xff]
      %v2377 = vld [vmem:[#allocation2 + $0x80] sm:$0xff]
      %v2378 = vld [vmem:[#allocation2 + $0x88] sm:$0xff]
      %v2379 = vld [vmem:[#allocation2 + $0x90] sm:$0xff]
      %v2380 = vld [vmem:[#allocation2 + $0x98] sm:$0xff]
      %v2381 = vld [vmem:[#allocation2 + $0xa0] sm:$0xff]
      %v2382 = vld [vmem:[#allocation2 + $0xa8] sm:$0xff]
      %v2383 = vld [vmem:[#allocation2 + $0xb0] sm:$0xff]
      %v2384 = vld [vmem:[#allocation2 + $0xb8] sm:$0xff]
      %v2385 = vld [vmem:[#allocation2 + $0xc0] sm:$0xff]
      %v2386 = vld [vmem:[#allocation2 + $0xc8] sm:$0xff]
      %v2387 = vld [vmem:[#allocation2 + $0xd0] sm:$0xff]
      %v2388 = vld [vmem:[#allocation2 + $0xd8] sm:$0xff]
      %v2389 = vld [vmem:[#allocation2 + $0xe0] sm:$0xff]
      %v2390 = vld [vmem:[#allocation2 + $0xe8] sm:$0xff]
      %v2391 = vld [vmem:[#allocation2 + $0xf0] sm:$0xff]
      %v2392 = vld [vmem:[#allocation2 + $0xf8] sm:$0xff]
      %v2393 = vld [vmem:[#allocation2 + $0x100] sm:$0xff]
      %v2394 = vld [vmem:[#allocation2 + $0x108] sm:$0xff]
      %v2395 = vld [vmem:[#allocation2 + $0x110] sm:$0xff]
      %v2396 = vld [vmem:[#allocation2 + $0x118] sm:$0xff]
      %v2397 = vld [vmem:[#allocation2 + $0x120] sm:$0xff]
      %v2398 = vld [vmem:[#allocation2 + $0x128] sm:$0xff]
      %v2399 = vld [vmem:[#allocation2 + $0x130] sm:$0xff]
      %v2400 = vld [vmem:[#allocation2 + $0x138] sm:$0xff]
      %v2401 = vld [vmem:[#allocation2 + $0x140] sm:$0xff]
      %v2402 = vld [vmem:[#allocation2 + $0x148] sm:$0xff]
      %v2403 = vld [vmem:[#allocation2 + $0x150] sm:$0xff]
      %v2404 = vld [vmem:[#allocation2 + $0x158] sm:$0xff]
      %v2405 = vld [vmem:[#allocation2 + $0x160] sm:$0xff]
      %v2406 = vld [vmem:[#allocation2 + $0x168] sm:$0xff]
      %v2407 = vld [vmem:[#allocation2 + $0x170] sm:$0xff]
      %v2408 = vld [vmem:[#allocation2 + $0x178] sm:$0xff]
      %v2409 = vld [vmem:[#allocation2 + $0x180] sm:$0xff]
      %v2410 = vld [vmem:[#allocation2 + $0x188] sm:$0xff]
      %v2411 = vld [vmem:[#allocation2 + $0x190] sm:$0xff]
      %v2412 = vld [vmem:[#allocation2 + $0x198] sm:$0xff]
      %v2413 = vld [vmem:[#allocation2 + $0x1a0] sm:$0xff]
      %v2414 = vld [vmem:[#allocation2 + $0x1a8] sm:$0xff]
      %s2415 = scalar_lea.vmem %s3, 384
      %v2416 = vld [vmem:[%s2415] sm:$0xf]
      %v2417 = vld [vmem:[%s2415 + $0x4] sm:$0xf]
      %v2418 = vld [vmem:[%s2415 + $0x8] sm:$0xf]
      %v2419 = vld [vmem:[%s2415 + $0xc] sm:$0xf]
      %v2420 = vld [vmem:[%s2415 + $0x10] sm:$0xf]
      %v2421 = vld [vmem:[%s2415 + $0x14] sm:$0xf]
      %v2422 = vld [vmem:[%s2415 + $0x18] sm:$0xf]
      %v2423 = vld [vmem:[%s2415 + $0x1c] sm:$0xf]
      %v2424 = vld [vmem:[%s2415 + $0x20] sm:$0xf]
      %v2425 = vld [vmem:[%s2415 + $0x24] sm:$0xf]
      %v2426 = vld [vmem:[%s2415 + $0x28] sm:$0xf]
      %v2427 = vld [vmem:[%s2415 + $0x2c] sm:$0xf]
      %v2428 = vld [vmem:[%s2415 + $0x30] sm:$0xf]
      %v2429 = vld [vmem:[%s2415 + $0x34] sm:$0xf]
      %v2430 = vld [vmem:[%s2415 + $0x38] sm:$0xf]
      %v2431 = vld [vmem:[%s2415 + $0x3c] sm:$0xf]
      %v2432 = vld [vmem:[%s2415 + $0x40] sm:$0xf]
      %v2433 = vld [vmem:[%s2415 + $0x44] sm:$0xf]
      %v2434 = vld [vmem:[%s2415 + $0x48] sm:$0xf]
      %v2435 = vld [vmem:[%s2415 + $0x4c] sm:$0xf]
      %v2436 = vld [vmem:[%s2415 + $0x50] sm:$0xf]
      %v2437 = vld [vmem:[%s2415 + $0x54] sm:$0xf]
      %v2438 = vld [vmem:[%s2415 + $0x58] sm:$0xf]
      %v2439 = vld [vmem:[%s2415 + $0x5c] sm:$0xf]
      %v2440 = vld [vmem:[%s2415 + $0x60] sm:$0xf]
      %v2441 = vld [vmem:[%s2415 + $0x64] sm:$0xf]
      %v2442 = vld [vmem:[%s2415 + $0x68] sm:$0xf]
      %v2443 = vld [vmem:[%s2415 + $0x6c] sm:$0xf]
      %v2444 = vld [vmem:[%s2415 + $0x70] sm:$0xf]
      %v2445 = vld [vmem:[%s2415 + $0x74] sm:$0xf]
      %v2446 = vld [vmem:[%s2415 + $0x78] sm:$0xf]
      %v2447 = vld [vmem:[%s2415 + $0x7c] sm:$0xf]
      %v2448 = vld [vmem:[%s2415 + $0x80] sm:$0xf]
      %v2449 = vld [vmem:[%s2415 + $0x84] sm:$0xf]
      %v2450 = vld [vmem:[%s2415 + $0x88] sm:$0xf]
      %v2451 = vld [vmem:[%s2415 + $0x8c] sm:$0xf]
      %v2452 = vld [vmem:[%s2415 + $0x90] sm:$0xf]
      %v2453 = vld [vmem:[%s2415 + $0x94] sm:$0xf]
      %v2454 = vld [vmem:[%s2415 + $0x98] sm:$0xf]
      %v2455 = vld [vmem:[%s2415 + $0x9c] sm:$0xf]
      %v2456 = vld [vmem:[%s2415 + $0xa0] sm:$0xf]
      %v2457 = vld [vmem:[%s2415 + $0xa4] sm:$0xf]
      %v2458 = vld [vmem:[%s2415 + $0xa8] sm:$0xf]
      %v2459 = vld [vmem:[%s2415 + $0xac] sm:$0xf]
      %v2460 = vld [vmem:[%s2415 + $0xb0] sm:$0xf]
      %v2461 = vld [vmem:[%s2415 + $0xb4] sm:$0xf]
      %v2462 = vld [vmem:[%s2415 + $0xb8] sm:$0xf]
      %v2463 = vld [vmem:[%s2415 + $0xbc] sm:$0xf]
      %v2512 = vunpack.c.l.b16 %v2416
      %v2513 = vunpack.c.l.b16 %v2417
      %v2514 = vunpack.c.l.b16 %v2418
      %v2515 = vunpack.c.l.b16 %v2419
      %v2516 = vunpack.c.l.b16 %v2420
      %v2517 = vunpack.c.l.b16 %v2421
      %v2518 = vunpack.c.l.b16 %v2422
      %v2519 = vunpack.c.l.b16 %v2423
      %v2520 = vunpack.c.l.b16 %v2424
      %v2521 = vunpack.c.l.b16 %v2425
      %v2522 = vunpack.c.l.b16 %v2426
      %v2523 = vunpack.c.l.b16 %v2427
      %v2524 = vunpack.c.l.b16 %v2428
      %v2525 = vunpack.c.l.b16 %v2429
      %v2526 = vunpack.c.l.b16 %v2430
      %v2527 = vunpack.c.l.b16 %v2431
      %v2528 = vunpack.c.l.b16 %v2432
      %v2529 = vunpack.c.l.b16 %v2433
      %v2530 = vunpack.c.l.b16 %v2434
      %v2531 = vunpack.c.l.b16 %v2435
      %v2532 = vunpack.c.l.b16 %v2436
      %v2533 = vunpack.c.l.b16 %v2437
      %v2534 = vunpack.c.l.b16 %v2438
      %v2535 = vunpack.c.l.b16 %v2439
      %v2536 = vunpack.c.l.b16 %v2440
      %v2537 = vunpack.c.l.b16 %v2441
      %v2538 = vunpack.c.l.b16 %v2442
      %v2539 = vunpack.c.l.b16 %v2443
      %v2540 = vunpack.c.l.b16 %v2444
      %v2541 = vunpack.c.l.b16 %v2445
      %v2542 = vunpack.c.l.b16 %v2446
      %v2543 = vunpack.c.l.b16 %v2447
      %v2544 = vunpack.c.l.b16 %v2448
      %v2545 = vunpack.c.l.b16 %v2449
      %v2546 = vunpack.c.l.b16 %v2450
      %v2547 = vunpack.c.l.b16 %v2451
      %v2548 = vunpack.c.l.b16 %v2452
      %v2549 = vunpack.c.l.b16 %v2453
      %v2550 = vunpack.c.l.b16 %v2454
      %v2551 = vunpack.c.l.b16 %v2455
      %v2552 = vunpack.c.l.b16 %v2456
      %v2553 = vunpack.c.l.b16 %v2457
      %v2554 = vunpack.c.l.b16 %v2458
      %v2555 = vunpack.c.l.b16 %v2459
      %v2556 = vunpack.c.l.b16 %v2460
      %v2557 = vunpack.c.l.b16 %v2461
      %v2558 = vunpack.c.l.b16 %v2462
      %v2559 = vunpack.c.l.b16 %v2463
      %v2560 = vpack.c.b16 %v2513, %v2512
      %v2561 = vpack.c.b16 %v2515, %v2514
      %v2562 = vpack.c.b16 %v2517, %v2516
      %v2563 = vpack.c.b16 %v2519, %v2518
      %v2564 = vpack.c.b16 %v2521, %v2520
      %v2565 = vpack.c.b16 %v2523, %v2522
      %v2566 = vpack.c.b16 %v2525, %v2524
      %v2567 = vpack.c.b16 %v2527, %v2526
      %v2568 = vpack.c.b16 %v2529, %v2528
      %v2569 = vpack.c.b16 %v2531, %v2530
      %v2570 = vpack.c.b16 %v2533, %v2532
      %v2571 = vpack.c.b16 %v2535, %v2534
      %v2572 = vpack.c.b16 %v2537, %v2536
      %v2573 = vpack.c.b16 %v2539, %v2538
      %v2574 = vpack.c.b16 %v2541, %v2540
      %v2575 = vpack.c.b16 %v2543, %v2542
      %v2576 = vpack.c.b16 %v2545, %v2544
      %v2577 = vpack.c.b16 %v2547, %v2546
      %v2578 = vpack.c.b16 %v2549, %v2548
      %v2579 = vpack.c.b16 %v2551, %v2550
      %v2580 = vpack.c.b16 %v2553, %v2552
      %v2581 = vpack.c.b16 %v2555, %v2554
      %v2582 = vpack.c.b16 %v2557, %v2556
      %v2583 = vpack.c.b16 %v2559, %v2558
      %2608 = vmatprep.subr.bf16.mxu0 0
      %2609 = vmatpush1.bf16.msra.mxu0 %v2560
      %2610 = vmatprep.subr.bf16.mxu0 0
      %2611 = vmatpush1.bf16.msra.mxu0 %v2561
      %2612 = vmatprep.subr.bf16.mxu0 0
      %2613 = vmatpush1.bf16.msra.mxu0 %v2562
      %2614 = vmatprep.subr.bf16.mxu0 0
      %2615 = vmatpush1.bf16.msra.mxu0 %v2563
      %2616 = vmatprep.subr.bf16.mxu0 0
      %2617 = vmatpush1.bf16.msra.mxu0 %v2564
      %2618 = vmatprep.subr.bf16.mxu0 0
      %2619 = vmatpush1.bf16.msra.mxu0 %v2565
      %2620 = vmatprep.subr.bf16.mxu0 0
      %2621 = vmatpush1.bf16.msra.mxu0 %v2566
      %2622 = vmatprep.subr.bf16.mxu0 0
      %2623 = vmatpush1.bf16.msra.mxu0 %v2567
      %2624 = vmatprep.subr.bf16.mxu0 0
      %2625 = vmatpush1.bf16.msra.mxu0 %v2568
      %2626 = vmatprep.subr.bf16.mxu0 0
      %2627 = vmatpush1.bf16.msra.mxu0 %v2569
      %2628 = vmatprep.subr.bf16.mxu0 0
      %2629 = vmatpush1.bf16.msra.mxu0 %v2570
      %2630 = vmatprep.subr.bf16.mxu0 0
      %2631 = vmatpush1.bf16.msra.mxu0 %v2571
      %2632 = vmatprep.subr.bf16.mxu0 0
      %2633 = vmatpush1.bf16.msra.mxu0 %v2572
      %2634 = vmatprep.subr.bf16.mxu0 0
      %2635 = vmatpush1.bf16.msra.mxu0 %v2573
      %2636 = vmatprep.subr.bf16.mxu0 0
      %2637 = vmatpush1.bf16.msra.mxu0 %v2574
      %2638 = vmatprep.subr.bf16.mxu0 0
      %2639 = vmatpush1.bf16.msra.mxu0 %v2575
      %2640 = vmatprep.mubr.bf16.mxu0 %v2368
      %2641 = vmatmul.mubr.bf16.gmra.mrb[0].mxu0 %v2367
      %v2642 = vpop.f32.mrb[0].mxu0
      %v2643 = vadd.f32 0.0, %v2642
      %v2644 = vpop.f32.mrb[0].mxu0
      %v2645 = vpop.f32.mrb[0].mxu0
      %v2646 = vadd.f32 0.0, %v2645
      %v2647 = vpop.f32.mrb[0].mxu0
      %2648 = vmatprep.mubr.bf16.mxu0 %v2371
      %2649 = vmatmul.mubr.bf16.gmra.mrb[0].mxu0 %v2370
      %v2650 = vpop.f32.mrb[0].mxu0
      %v2651 = vadd.f32 0.0, %v2650
      %v2652 = vpop.f32.mrb[0].mxu0
      %v2653 = vpop.f32.mrb[0].mxu0
      %v2654 = vadd.f32 0.0, %v2653
      %v2655 = vpop.f32.mrb[0].mxu0
      %2656 = vmatprep.mubr.bf16.mxu0 %v2374
      %2657 = vmatmul.mubr.bf16.gmra.mrb[0].mxu0 %v2373
      %v2658 = vpop.f32.mrb[0].mxu0
      %v2659 = vadd.f32 0.0, %v2658
      %v2660 = vpop.f32.mrb[0].mxu0
      %v2661 = vpop.f32.mrb[0].mxu0
      %v2662 = vadd.f32 0.0, %v2661
      %v2663 = vpop.f32.mrb[0].mxu0
      %2664 = vmatprep.mubr.bf16.mxu0 %v2377
      %2665 = vmatmul.mubr.bf16.gmra.mrb[0].mxu0 %v2376
      %v2666 = vpop.f32.mrb[0].mxu0
      %v2667 = vadd.f32 0.0, %v2666
      %v2668 = vpop.f32.mrb[0].mxu0
      %v2669 = vpop.f32.mrb[0].mxu0
      %v2670 = vadd.f32 0.0, %v2669
      %v2671 = vpop.f32.mrb[0].mxu0
      %2672 = vmatprep.mubr.bf16.mxu0 %v2380
      %2673 = vmatmul.mubr.bf16.gmra.mrb[0].mxu0 %v2379
      %v2674 = vpop.f32.mrb[0].mxu0
      %v2675 = vadd.f32 0.0, %v2674
      %v2676 = vpop.f32.mrb[0].mxu0
      %v2677 = vpop.f32.mrb[0].mxu0
      %v2678 = vadd.f32 0.0, %v2677
      %v2679 = vpop.f32.mrb[0].mxu0
      %2680 = vmatprep.mubr.bf16.mxu0 %v2383
      %2681 = vmatmul.mubr.bf16.gmra.mrb[0].mxu0 %v2382
      %v2682 = vpop.f32.mrb[0].mxu0
      %v2683 = vadd.f32 0.0, %v2682
      %v2684 = vpop.f32.mrb[0].mxu0
      %v2685 = vpop.f32.mrb[0].mxu0
      %v2686 = vadd.f32 0.0, %v2685
      %v2687 = vpop.f32.mrb[0].mxu0
      %2688 = vmatprep.mubr.bf16.mxu0 %v2386
      %2689 = vmatmul.mubr.bf16.gmra.mrb[0].mxu0 %v2385
      %v2690 = vpop.f32.mrb[0].mxu0
      %v2691 = vadd.f32 0.0, %v2690
      %v2692 = vpop.f32.mrb[0].mxu0
      %v2693 = vpop.f32.mrb[0].mxu0
      %v2694 = vadd.f32 0.0, %v2693
      %v2695 = vpop.f32.mrb[0].mxu0
      %2696 = vmatprep.mubr.bf16.mxu0 %v2389
      %2697 = vmatmul.mubr.bf16.gmra.mrb[0].mxu0 %v2388
      %v2698 = vpop.f32.mrb[0].mxu0
      %v2699 = vadd.f32 0.0, %v2698
      %v2700 = vpop.f32.mrb[0].mxu0
      %v2701 = vpop.f32.mrb[0].mxu0
      %v2702 = vadd.f32 0.0, %v2701
      %v2703 = vpop.f32.mrb[0].mxu0
      %2704 = vmatprep.mubr.bf16.mxu0 %v2392
      %2705 = vmatmul.mubr.bf16.gmra.mrb[0].mxu0 %v2391
      %v2706 = vpop.f32.mrb[0].mxu0
      %v2707 = vadd.f32 0.0, %v2706
      %v2708 = vpop.f32.mrb[0].mxu0
      %v2709 = vpop.f32.mrb[0].mxu0
      %v2710 = vadd.f32 0.0, %v2709
      %v2711 = vpop.f32.mrb[0].mxu0
      %2712 = vmatprep.mubr.bf16.mxu0 %v2395
      %2713 = vmatmul.mubr.bf16.gmra.mrb[0].mxu0 %v2394
      %v2714 = vpop.f32.mrb[0].mxu0
      %v2715 = vadd.f32 0.0, %v2714
      %v2716 = vpop.f32.mrb[0].mxu0
      %v2717 = vpop.f32.mrb[0].mxu0
      %v2718 = vadd.f32 0.0, %v2717
      %v2719 = vpop.f32.mrb[0].mxu0
      %2720 = vmatprep.mubr.bf16.mxu0 %v2398
      %2721 = vmatmul.mubr.bf16.gmra.mrb[0].mxu0 %v2397
      %v2722 = vpop.f32.mrb[0].mxu0
      %v2723 = vadd.f32 0.0, %v2722
      %v2724 = vpop.f32.mrb[0].mxu0
      %v2725 = vpop.f32.mrb[0].mxu0
      %v2726 = vadd.f32 0.0, %v2725
      %v2727 = vpop.f32.mrb[0].mxu0
      %2728 = vmatprep.mubr.bf16.mxu0 %v2401
      %2729 = vmatmul.mubr.bf16.gmra.mrb[0].mxu0 %v2400
      %v2730 = vpop.f32.mrb[0].mxu0
      %v2731 = vadd.f32 0.0, %v2730
      %v2732 = vpop.f32.mrb[0].mxu0
      %v2733 = vpop.f32.mrb[0].mxu0
      %v2734 = vadd.f32 0.0, %v2733
      %v2735 = vpop.f32.mrb[0].mxu0
      %2736 = vmatprep.mubr.bf16.mxu0 %v2404
      %2737 = vmatmul.mubr.bf16.gmra.mrb[0].mxu0 %v2403
      %v2738 = vpop.f32.mrb[0].mxu0
      %v2739 = vadd.f32 0.0, %v2738
      %v2740 = vpop.f32.mrb[0].mxu0
      %v2741 = vpop.f32.mrb[0].mxu0
      %v2742 = vadd.f32 0.0, %v2741
      %v2743 = vpop.f32.mrb[0].mxu0
      %2744 = vmatprep.mubr.bf16.mxu0 %v2407
      %2745 = vmatmul.mubr.bf16.gmra.mrb[0].mxu0 %v2406
      %v2746 = vpop.f32.mrb[0].mxu0
      %v2747 = vadd.f32 0.0, %v2746
      %v2748 = vpop.f32.mrb[0].mxu0
      %v2749 = vpop.f32.mrb[0].mxu0
      %v2750 = vadd.f32 0.0, %v2749
      %v2751 = vpop.f32.mrb[0].mxu0
      %2752 = vmatprep.mubr.bf16.mxu0 %v2410
      %2753 = vmatmul.mubr.bf16.gmra.mrb[0].mxu0 %v2409
      %v2754 = vpop.f32.mrb[0].mxu0
      %v2755 = vadd.f32 0.0, %v2754
      %v2756 = vpop.f32.mrb[0].mxu0
      %v2757 = vpop.f32.mrb[0].mxu0
      %v2758 = vadd.f32 0.0, %v2757
      %v2759 = vpop.f32.mrb[0].mxu0
      %2760 = vmatprep.mubr.bf16.mxu0 %v2413
      %2761 = vmatmul.mubr.bf16.gmra.mrb[0].mxu0 %v2412
      %v2762 = vpop.f32.mrb[0].mxu0
      %v2763 = vadd.f32 0.0, %v2762
      %v2764 = vpop.f32.mrb[0].mxu0
      %v2765 = vpop.f32.mrb[0].mxu0
      %v2766 = vadd.f32 0.0, %v2765
      %v2767 = vpop.f32.mrb[0].mxu0
      %2768 = vdwg.mxu0
      %2769 = vmatprep.subr.bf16.mxu0 0
      %2770 = vmatpush1.bf16.msra.mxu0 %v2576
      %2771 = vmatprep.subr.bf16.mxu0 0
      %2772 = vmatpush1.bf16.msra.mxu0 %v2577
      %2773 = vmatprep.subr.bf16.mxu0 0
      %2774 = vmatpush1.bf16.msra.mxu0 %v2578
      %2775 = vmatprep.subr.bf16.mxu0 0
      %2776 = vmatpush1.bf16.msra.mxu0 %v2579
      %2777 = vmatprep.subr.bf16.mxu0 0
      %2778 = vmatpush1.bf16.msra.mxu0 %v2580
      %2779 = vmatprep.subr.bf16.mxu0 0
      %2780 = vmatpush1.bf16.msra.mxu0 %v2581
      %2781 = vmatprep.subr.bf16.mxu0 0
      %2782 = vmatpush1.bf16.msra.mxu0 %v2582
      %2783 = vmatprep.subr.bf16.mxu0 0
      %2784 = vmatpush1.bf16.msra.mxu0 %v2583
      %2785 = vmatprep.subr.bf16.mxu0 0
      %2786 = vmatpush1.bf16.msra.mxu0 0
      %2787 = vmatprep.subr.bf16.mxu0 0
      %2788 = vmatpush1.bf16.msra.mxu0 0
      %2789 = vmatprep.subr.bf16.mxu0 0
      %2790 = vmatpush1.bf16.msra.mxu0 0
      %2791 = vmatprep.subr.bf16.mxu0 0
      %2792 = vmatpush1.bf16.msra.mxu0 0
      %2793 = vmatprep.subr.bf16.mxu0 0
      %2794 = vmatpush1.bf16.msra.mxu0 0
      %2795 = vmatprep.subr.bf16.mxu0 0
      %2796 = vmatpush1.bf16.msra.mxu0 0
      %2797 = vmatprep.subr.bf16.mxu0 0
      %2798 = vmatpush1.bf16.msra.mxu0 0
      %2799 = vmatprep.subr.bf16.mxu0 0
      %2800 = vmatpush1.bf16.msra.mxu0 0
      %2801 = vmatprep.mubr.bf16.mxu0 0
      %2802 = vmatmul.mubr.bf16.gmra.mrb[0].mxu0 %v2369
      %v2803 = vpop.f32.mrb[0].mxu0
      %v2804 = vadd.f32 %v2643, %v2803
      %v2805 = vpop.f32.mrb[0].mxu0
      %v2806 = vpop.f32.mrb[0].mxu0
      %v2807 = vadd.f32 %v2646, %v2806
      %v2808 = vpop.f32.mrb[0].mxu0
      %2809 = vmatprep.mubr.bf16.mxu0 0
      %2810 = vmatmul.mubr.bf16.gmra.mrb[0].mxu0 %v2372
      %v2811 = vpop.f32.mrb[0].mxu0
      %v2812 = vadd.f32 %v2651, %v2811
      %v2813 = vpop.f32.mrb[0].mxu0
      %v2814 = vpop.f32.mrb[0].mxu0
      %v2815 = vadd.f32 %v2654, %v2814
      %v2816 = vpop.f32.mrb[0].mxu0
      %2817 = vmatprep.mubr.bf16.mxu0 0
      %2818 = vmatmul.mubr.bf16.gmra.mrb[0].mxu0 %v2375
      %v2819 = vpop.f32.mrb[0].mxu0
      %v2820 = vadd.f32 %v2659, %v2819
      %v2821 = vpop.f32.mrb[0].mxu0
      %v2822 = vpop.f32.mrb[0].mxu0
      %v2823 = vadd.f32 %v2662, %v2822
      %v2824 = vpop.f32.mrb[0].mxu0
      %2825 = vmatprep.mubr.bf16.mxu0 0
      %2826 = vmatmul.mubr.bf16.gmra.mrb[0].mxu0 %v2378
      %v2827 = vpop.f32.mrb[0].mxu0
      %v2828 = vadd.f32 %v2667, %v2827
      %v2829 = vpop.f32.mrb[0].mxu0
      %v2830 = vpop.f32.mrb[0].mxu0
      %v2831 = vadd.f32 %v2670, %v2830
      %v2832 = vpop.f32.mrb[0].mxu0
      %2833 = vmatprep.mubr.bf16.mxu0 0
      %2834 = vmatmul.mubr.bf16.gmra.mrb[0].mxu0 %v2381
      %v2835 = vpop.f32.mrb[0].mxu0
      %v2836 = vadd.f32 %v2675, %v2835
      %v2837 = vpop.f32.mrb[0].mxu0
      %v2838 = vpop.f32.mrb[0].mxu0
      %v2839 = vadd.f32 %v2678, %v2838
      %v2840 = vpop.f32.mrb[0].mxu0
      %2841 = vmatprep.mubr.bf16.mxu0 0
      %2842 = vmatmul.mubr.bf16.gmra.mrb[0].mxu0 %v2384
      %v2843 = vpop.f32.mrb[0].mxu0
      %v2844 = vadd.f32 %v2683, %v2843
      %v2845 = vpop.f32.mrb[0].mxu0
      %v2846 = vpop.f32.mrb[0].mxu0
      %v2847 = vadd.f32 %v2686, %v2846
      %v2848 = vpop.f32.mrb[0].mxu0
      %2849 = vmatprep.mubr.bf16.mxu0 0
      %2850 = vmatmul.mubr.bf16.gmra.mrb[0].mxu0 %v2387
      %v2851 = vpop.f32.mrb[0].mxu0
      %v2852 = vadd.f32 %v2691, %v2851
      %v2853 = vpop.f32.mrb[0].mxu0
      %v2854 = vpop.f32.mrb[0].mxu0
      %v2855 = vadd.f32 %v2694, %v2854
      %v2856 = vpop.f32.mrb[0].mxu0
      %2857 = vmatprep.mubr.bf16.mxu0 0
      %2858 = vmatmul.mubr.bf16.gmra.mrb[0].mxu0 %v2390
      %v2859 = vpop.f32.mrb[0].mxu0
      %v2860 = vadd.f32 %v2699, %v2859
      %v2861 = vpop.f32.mrb[0].mxu0
      %v2862 = vpop.f32.mrb[0].mxu0
      %v2863 = vadd.f32 %v2702, %v2862
      %v2864 = vpop.f32.mrb[0].mxu0
      %2865 = vmatprep.mubr.bf16.mxu0 0
      %2866 = vmatmul.mubr.bf16.gmra.mrb[0].mxu0 %v2393
      %v2867 = vpop.f32.mrb[0].mxu0
      %v2868 = vadd.f32 %v2707, %v2867
      %v2869 = vpop.f32.mrb[0].mxu0
      %v2870 = vpop.f32.mrb[0].mxu0
      %v2871 = vadd.f32 %v2710, %v2870
      %v2872 = vpop.f32.mrb[0].mxu0
      %2873 = vmatprep.mubr.bf16.mxu0 0
      %2874 = vmatmul.mubr.bf16.gmra.mrb[0].mxu0 %v2396
      %v2875 = vpop.f32.mrb[0].mxu0
      %v2876 = vadd.f32 %v2715, %v2875
      %v2877 = vpop.f32.mrb[0].mxu0
      %v2878 = vpop.f32.mrb[0].mxu0
      %v2879 = vadd.f32 %v2718, %v2878
      %v2880 = vpop.f32.mrb[0].mxu0
      %2881 = vmatprep.mubr.bf16.mxu0 0
      %2882 = vmatmul.mubr.bf16.gmra.mrb[0].mxu0 %v2399
      %v2883 = vpop.f32.mrb[0].mxu0
      %v2884 = vadd.f32 %v2723, %v2883
      %v2885 = vpop.f32.mrb[0].mxu0
      %v2886 = vpop.f32.mrb[0].mxu0
      %v2887 = vadd.f32 %v2726, %v2886
      %v2888 = vpop.f32.mrb[0].mxu0
      %2889 = vmatprep.mubr.bf16.mxu0 0
      %2890 = vmatmul.mubr.bf16.gmra.mrb[0].mxu0 %v2402
      %v2891 = vpop.f32.mrb[0].mxu0
      %v2892 = vadd.f32 %v2731, %v2891
      %v2893 = vpop.f32.mrb[0].mxu0
      %v2894 = vpop.f32.mrb[0].mxu0
      %v2895 = vadd.f32 %v2734, %v2894
      %v2896 = vpop.f32.mrb[0].mxu0
      %2897 = vmatprep.mubr.bf16.mxu0 0
      %2898 = vmatmul.mubr.bf16.gmra.mrb[0].mxu0 %v2405
      %v2899 = vpop.f32.mrb[0].mxu0
      %v2900 = vadd.f32 %v2739, %v2899
      %v2901 = vpop.f32.mrb[0].mxu0
      %v2902 = vpop.f32.mrb[0].mxu0
      %v2903 = vadd.f32 %v2742, %v2902
      %v2904 = vpop.f32.mrb[0].mxu0
      %2905 = vmatprep.mubr.bf16.mxu0 0
      %2906 = vmatmul.mubr.bf16.gmra.mrb[0].mxu0 %v2408
      %v2907 = vpop.f32.mrb[0].mxu0
      %v2908 = vadd.f32 %v2747, %v2907
      %v2909 = vpop.f32.mrb[0].mxu0
      %v2910 = vpop.f32.mrb[0].mxu0
      %v2911 = vadd.f32 %v2750, %v2910
      %v2912 = vpop.f32.mrb[0].mxu0
      %2913 = vmatprep.mubr.bf16.mxu0 0
      %2914 = vmatmul.mubr.bf16.gmra.mrb[0].mxu0 %v2411
      %v2915 = vpop.f32.mrb[0].mxu0
      %v2916 = vadd.f32 %v2755, %v2915
      %v2917 = vpop.f32.mrb[0].mxu0
      %v2918 = vpop.f32.mrb[0].mxu0
      %v2919 = vadd.f32 %v2758, %v2918
      %v2920 = vpop.f32.mrb[0].mxu0
      %2921 = vmatprep.mubr.bf16.mxu0 0
      %2922 = vmatmul.mubr.bf16.gmra.mrb[0].mxu0 %v2414
      %v2923 = vpop.f32.mrb[0].mxu0
      %v2924 = vadd.f32 %v2763, %v2923
      %v2925 = vpop.f32.mrb[0].mxu0
      %v2926 = vpop.f32.mrb[0].mxu0
      %v2927 = vadd.f32 %v2766, %v2926
      %v2928 = vpop.f32.mrb[0].mxu0
      %2929 = vdwg.mxu0
      %v2930 = vadd.f32 %v2241, %v2804
      %v2931 = vadd.f32 %v2244, %v2807
      %v2932 = vadd.f32 %v2249, %v2812
      %v2933 = vadd.f32 %v2252, %v2815
      %v2934 = vadd.f32 %v2257, %v2820
      %v2935 = vadd.f32 %v2260, %v2823
      %v2936 = vadd.f32 %v2265, %v2828
      %v2937 = vadd.f32 %v2268, %v2831
      %v2938 = vadd.f32 %v2273, %v2836
      %v2939 = vadd.f32 %v2276, %v2839
      %v2940 = vadd.f32 %v2281, %v2844
      %v2941 = vadd.f32 %v2284, %v2847
      %v2942 = vadd.f32 %v2289, %v2852
      %v2943 = vadd.f32 %v2292, %v2855
      %v2944 = vadd.f32 %v2297, %v2860
      %v2945 = vadd.f32 %v2300, %v2863
      %v2946 = vadd.f32 %v2305, %v2868
      %v2947 = vadd.f32 %v2308, %v2871
      %v2948 = vadd.f32 %v2313, %v2876
      %v2949 = vadd.f32 %v2316, %v2879
      %v2950 = vadd.f32 %v2321, %v2884
      %v2951 = vadd.f32 %v2324, %v2887
      %v2952 = vadd.f32 %v2329, %v2892
      %v2953 = vadd.f32 %v2332, %v2895
      %v2954 = vadd.f32 %v2337, %v2900
      %v2955 = vadd.f32 %v2340, %v2903
      %v2956 = vadd.f32 %v2345, %v2908
      %v2957 = vadd.f32 %v2348, %v2911
      %v2958 = vadd.f32 %v2353, %v2916
      %v2959 = vadd.f32 %v2356, %v2919
      %v2960 = vadd.f32 %v2361, %v2924
      %v2961 = vadd.f32 %v2364, %v2927
      %v2962 = vpack.c.bf16 %v2931, %v2930
      %v2963 = vpack.c.bf16 %v2933, %v2932
      %v2964 = vpack.c.bf16 %v2935, %v2934
      %v2965 = vpack.c.bf16 %v2937, %v2936
      %v2966 = vpack.c.bf16 %v2939, %v2938
      %v2967 = vpack.c.bf16 %v2941, %v2940
      %v2968 = vpack.c.bf16 %v2943, %v2942
      %v2969 = vpack.c.bf16 %v2945, %v2944
      %v2970 = vpack.c.bf16 %v2947, %v2946
      %v2971 = vpack.c.bf16 %v2949, %v2948
      %v2972 = vpack.c.bf16 %v2951, %v2950
      %v2973 = vpack.c.bf16 %v2953, %v2952
      %v2974 = vpack.c.bf16 %v2955, %v2954
      %v2975 = vpack.c.bf16 %v2957, %v2956
      %v2976 = vpack.c.bf16 %v2959, %v2958
      %v2977 = vpack.c.bf16 %v2961, %v2960
      %v2994 = vunpack.c.l.b16 %v2962
      %v2995 = vunpack.c.h.b16 %v2962
      %v2996 = vunpack.c.l.b16 %v2963
      %v2997 = vunpack.c.h.b16 %v2963
      %v2998 = vunpack.c.l.b16 %v2964
      %v2999 = vunpack.c.h.b16 %v2964
      %v3000 = vunpack.c.l.b16 %v2965
      %v3001 = vunpack.c.h.b16 %v2965
      %v3002 = vunpack.c.l.b16 %v2966
      %v3003 = vunpack.c.h.b16 %v2966
      %v3004 = vunpack.c.l.b16 %v2967
      %v3005 = vunpack.c.h.b16 %v2967
      %v3006 = vunpack.c.l.b16 %v2968
      %v3007 = vunpack.c.h.b16 %v2968
      %v3008 = vunpack.c.l.b16 %v2969
      %v3009 = vunpack.c.h.b16 %v2969
      %v3010 = vunpack.c.l.b16 %v2970
      %v3011 = vunpack.c.h.b16 %v2970
      %v3012 = vunpack.c.l.b16 %v2971
      %v3013 = vunpack.c.h.b16 %v2971
      %v3014 = vunpack.c.l.b16 %v2972
      %v3015 = vunpack.c.h.b16 %v2972
      %v3016 = vunpack.c.l.b16 %v2973
      %v3017 = vunpack.c.h.b16 %v2973
      %v3018 = vunpack.c.l.b16 %v2974
      %v3019 = vunpack.c.h.b16 %v2974
      %v3020 = vunpack.c.l.b16 %v2975
      %v3021 = vunpack.c.h.b16 %v2975
      %v3022 = vunpack.c.l.b16 %v2976
      %v3023 = vunpack.c.h.b16 %v2976
      %v3024 = vunpack.c.l.b16 %v2977
      %v3025 = vunpack.c.h.b16 %v2977
      %v3026 = vpack.c.b16 %v2994, %v2994
      %v3027 = vpack.c.b16 %v2995, %v2995
      %v3028 = vpack.c.b16 %v2996, %v2996
      %v3029 = vpack.c.b16 %v2997, %v2997
      %v3030 = vpack.c.b16 %v2998, %v2998
      %v3031 = vpack.c.b16 %v2999, %v2999
      %v3032 = vpack.c.b16 %v3000, %v3000
      %v3033 = vpack.c.b16 %v3001, %v3001
      %v3034 = vpack.c.b16 %v3002, %v3002
      %v3035 = vpack.c.b16 %v3003, %v3003
      %v3036 = vpack.c.b16 %v3004, %v3004
      %v3037 = vpack.c.b16 %v3005, %v3005
      %v3038 = vpack.c.b16 %v3006, %v3006
      %v3039 = vpack.c.b16 %v3007, %v3007
      %v3040 = vpack.c.b16 %v3008, %v3008
      %v3041 = vpack.c.b16 %v3009, %v3009
      %v3042 = vpack.c.b16 %v3010, %v3010
      %v3043 = vpack.c.b16 %v3011, %v3011
      %v3044 = vpack.c.b16 %v3012, %v3012
      %v3045 = vpack.c.b16 %v3013, %v3013
      %v3046 = vpack.c.b16 %v3014, %v3014
      %v3047 = vpack.c.b16 %v3015, %v3015
      %v3048 = vpack.c.b16 %v3016, %v3016
      %v3049 = vpack.c.b16 %v3017, %v3017
      %v3050 = vpack.c.b16 %v3018, %v3018
      %v3051 = vpack.c.b16 %v3019, %v3019
      %v3052 = vpack.c.b16 %v3020, %v3020
      %v3053 = vpack.c.b16 %v3021, %v3021
      %v3054 = vpack.c.b16 %v3022, %v3022
      %v3055 = vpack.c.b16 %v3023, %v3023
      %v3056 = vpack.c.b16 %v3024, %v3024
      %v3057 = vpack.c.b16 %v3025, %v3025
      %3090 = vst [vmem:[%s233] sm:$0xf] %v3026
      %3091 = vst [vmem:[%s233 + $0x4] sm:$0xf] %v3027
      %3092 = vst [vmem:[%s233 + $0x8] sm:$0xf] %v3028
      %3093 = vst [vmem:[%s233 + $0xc] sm:$0xf] %v3029
      %3094 = vst [vmem:[%s233 + $0x10] sm:$0xf] %v3030
      %3095 = vst [vmem:[%s233 + $0x14] sm:$0xf] %v3031
      %3096 = vst [vmem:[%s233 + $0x18] sm:$0xf] %v3032
      %3097 = vst [vmem:[%s233 + $0x1c] sm:$0xf] %v3033
      %3098 = vst [vmem:[%s233 + $0x20] sm:$0xf] %v3034
      %3099 = vst [vmem:[%s233 + $0x24] sm:$0xf] %v3035
      %3100 = vst [vmem:[%s233 + $0x28] sm:$0xf] %v3036
      %3101 = vst [vmem:[%s233 + $0x2c] sm:$0xf] %v3037
      %3102 = vst [vmem:[%s233 + $0x30] sm:$0xf] %v3038
      %3103 = vst [vmem:[%s233 + $0x34] sm:$0xf] %v3039
      %3104 = vst [vmem:[%s233 + $0x38] sm:$0xf] %v3040
      %3105 = vst [vmem:[%s233 + $0x3c] sm:$0xf] %v3041
      %3106 = vst [vmem:[%s233 + $0x40] sm:$0xf] %v3042
      %3107 = vst [vmem:[%s233 + $0x44] sm:$0xf] %v3043
      %3108 = vst [vmem:[%s233 + $0x48] sm:$0xf] %v3044
      %3109 = vst [vmem:[%s233 + $0x4c] sm:$0xf] %v3045
      %3110 = vst [vmem:[%s233 + $0x50] sm:$0xf] %v3046
      %3111 = vst [vmem:[%s233 + $0x54] sm:$0xf] %v3047
      %3112 = vst [vmem:[%s233 + $0x58] sm:$0xf] %v3048
      %3113 = vst [vmem:[%s233 + $0x5c] sm:$0xf] %v3049
      %3114 = vst [vmem:[%s233 + $0x60] sm:$0xf] %v3050
      %3115 = vst [vmem:[%s233 + $0x64] sm:$0xf] %v3051
      %3116 = vst [vmem:[%s233 + $0x68] sm:$0xf] %v3052
      %3117 = vst [vmem:[%s233 + $0x6c] sm:$0xf] %v3053
      %3118 = vst [vmem:[%s233 + $0x70] sm:$0xf] %v3054
      %3119 = vst [vmem:[%s233 + $0x74] sm:$0xf] %v3055
      %3120 = vst [vmem:[%s233 + $0x78] sm:$0xf] %v3056
      %3121 = vst [vmem:[%s233 + $0x7c] sm:$0xf] %v3057
      %v3122 = vadd.f32 %v2930, %v2931
      %v3123 = vadd.f32 %v3122, %v2932
      %v3124 = vadd.f32 %v3123, %v2933
      %v3125 = vadd.f32 %v3124, %v2934
      %v3126 = vadd.f32 %v3125, %v2935
      %v3127 = vadd.f32 %v3126, %v2936
      %v3128 = vadd.f32 %v3127, %v2937
      %v3129 = vadd.f32 %v3128, %v2938
      %v3130 = vadd.f32 %v3129, %v2939
      %v3131 = vadd.f32 %v3130, %v2940
      %v3132 = vadd.f32 %v3131, %v2941
      %v3133 = vadd.f32 %v3132, %v2942
      %v3134 = vadd.f32 %v3133, %v2943
      %v3135 = vadd.f32 %v3134, %v2944
      %v3136 = vadd.f32 %v3135, %v2945
      %v3137 = vadd.f32 %v3136, %v2946
      %v3138 = vadd.f32 %v3137, %v2947
      %v3139 = vadd.f32 %v3138, %v2948
      %v3140 = vadd.f32 %v3139, %v2949
      %v3141 = vadd.f32 %v3140, %v2950
      %v3142 = vadd.f32 %v3141, %v2951
      %v3143 = vadd.f32 %v3142, %v2952
      %v3144 = vadd.f32 %v3143, %v2953
      %v3145 = vadd.f32 %v3144, %v2954
      %v3146 = vadd.f32 %v3145, %v2955
      %v3147 = vadd.f32 %v3146, %v2956
      %v3148 = vadd.f32 %v3147, %v2957
      %v3149 = vadd.f32 %v3148, %v2958
      %v3150 = vadd.f32 %v3149, %v2959
      %v3151 = vadd.f32 %v3150, %v2960
      %v3152 = vadd.f32 %v3151, %v2961
      %v3153 = vrot.slane %v3152, 4
      %v3154 = vadd.f32 %v3152, %v3153
      %v3155 = vrot.slane %v3154, 2
      %v3156 = vadd.f32 %v3154, %v3155
      %v3157 = vrot.slane %v3156, 1
      %v3158 = vadd.f32 %v3156, %v3157
      %v3159 = vmul.f32 %v2930, %v2930
      %v3160 = vmul.f32 %v2931, %v2931
      %v3161 = vmul.f32 %v2932, %v2932
      %v3162 = vmul.f32 %v2933, %v2933
      %v3163 = vmul.f32 %v2934, %v2934
      %v3164 = vmul.f32 %v2935, %v2935
      %v3165 = vmul.f32 %v2936, %v2936
      %v3166 = vmul.f32 %v2937, %v2937
      %v3167 = vmul.f32 %v2938, %v2938
      %v3168 = vmul.f32 %v2939, %v2939
      %v3169 = vmul.f32 %v2940, %v2940
      %v3170 = vmul.f32 %v2941, %v2941
      %v3171 = vmul.f32 %v2942, %v2942
      %v3172 = vmul.f32 %v2943, %v2943
      %v3173 = vmul.f32 %v2944, %v2944
      %v3174 = vmul.f32 %v2945, %v2945
      %v3175 = vmul.f32 %v2946, %v2946
      %v3176 = vmul.f32 %v2947, %v2947
      %v3177 = vmul.f32 %v2948, %v2948
      %v3178 = vmul.f32 %v2949, %v2949
      %v3179 = vmul.f32 %v2950, %v2950
      %v3180 = vmul.f32 %v2951, %v2951
      %v3181 = vmul.f32 %v2952, %v2952
      %v3182 = vmul.f32 %v2953, %v2953
      %v3183 = vmul.f32 %v2954, %v2954
      %v3184 = vmul.f32 %v2955, %v2955
      %v3185 = vmul.f32 %v2956, %v2956
      %v3186 = vmul.f32 %v2957, %v2957
      %v3187 = vmul.f32 %v2958, %v2958
      %v3188 = vmul.f32 %v2959, %v2959
      %v3189 = vmul.f32 %v2960, %v2960
      %v3190 = vmul.f32 %v2961, %v2961
      %v3191 = vadd.f32 %v3159, %v3160
      %v3192 = vadd.f32 %v3191, %v3161
      %v3193 = vadd.f32 %v3192, %v3162
      %v3194 = vadd.f32 %v3193, %v3163
      %v3195 = vadd.f32 %v3194, %v3164
      %v3196 = vadd.f32 %v3195, %v3165
      %v3197 = vadd.f32 %v3196, %v3166
      %v3198 = vadd.f32 %v3197, %v3167
      %v3199 = vadd.f32 %v3198, %v3168
      %v3200 = vadd.f32 %v3199, %v3169
      %v3201 = vadd.f32 %v3200, %v3170
      %v3202 = vadd.f32 %v3201, %v3171
      %v3203 = vadd.f32 %v3202, %v3172
      %v3204 = vadd.f32 %v3203, %v3173
      %v3205 = vadd.f32 %v3204, %v3174
      %v3206 = vadd.f32 %v3205, %v3175
      %v3207 = vadd.f32 %v3206, %v3176
      %v3208 = vadd.f32 %v3207, %v3177
      %v3209 = vadd.f32 %v3208, %v3178
      %v3210 = vadd.f32 %v3209, %v3179
      %v3211 = vadd.f32 %v3210, %v3180
      %v3212 = vadd.f32 %v3211, %v3181
      %v3213 = vadd.f32 %v3212, %v3182
      %v3214 = vadd.f32 %v3213, %v3183
      %v3215 = vadd.f32 %v3214, %v3184
      %v3216 = vadd.f32 %v3215, %v3185
      %v3217 = vadd.f32 %v3216, %v3186
      %v3218 = vadd.f32 %v3217, %v3187
      %v3219 = vadd.f32 %v3218, %v3188
      %v3220 = vadd.f32 %v3219, %v3189
      %v3221 = vadd.f32 %v3220, %v3190
      %v3222 = vrot.slane %v3221, 4
      %v3223 = vadd.f32 %v3221, %v3222
      %v3224 = vrot.slane %v3223, 2
      %v3225 = vadd.f32 %v3223, %v3224
      %v3226 = vrot.slane %v3225, 1
      %v3227 = vadd.f32 %v3225, %v3226
      %vm3228 = vcmp.eq.s32.totalorder %v415, 0
      %v3229 = vsel %vm3228, %v3158, 0.0
      %vm3230 = vcmp.eq.s32.totalorder %v415, 1
      %v3231 = vsel %vm3230, %v3227, 0.0
      %v3232 = vadd.f32 %v3229, %v3231
      %3233 = vst [vmem:[%s238] sm:$0xff] %v3232
      %s3234 = smul.u32 32, %s17
      %p3235 = scmp.lt.s32.totalorder %s3234, 63
      %s3236 = scalar_select %p3235, %s3234, 63
      %s3237 = smul.addr %s3236, 4
      %s3238 = scalar_lea.vmem %s4, %s3237
      %p3239 = scmp.lt.s32.totalorder %s17, 1
      %s3240 = scalar_select %p3239, %s17, 1
      %s3241 = smul.addr %s3240, 8
      %s3242 = scalar_lea.vmem %s5, %s3241
      // Predicated region
      $region37: #{bottleneck_forward.5} parent=35 // pred_check
        %p3243 = pneg %p124
      $region38: #{bottleneck_forward.5} parent=35 // pred_check_branch
        %3245 = sbr.rel (%p3243) target = $region40
      $region39: #{bottleneck_forward.5} parent=35 // pred_region
        %s3246 = smul.u32 32, %s17
      $region40: #{bottleneck_forward.5} parent=35 // pred_fallthru
        _
      // Predicated region
      $region41: #{bottleneck_forward.5} parent=35 // pred_check
        %p3247 = pneg %p150
      $region42: #{bottleneck_forward.5} parent=35 // pred_check_branch
        %3249 = sbr.rel (%p3247) target = $region44
      $region43: #{bottleneck_forward.5} parent=35 // pred_region
        _
      $region44: #{bottleneck_forward.5} parent=35 // pred_fallthru
        _
    $region36: #{bottleneck_forward.5} parent=5 // pred_fallthru
      _
    %p3250 = scmp.le.s32.totalorder 2, %s12
    // Predicated region
    $region45: #{bottleneck_forward.5} parent=5 // pred_check
      %p3251 = pneg %p3250
    $region46: #{bottleneck_forward.5} parent=5 // pred_check_branch
      %3253 = sbr.rel (%p3251) target = $region48
    $region47: #{bottleneck_forward.5} parent=5 // pred_region
      %s3254 = ssub.s32 %s12, 2
      // Predicated region
      $region49: #{bottleneck_forward.5} parent=47 // pred_check
        %p3255 = pneg %p130
      $region50: #{bottleneck_forward.5} parent=47 // pred_check_branch
        %3257 = sbr.rel (%p3255) target = $region52
      $region51: #{bottleneck_forward.5} parent=47 // pred_region
        %s3258 = smul.u32 32, %s18
        %p3259 = scmp.lt.s32.totalorder %s3258, 63
        %s3260 = scalar_select %p3259, %s3258, 63
        %s3261 = smul.addr %s3260, 4
        %s3262 = scalar_lea.vmem %s4, %s3261
      $region52: #{bottleneck_forward.5} parent=47 // pred_fallthru
        _
      // Predicated region
      $region53: #{bottleneck_forward.5} parent=47 // pred_check
        %p3263 = pneg %p156
      $region54: #{bottleneck_forward.5} parent=47 // pred_check_branch
        %3265 = sbr.rel (%p3263) target = $region56
      $region55: #{bottleneck_forward.5} parent=47 // pred_region
        %p3266 = scmp.lt.s32.totalorder %s18, 1
        %s3267 = scalar_select %p3266, %s18, 1
        %s3268 = smul.addr %s3267, 8
        %s3269 = scalar_lea.vmem %s5, %s3268
      $region56: #{bottleneck_forward.5} parent=47 // pred_fallthru
        _
    $region48: #{bottleneck_forward.5} parent=5 // pred_fallthru
      _
  $region6: #{bottleneck_forward.5} parent=0 // loop_footer
    %s16 = sadd.s32 1, %s12
  $region7: #{bottleneck_forward.5} parent=0 // loop_footer_branch
    %11 = sbr.rel target = $region3
  $region8: #{bottleneck_forward.5} parent=0 // loop_exit
    _

</llo_original>
